<compile_context>
chip_gen: v6e
topology: v6e:2x2x1
jax: 0.10.0
libtpu: 0.0.40
codegen_flags: <defaults>
</compile_context>

<pallas_src>
import functools

import jax
import jax.numpy as jnp
from jax.experimental import pallas as pl
from jax.experimental.pallas import tpu as pltpu


def _window_attn_kernel(x_ref, wqkv_ref, bqkv_ref, bias_ref, wout_ref, bout_ref,
                        o_ref, ctx_ref, *, num_heads, head_dim,
                        windows_per_block, window_len):
    """One grid step = TB windows.

    x_ref    : (TB*N, Cp)        activations (any float dtype; cast to bf16)
    wqkv_ref : (Cp, 3C)  bf16    fused QKV weight (chunk order v, q, k),
                                 softmax scale pre-folded into the q chunk
    bqkv_ref : (1, 3C)   f32     (q part pre-scaled)
    bias_ref : (H, N, N) f32     pre-gathered relative position bias
    wout_ref : (C, Cp)   bf16    output projection (Cp = lane-padded C)
    bout_ref : (1, Cp)   f32
    o_ref    : (TB*N, Cp)
    ctx_ref  : (TB*N, C) bf16    VMEM scratch holding the concatenated heads
    """
    tb, n, hd = windows_per_block, window_len, head_dim
    c = num_heads * hd
    m = tb * n

    # ---- fused QKV projection: one lane-dense bf16 matmul, f32 accumulation ----
    x = x_ref[...].astype(jnp.bfloat16)                               # (M, Cp)
    qkv = jnp.dot(x, wqkv_ref[...], preferred_element_type=jnp.float32)
    qkv = (qkv + bqkv_ref[...]).astype(jnp.bfloat16)                  # (M, 3C) bf16

    for h in range(num_heads):                                        # H small: static unroll
        lo = h * hd
        # this module's chunk order: 0 -> v, 1 -> q (pre-scaled), 2 -> k
        v_h = qkv[:, lo:lo + hd].reshape(tb, n, hd)
        q_h = qkv[:, c + lo:c + lo + hd].reshape(tb, n, hd)
        k_h = qkv[:, 2 * c + lo:2 * c + lo + hd].reshape(tb, n, hd)

        # attention scores for all TB windows of this head at once
        s = jnp.einsum("bqd,bkd->bqk", q_h, k_h,
                       preferred_element_type=jnp.float32)            # (TB, N, N) f32
        s = s + bias_ref[h]                                           # (N, N) broadcasts

        # numerically stable softmax in f32; divide -> EUP approx reciprocal
        s = s - jnp.max(s, axis=-1, keepdims=True)
        p = jnp.exp(s)
        p = p * pl.reciprocal(jnp.sum(p, axis=-1, keepdims=True), approx=True)

        ctx = jnp.einsum("bqk,bkd->bqd", p.astype(jnp.bfloat16), v_h,
                         preferred_element_type=jnp.float32)          # (TB, N, hd)

        # write this head's context into its lane range of the bf16 scratch
        ctx_ref[:, lo:lo + hd] = ctx.reshape(m, hd).astype(jnp.bfloat16)

    # ---- single consolidated output projection: K = C fills the MXU ----
    out = jnp.dot(ctx_ref[...], wout_ref[...],
                  preferred_element_type=jnp.float32)                 # (M, Cp)
    out = out + bout_ref[...]
    o_ref[...] = out.astype(o_ref.dtype)


def make_relative_position_index(window_size):
    wh, ww = window_size
    coords = jnp.stack(jnp.meshgrid(jnp.arange(wh), jnp.arange(ww), indexing="ij"))
    coords_flatten = coords.reshape(2, -1)                            # (2, N)
    rel = coords_flatten[:, None, :] - coords_flatten[:, :, None]     # (2, N, N)
    rel = rel.transpose(1, 2, 0)                                      # (N, N, 2)
    rel = rel.at[:, :, 0].add(wh - 1)
    rel = rel.at[:, :, 1].add(ww - 1)
    rel = rel.at[:, :, 0].multiply(2 * ww - 1)
    return rel.sum(-1).reshape(-1)                                    # (N*N,)


def init_params(key, dim, window_size, num_heads):
    """Plain (PyTorch-equivalent) f32 parameters; y = x @ W + b layout."""
    wh, ww = window_size
    k1, k2, k3, k4, k5 = jax.random.split(key, 5)
    return {
        "rb": 0.02 * jax.random.truncated_normal(
            k1, -2.0, 2.0, (num_heads, (2 * wh - 1) * (2 * ww - 1)), jnp.float32),
        "w_qkv": 0.02 * jax.random.normal(k2, (dim, 3 * dim), jnp.float32),
        "b_qkv": 0.02 * jax.random.normal(k3, (3 * dim,), jnp.float32),
        "w_out": 0.02 * jax.random.normal(k4, (dim, dim), jnp.float32),
        "b_out": 0.02 * jax.random.normal(k5, (dim,), jnp.float32),
    }


def prepare_kernel_params(params, window_size, num_heads,
                          compute_dtype=jnp.bfloat16):
    """One-time prep (off the per-call hot path):
      * gather the relative-position bias,
      * fold the softmax scale into the q chunk of the fused QKV weight/bias,
      * zero-pad the model dim to a lane-dense multiple of 128 (Cp),
      * store MXU-facing weights in bf16, additive biases in f32.
    """
    c = params["w_out"].shape[0]
    hd = c // num_heads
    n = window_size[0] * window_size[1]
    scale = hd ** (-0.5)
    cp = ((c + 127) // 128) * 128

    # fold softmax scale into the q chunk (columns [C:2C]); chunk order is v,q,k
    chunk_scale = jnp.concatenate([jnp.ones((c,), jnp.float32),
                                   jnp.full((c,), scale, jnp.float32),
                                   jnp.ones((c,), jnp.float32)])
    w_qkv = params["w_qkv"] * chunk_scale[None, :]                    # (C, 3C)
    b_qkv = params["b_qkv"] * chunk_scale                             # (3C,)
    w_out = params["w_out"]                                           # (C, C)
    b_out = params["b_out"]                                           # (C,)

    # lane-dense padding of the model dim: zero input rows of w_qkv, zero
    # output cols of w_out / b_out; padded x columns are zero in the wrapper.
    if cp != c:
        w_qkv = jnp.pad(w_qkv, ((0, cp - c), (0, 0)))                 # (Cp, 3C)
        w_out = jnp.pad(w_out, ((0, 0), (0, cp - c)))                 # (C, Cp)
        b_out = jnp.pad(b_out, ((0, cp - c),))                        # (Cp,)

    rel_id = make_relative_position_index(window_size)
    bias = params["rb"][:, rel_id].reshape(num_heads, n, n).astype(jnp.float32)
    return {
        "w_qkv": w_qkv.astype(compute_dtype),                         # (Cp, 3C)
        "b_qkv": b_qkv.reshape(1, 3 * c).astype(jnp.float32),
        "bias": bias,                                                 # (H, N, N)
        "w_out": w_out.astype(compute_dtype),                         # (C, Cp)
        "b_out": b_out.reshape(1, cp).astype(jnp.float32),
    }


def _choose_windows_per_block(num_windows, window_len, max_rows=1024):
    """Largest TB dividing B_ with TB*N <= max_rows rows.

    Prefer grid lengths that are even and >= 2 so the single "parallel" grid
    axis splits evenly across v7x's 2 TensorCores; fall back to >= 2 steps
    (pipeline overlap), then to any divisor.  1024 rows keep resident VMEM
    well under v7x's 32 MiB scoped budget at Swin-scale C while amortizing the
    ~0.35 us/step pipeline overhead on v5e/v6e.
    """
    divisors = [d for d in range(1, num_windows + 1) if num_windows % d == 0]
    even = [d for d in divisors
            if num_windows // d >= 2 and (num_windows // d) % 2 == 0]
    pool = even or [d for d in divisors if num_windows // d >= 2] or divisors
    capped = [d for d in pool if d * window_len <= max_rows] or [min(pool)]
    return max(capped)


def window_attention(x, kparams, window_size, num_heads, windows_per_block=None):
    """Forward pass of WindowAttention (mask=None).

    x: (num_windows*B, N, C), any float dtype (bf16 recommended in a bf16
    model: it halves x/o HBM traffic); output dtype matches the input.
    """
    B_, N, C = x.shape
    wh, ww = window_size
    assert N == wh * ww
    assert C % num_heads == 0
    hd = C // num_heads
    # TODO(synk): window areas not divisible by 8 (e.g. 7x7=49) need N padding
    # plus -inf key masking for the cheap (TB*N, hd) <-> (TB, N, hd) reshapes.
    assert N % 8 == 0, "window area must be a multiple of 8 for this kernel"

    Cp = kparams["w_out"].shape[-1]                                   # lane-padded C
    assert kparams["w_out"].shape[0] == C

    tb = windows_per_block or _choose_windows_per_block(B_, N)
    assert B_ % tb == 0
    grid = (B_ // tb,)
    m = tb * N

    # Present activations / output as a 2-D lane-dense (B_*N, Cp) slab.
    x2 = x.reshape(B_ * N, C)
    if Cp != C:
        x2 = jnp.pad(x2, ((0, 0), (0, Cp - C)))

    kernel = functools.partial(
        _window_attn_kernel, num_heads=num_heads, head_dim=hd,
        windows_per_block=tb, window_len=N)

    def _full_spec(arr):
        nd = arr.ndim
        # NOTE(v7x): could add pipeline_mode=pl.Buffered(1) on these invariant
        # weight specs to halve their resident VMEM at large C.
        return pl.BlockSpec(arr.shape, lambda i, _nd=nd: (0,) * _nd)

    out2 = pl.pallas_call(
        kernel,
        out_shape=jax.ShapeDtypeStruct((B_ * N, Cp), x.dtype),
        grid_spec=pltpu.PrefetchScalarGridSpec(
            num_scalar_prefetch=0,
            grid=grid,
            in_specs=[
                pl.BlockSpec((m, Cp), lambda i: (i, 0)),              # x slab
                _full_spec(kparams["w_qkv"]),
                _full_spec(kparams["b_qkv"]),
                _full_spec(kparams["bias"]),
                _full_spec(kparams["w_out"]),
                _full_spec(kparams["b_out"]),
            ],
            out_specs=pl.BlockSpec((m, Cp), lambda i: (i, 0)),
            scratch_shapes=[pltpu.VMEM((m, C), jnp.bfloat16)],        # head-concat ctx
        ),
        compiler_params=pltpu.CompilerParams(
            dimension_semantics=("parallel",),
            # explicit scoped-VMEM budget; actual use here is a few MiB and
            # this stays within v7x's per-TC VMEM.
            vmem_limit_bytes=32 * 1024 * 1024,
        ),
    )(x2, kparams["w_qkv"], kparams["b_qkv"], kparams["bias"],
      kparams["w_out"], kparams["b_out"])

    if Cp != C:
        out2 = out2[:, :C]
    return out2.reshape(B_, N, C)


def window_attention_ref(x, params, window_size, num_heads):
    """Pure-JAX f32 reference mirroring the PyTorch forward (mask=None)."""
    B_, N, C = x.shape
    hd = C // num_heads
    scale = hd ** (-0.5)
    feat = (x @ params["w_qkv"] + params["b_qkv"]).reshape(B_, N, 3, num_heads, hd)
    feat = feat.transpose(2, 0, 3, 1, 4)          # (3, B_, H, N, hd)
    v, q, k = feat[0], feat[1], feat[2]           # module's order: v, q, k
    attn = jnp.einsum("bhnd,bhmd->bhnm", q, k) * scale
    rel_id = make_relative_position_index(window_size)
    bias = params["rb"][:, rel_id].reshape(1, num_heads, N, N)
    attn = jax.nn.softmax(attn + bias, axis=-1)
    out = jnp.einsum("bhnm,bhmd->bhnd", attn, v)
    out = out.transpose(0, 2, 1, 3).reshape(B_, N, C)
    return out @ params["w_out"] + params["b_out"]


if __name__ == "__main__":
    dim = 128                    # C % 128 == 0 -> lane-dense without padding
    window_size = (4, 4)
    num_heads = 4
    N = window_size[0] * window_size[1]
    B_ = 16                      # num_windows * batch -> grid=(2,), TB=8, M=128

    key = jax.random.PRNGKey(0)
    kx, kp = jax.random.split(key)
    x = jax.random.normal(kx, (B_, N, dim), jnp.float32)
    params = init_params(kp, dim, window_size, num_heads)
    kparams = prepare_kernel_params(params, window_size, num_heads)

    out = window_attention(x, kparams, window_size, num_heads)
    out = jax.block_until_ready(out)

    ref = window_attention_ref(x, params, window_size, num_heads)
    assert out.shape == (B_, N, dim)
    # Kernel matmuls run in bf16 on the MXU (f32 accumulation) and the softmax
    # divide uses the EUP approx reciprocal; the reference is pure f32, hence
    # the slightly relaxed tolerance.
    max_err = float(jnp.max(jnp.abs(out - ref)))
    assert jnp.allclose(out, ref, rtol=1e-2, atol=1e-2), (
        f"mismatch vs reference (max abs err {max_err:.3e})")

    print("KERNEL_OK")
</pallas_src>

<mosaic_0001>
module attributes {stable_mosaic.version = 11 : i64} {
  func.func @_window_attn_kernel(%arg0: i32, %arg1: memref<128x128xf32, #tpu.memory_space<vmem>>, %arg2: memref<128x384xbf16, #tpu.memory_space<vmem>>, %arg3: memref<1x384xf32, #tpu.memory_space<vmem>>, %arg4: memref<4x16x16xf32, #tpu.memory_space<vmem>>, %arg5: memref<128x128xbf16, #tpu.memory_space<vmem>>, %arg6: memref<1x128xf32, #tpu.memory_space<vmem>>, %arg7: memref<128x128xf32, #tpu.memory_space<vmem>>, %arg8: memref<128x128xbf16, #tpu.memory_space<vmem>>) attributes {dimension_semantics = [#tpu.dimension_semantics<parallel>], iteration_bounds = array<i64: 2>, scalar_prefetch = 0 : i64, scratch_operands = 1 : i64, tpu.core_type = #tpu.core_type<tc>, window_params = [{transform_indices = @transform_0, window_bounds = array<i64: 128, 128>}, {pipeline_mode = #tpu.pipeline_mode<synchronous>, transform_indices = @transform_1, window_bounds = array<i64: 128, 384>}, {pipeline_mode = #tpu.pipeline_mode<synchronous>, transform_indices = @transform_2, window_bounds = array<i64: 1, 384>}, {pipeline_mode = #tpu.pipeline_mode<synchronous>, transform_indices = @transform_3, window_bounds = array<i64: 4, 16, 16>}, {pipeline_mode = #tpu.pipeline_mode<synchronous>, transform_indices = @transform_4, window_bounds = array<i64: 128, 128>}, {pipeline_mode = #tpu.pipeline_mode<synchronous>, transform_indices = @transform_5, window_bounds = array<i64: 1, 128>}, {transform_indices = @transform_6, window_bounds = array<i64: 128, 128>}]} {
    %c0 = arith.constant 0 : index
    %c0_0 = arith.constant 0 : index
    %0 = vector.load %arg1[%c0, %c0_0] : memref<128x128xf32, #tpu.memory_space<vmem>>, vector<128x128xf32>
    %1 = arith.truncf %0 : vector<128x128xf32> to vector<128x128xbf16>
    %c0_1 = arith.constant 0 : index
    %c0_2 = arith.constant 0 : index
    %2 = vector.load %arg2[%c0_1, %c0_2] : memref<128x384xbf16, #tpu.memory_space<vmem>>, vector<128x384xbf16>
    %cst = arith.constant dense<0.000000e+00> : vector<128x384xf32>
    %3 = tpu.matmul %1, %2, %cst {dimension_numbers = #tpu.dot_dimension_numbers<[1], [0], [0], [1], [0, 0, 1, 1], [], []>} : vector<128x128xbf16>, vector<128x384xbf16>, vector<128x384xf32> -> vector<128x384xf32>
    %c0_3 = arith.constant 0 : index
    %c0_4 = arith.constant 0 : index
    %4 = vector.load %arg3[%c0_3, %c0_4] : memref<1x384xf32, #tpu.memory_space<vmem>>, vector<1x384xf32>
    %5 = vector.broadcast %4 : vector<1x384xf32> to vector<128x384xf32>
    %6 = arith.addf %3, %5 : vector<128x384xf32>
    %7 = arith.truncf %6 : vector<128x384xf32> to vector<128x384xbf16>
    %8 = vector.extract_strided_slice %7 {offsets = [0, 0], sizes = [128, 32], strides = [1, 1]} : vector<128x384xbf16> to vector<128x32xbf16>
    %9 = vector.shape_cast %8 : vector<128x32xbf16> to vector<8x16x32xbf16>
    %10 = vector.extract_strided_slice %7 {offsets = [0, 128], sizes = [128, 32], strides = [1, 1]} : vector<128x384xbf16> to vector<128x32xbf16>
    %11 = vector.shape_cast %10 : vector<128x32xbf16> to vector<8x16x32xbf16>
    %12 = vector.extract_strided_slice %7 {offsets = [0, 256], sizes = [128, 32], strides = [1, 1]} : vector<128x384xbf16> to vector<128x32xbf16>
    %13 = vector.shape_cast %12 : vector<128x32xbf16> to vector<8x16x32xbf16>
    "tpu.trace_start"() <{level = 10 : i32, message = "bqd,bkd->bqk"}> : () -> ()
    %cst_5 = arith.constant dense<0.000000e+00> : vector<8x16x16xf32>
    %14 = tpu.matmul %11, %13, %cst_5 {dimension_numbers = #tpu.dot_dimension_numbers<[2], [2], [1], [1], [0, 0, 0, 1, 1, 1], [0], [0]>} : vector<8x16x32xbf16>, vector<8x16x32xbf16>, vector<8x16x16xf32> -> vector<8x16x16xf32>
    "tpu.trace_stop"() : () -> ()
    %c0_6 = arith.constant 0 : index
    %c0_7 = arith.constant 0 : index
    %c0_8 = arith.constant 0 : index
    %15 = vector.load %arg4[%c0_6, %c0_7, %c0_8] : memref<4x16x16xf32, #tpu.memory_space<vmem>>, vector<1x16x16xf32>
    %16 = vector.shape_cast %15 : vector<1x16x16xf32> to vector<16x16xf32>
    %17 = vector.shape_cast %16 : vector<16x16xf32> to vector<1x16x16xf32>
    %18 = vector.broadcast %17 : vector<1x16x16xf32> to vector<8x16x16xf32>
    %19 = arith.addf %14, %18 : vector<8x16x16xf32>
    %cst_9 = arith.constant dense<0xFF800000> : vector<8x16xf32>
    %20 = vector.multi_reduction <maximumf>, %19, %cst_9 [2] : vector<8x16x16xf32> to vector<8x16xf32>
    %21 = vector.shape_cast %20 : vector<8x16xf32> to vector<8x16x1xf32>
    %22 = vector.broadcast %21 : vector<8x16x1xf32> to vector<8x16x16xf32>
    %23 = arith.subf %19, %22 : vector<8x16x16xf32>
    %24 = math.exp %23 : vector<8x16x16xf32>
    %cst_10 = arith.constant dense<0.000000e+00> : vector<8x16xf32>
    %25 = vector.multi_reduction <add>, %24, %cst_10 [2] : vector<8x16x16xf32> to vector<8x16xf32>
    %26 = vector.shape_cast %25 : vector<8x16xf32> to vector<8x16x1xf32>
    %27 = tpu.reciprocal %26 {approx = true} : vector<8x16x1xf32> -> vector<8x16x1xf32>
    %28 = vector.broadcast %27 : vector<8x16x1xf32> to vector<8x16x16xf32>
    %29 = arith.mulf %24, %28 : vector<8x16x16xf32>
    %30 = arith.truncf %29 : vector<8x16x16xf32> to vector<8x16x16xbf16>
    "tpu.trace_start"() <{level = 10 : i32, message = "bqk,bkd->bqd"}> : () -> ()
    %cst_11 = arith.constant dense<0.000000e+00> : vector<8x16x32xf32>
    %31 = tpu.matmul %30, %9, %cst_11 {dimension_numbers = #tpu.dot_dimension_numbers<[2], [1], [1], [2], [0, 0, 0, 1, 1, 2], [0], [0]>} : vector<8x16x16xbf16>, vector<8x16x32xbf16>, vector<8x16x32xf32> -> vector<8x16x32xf32>
    "tpu.trace_stop"() : () -> ()
    %32 = vector.shape_cast %31 : vector<8x16x32xf32> to vector<128x32xf32>
    %33 = arith.truncf %32 : vector<128x32xf32> to vector<128x32xbf16>
    %c0_12 = arith.constant 0 : index
    %c0_13 = arith.constant 0 : index
    %34 = vector.load %arg8[%c0_12, %c0_13] : memref<128x128xbf16, #tpu.memory_space<vmem>>, vector<128x32xbf16>
    tpu.vector_store %arg8[%c0_12, %c0_13], %33 {strides = array<i32>} : memref<128x128xbf16, #tpu.memory_space<vmem>>, vector<128x32xbf16>,
    %35 = vector.extract_strided_slice %7 {offsets = [0, 32], sizes = [128, 32], strides = [1, 1]} : vector<128x384xbf16> to vector<128x32xbf16>
    %36 = vector.shape_cast %35 : vector<128x32xbf16> to vector<8x16x32xbf16>
    %37 = vector.extract_strided_slice %7 {offsets = [0, 160], sizes = [128, 32], strides = [1, 1]} : vector<128x384xbf16> to vector<128x32xbf16>
    %38 = vector.shape_cast %37 : vector<128x32xbf16> to vector<8x16x32xbf16>
    %39 = vector.extract_strided_slice %7 {offsets = [0, 288], sizes = [128, 32], strides = [1, 1]} : vector<128x384xbf16> to vector<128x32xbf16>
    %40 = vector.shape_cast %39 : vector<128x32xbf16> to vector<8x16x32xbf16>
    "tpu.trace_start"() <{level = 10 : i32, message = "bqd,bkd->bqk"}> : () -> ()
    %cst_14 = arith.constant dense<0.000000e+00> : vector<8x16x16xf32>
    %41 = tpu.matmul %38, %40, %cst_14 {dimension_numbers = #tpu.dot_dimension_numbers<[2], [2], [1], [1], [0, 0, 0, 1, 1, 1], [0], [0]>} : vector<8x16x32xbf16>, vector<8x16x32xbf16>, vector<8x16x16xf32> -> vector<8x16x16xf32>
    "tpu.trace_stop"() : () -> ()
    %c1 = arith.constant 1 : index
    %c0_15 = arith.constant 0 : index
    %c0_16 = arith.constant 0 : index
    %42 = vector.load %arg4[%c1, %c0_15, %c0_16] : memref<4x16x16xf32, #tpu.memory_space<vmem>>, vector<1x16x16xf32>
    %43 = vector.shape_cast %42 : vector<1x16x16xf32> to vector<16x16xf32>
    %44 = vector.shape_cast %43 : vector<16x16xf32> to vector<1x16x16xf32>
    %45 = vector.broadcast %44 : vector<1x16x16xf32> to vector<8x16x16xf32>
    %46 = arith.addf %41, %45 : vector<8x16x16xf32>
    %cst_17 = arith.constant dense<0xFF800000> : vector<8x16xf32>
    %47 = vector.multi_reduction <maximumf>, %46, %cst_17 [2] : vector<8x16x16xf32> to vector<8x16xf32>
    %48 = vector.shape_cast %47 : vector<8x16xf32> to vector<8x16x1xf32>
    %49 = vector.broadcast %48 : vector<8x16x1xf32> to vector<8x16x16xf32>
    %50 = arith.subf %46, %49 : vector<8x16x16xf32>
    %51 = math.exp %50 : vector<8x16x16xf32>
    %cst_18 = arith.constant dense<0.000000e+00> : vector<8x16xf32>
    %52 = vector.multi_reduction <add>, %51, %cst_18 [2] : vector<8x16x16xf32> to vector<8x16xf32>
    %53 = vector.shape_cast %52 : vector<8x16xf32> to vector<8x16x1xf32>
    %54 = tpu.reciprocal %53 {approx = true} : vector<8x16x1xf32> -> vector<8x16x1xf32>
    %55 = vector.broadcast %54 : vector<8x16x1xf32> to vector<8x16x16xf32>
    %56 = arith.mulf %51, %55 : vector<8x16x16xf32>
    %57 = arith.truncf %56 : vector<8x16x16xf32> to vector<8x16x16xbf16>
    "tpu.trace_start"() <{level = 10 : i32, message = "bqk,bkd->bqd"}> : () -> ()
    %cst_19 = arith.constant dense<0.000000e+00> : vector<8x16x32xf32>
    %58 = tpu.matmul %57, %36, %cst_19 {dimension_numbers = #tpu.dot_dimension_numbers<[2], [1], [1], [2], [0, 0, 0, 1, 1, 2], [0], [0]>} : vector<8x16x16xbf16>, vector<8x16x32xbf16>, vector<8x16x32xf32> -> vector<8x16x32xf32>
    "tpu.trace_stop"() : () -> ()
    %59 = vector.shape_cast %58 : vector<8x16x32xf32> to vector<128x32xf32>
    %60 = arith.truncf %59 : vector<128x32xf32> to vector<128x32xbf16>
    %c0_20 = arith.constant 0 : index
    %c32 = arith.constant 32 : index
    %61 = vector.load %arg8[%c0_20, %c32] : memref<128x128xbf16, #tpu.memory_space<vmem>>, vector<128x32xbf16>
    tpu.vector_store %arg8[%c0_20, %c32], %60 {strides = array<i32>} : memref<128x128xbf16, #tpu.memory_space<vmem>>, vector<128x32xbf16>,
    %62 = vector.extract_strided_slice %7 {offsets = [0, 64], sizes = [128, 32], strides = [1, 1]} : vector<128x384xbf16> to vector<128x32xbf16>
    %63 = vector.shape_cast %62 : vector<128x32xbf16> to vector<8x16x32xbf16>
    %64 = vector.extract_strided_slice %7 {offsets = [0, 192], sizes = [128, 32], strides = [1, 1]} : vector<128x384xbf16> to vector<128x32xbf16>
    %65 = vector.shape_cast %64 : vector<128x32xbf16> to vector<8x16x32xbf16>
    %66 = vector.extract_strided_slice %7 {offsets = [0, 320], sizes = [128, 32], strides = [1, 1]} : vector<128x384xbf16> to vector<128x32xbf16>
    %67 = vector.shape_cast %66 : vector<128x32xbf16> to vector<8x16x32xbf16>
    "tpu.trace_start"() <{level = 10 : i32, message = "bqd,bkd->bqk"}> : () -> ()
    %cst_21 = arith.constant dense<0.000000e+00> : vector<8x16x16xf32>
    %68 = tpu.matmul %65, %67, %cst_21 {dimension_numbers = #tpu.dot_dimension_numbers<[2], [2], [1], [1], [0, 0, 0, 1, 1, 1], [0], [0]>} : vector<8x16x32xbf16>, vector<8x16x32xbf16>, vector<8x16x16xf32> -> vector<8x16x16xf32>
    "tpu.trace_stop"() : () -> ()
    %c2 = arith.constant 2 : index
    %c0_22 = arith.constant 0 : index
    %c0_23 = arith.constant 0 : index
    %69 = vector.load %arg4[%c2, %c0_22, %c0_23] : memref<4x16x16xf32, #tpu.memory_space<vmem>>, vector<1x16x16xf32>
    %70 = vector.shape_cast %69 : vector<1x16x16xf32> to vector<16x16xf32>
    %71 = vector.shape_cast %70 : vector<16x16xf32> to vector<1x16x16xf32>
    %72 = vector.broadcast %71 : vector<1x16x16xf32> to vector<8x16x16xf32>
    %73 = arith.addf %68, %72 : vector<8x16x16xf32>
    %cst_24 = arith.constant dense<0xFF800000> : vector<8x16xf32>
    %74 = vector.multi_reduction <maximumf>, %73, %cst_24 [2] : vector<8x16x16xf32> to vector<8x16xf32>
    %75 = vector.shape_cast %74 : vector<8x16xf32> to vector<8x16x1xf32>
    %76 = vector.broadcast %75 : vector<8x16x1xf32> to vector<8x16x16xf32>
    %77 = arith.subf %73, %76 : vector<8x16x16xf32>
    %78 = math.exp %77 : vector<8x16x16xf32>
    %cst_25 = arith.constant dense<0.000000e+00> : vector<8x16xf32>
    %79 = vector.multi_reduction <add>, %78, %cst_25 [2] : vector<8x16x16xf32> to vector<8x16xf32>
    %80 = vector.shape_cast %79 : vector<8x16xf32> to vector<8x16x1xf32>
    %81 = tpu.reciprocal %80 {approx = true} : vector<8x16x1xf32> -> vector<8x16x1xf32>
    %82 = vector.broadcast %81 : vector<8x16x1xf32> to vector<8x16x16xf32>
    %83 = arith.mulf %78, %82 : vector<8x16x16xf32>
    %84 = arith.truncf %83 : vector<8x16x16xf32> to vector<8x16x16xbf16>
    "tpu.trace_start"() <{level = 10 : i32, message = "bqk,bkd->bqd"}> : () -> ()
    %cst_26 = arith.constant dense<0.000000e+00> : vector<8x16x32xf32>
    %85 = tpu.matmul %84, %63, %cst_26 {dimension_numbers = #tpu.dot_dimension_numbers<[2], [1], [1], [2], [0, 0, 0, 1, 1, 2], [0], [0]>} : vector<8x16x16xbf16>, vector<8x16x32xbf16>, vector<8x16x32xf32> -> vector<8x16x32xf32>
    "tpu.trace_stop"() : () -> ()
    %86 = vector.shape_cast %85 : vector<8x16x32xf32> to vector<128x32xf32>
    %87 = arith.truncf %86 : vector<128x32xf32> to vector<128x32xbf16>
    %c0_27 = arith.constant 0 : index
    %c64 = arith.constant 64 : index
    %88 = vector.load %arg8[%c0_27, %c64] : memref<128x128xbf16, #tpu.memory_space<vmem>>, vector<128x32xbf16>
    tpu.vector_store %arg8[%c0_27, %c64], %87 {strides = array<i32>} : memref<128x128xbf16, #tpu.memory_space<vmem>>, vector<128x32xbf16>,
    %89 = vector.extract_strided_slice %7 {offsets = [0, 96], sizes = [128, 32], strides = [1, 1]} : vector<128x384xbf16> to vector<128x32xbf16>
    %90 = vector.shape_cast %89 : vector<128x32xbf16> to vector<8x16x32xbf16>
    %91 = vector.extract_strided_slice %7 {offsets = [0, 224], sizes = [128, 32], strides = [1, 1]} : vector<128x384xbf16> to vector<128x32xbf16>
    %92 = vector.shape_cast %91 : vector<128x32xbf16> to vector<8x16x32xbf16>
    %93 = vector.extract_strided_slice %7 {offsets = [0, 352], sizes = [128, 32], strides = [1, 1]} : vector<128x384xbf16> to vector<128x32xbf16>
    %94 = vector.shape_cast %93 : vector<128x32xbf16> to vector<8x16x32xbf16>
    "tpu.trace_start"() <{level = 10 : i32, message = "bqd,bkd->bqk"}> : () -> ()
    %cst_28 = arith.constant dense<0.000000e+00> : vector<8x16x16xf32>
    %95 = tpu.matmul %92, %94, %cst_28 {dimension_numbers = #tpu.dot_dimension_numbers<[2], [2], [1], [1], [0, 0, 0, 1, 1, 1], [0], [0]>} : vector<8x16x32xbf16>, vector<8x16x32xbf16>, vector<8x16x16xf32> -> vector<8x16x16xf32>
    "tpu.trace_stop"() : () -> ()
    %c3 = arith.constant 3 : index
    %c0_29 = arith.constant 0 : index
    %c0_30 = arith.constant 0 : index
    %96 = vector.load %arg4[%c3, %c0_29, %c0_30] : memref<4x16x16xf32, #tpu.memory_space<vmem>>, vector<1x16x16xf32>
    %97 = vector.shape_cast %96 : vector<1x16x16xf32> to vector<16x16xf32>
    %98 = vector.shape_cast %97 : vector<16x16xf32> to vector<1x16x16xf32>
    %99 = vector.broadcast %98 : vector<1x16x16xf32> to vector<8x16x16xf32>
    %100 = arith.addf %95, %99 : vector<8x16x16xf32>
    %cst_31 = arith.constant dense<0xFF800000> : vector<8x16xf32>
    %101 = vector.multi_reduction <maximumf>, %100, %cst_31 [2] : vector<8x16x16xf32> to vector<8x16xf32>
    %102 = vector.shape_cast %101 : vector<8x16xf32> to vector<8x16x1xf32>
    %103 = vector.broadcast %102 : vector<8x16x1xf32> to vector<8x16x16xf32>
    %104 = arith.subf %100, %103 : vector<8x16x16xf32>
    %105 = math.exp %104 : vector<8x16x16xf32>
    %cst_32 = arith.constant dense<0.000000e+00> : vector<8x16xf32>
    %106 = vector.multi_reduction <add>, %105, %cst_32 [2] : vector<8x16x16xf32> to vector<8x16xf32>
    %107 = vector.shape_cast %106 : vector<8x16xf32> to vector<8x16x1xf32>
    %108 = tpu.reciprocal %107 {approx = true} : vector<8x16x1xf32> -> vector<8x16x1xf32>
    %109 = vector.broadcast %108 : vector<8x16x1xf32> to vector<8x16x16xf32>
    %110 = arith.mulf %105, %109 : vector<8x16x16xf32>
    %111 = arith.truncf %110 : vector<8x16x16xf32> to vector<8x16x16xbf16>
    "tpu.trace_start"() <{level = 10 : i32, message = "bqk,bkd->bqd"}> : () -> ()
    %cst_33 = arith.constant dense<0.000000e+00> : vector<8x16x32xf32>
    %112 = tpu.matmul %111, %90, %cst_33 {dimension_numbers = #tpu.dot_dimension_numbers<[2], [1], [1], [2], [0, 0, 0, 1, 1, 2], [0], [0]>} : vector<8x16x16xbf16>, vector<8x16x32xbf16>, vector<8x16x32xf32> -> vector<8x16x32xf32>
    "tpu.trace_stop"() : () -> ()
    %113 = vector.shape_cast %112 : vector<8x16x32xf32> to vector<128x32xf32>
    %114 = arith.truncf %113 : vector<128x32xf32> to vector<128x32xbf16>
    %c0_34 = arith.constant 0 : index
    %c96 = arith.constant 96 : index
    %115 = vector.load %arg8[%c0_34, %c96] : memref<128x128xbf16, #tpu.memory_space<vmem>>, vector<128x32xbf16>
    tpu.vector_store %arg8[%c0_34, %c96], %114 {strides = array<i32>} : memref<128x128xbf16, #tpu.memory_space<vmem>>, vector<128x32xbf16>,
    %c0_35 = arith.constant 0 : index
    %c0_36 = arith.constant 0 : index
    %116 = vector.load %arg8[%c0_35, %c0_36] : memref<128x128xbf16, #tpu.memory_space<vmem>>, vector<128x128xbf16>
    %c0_37 = arith.constant 0 : index
    %c0_38 = arith.constant 0 : index
    %117 = vector.load %arg5[%c0_37, %c0_38] : memref<128x128xbf16, #tpu.memory_space<vmem>>, vector<128x128xbf16>
    %cst_39 = arith.constant dense<0.000000e+00> : vector<128x128xf32>
    %118 = tpu.matmul %116, %117, %cst_39 {dimension_numbers = #tpu.dot_dimension_numbers<[1], [0], [0], [1], [0, 0, 1, 1], [], []>} : vector<128x128xbf16>, vector<128x128xbf16>, vector<128x128xf32> -> vector<128x128xf32>
    %c0_40 = arith.constant 0 : index
    %c0_41 = arith.constant 0 : index
    %119 = vector.load %arg6[%c0_40, %c0_41] : memref<1x128xf32, #tpu.memory_space<vmem>>, vector<1x128xf32>
    %120 = vector.broadcast %119 : vector<1x128xf32> to vector<128x128xf32>
    %121 = arith.addf %118, %120 : vector<128x128xf32>
    %c0_42 = arith.constant 0 : index
    %c0_43 = arith.constant 0 : index
    %122 = vector.load %arg7[%c0_42, %c0_43] : memref<128x128xf32, #tpu.memory_space<vmem>>, vector<128x128xf32>
    tpu.vector_store %arg7[%c0_42, %c0_43], %121 {strides = array<i32>} : memref<128x128xf32, #tpu.memory_space<vmem>>, vector<128x128xf32>,
    return
  }
  func.func @transform_0(%arg0: i32) -> (i32, i32) {
    %c0_i32 = arith.constant 0 : i32
    %c0_i32_0 = arith.constant 0 : i32
    return %arg0, %c0_i32 : i32, i32
  }
  func.func @transform_1(%arg0: i32) -> (i32, i32) {
    %c0_i32 = arith.constant 0 : i32
    %c0_i32_0 = arith.constant 0 : i32
    %c0_i32_1 = arith.constant 0 : i32
    return %c0_i32, %c0_i32_0 : i32, i32
  }
  func.func @transform_2(%arg0: i32) -> (i32, i32) {
    %c0_i32 = arith.constant 0 : i32
    %c0_i32_0 = arith.constant 0 : i32
    %c0_i32_1 = arith.constant 0 : i32
    return %c0_i32, %c0_i32_0 : i32, i32
  }
  func.func @transform_3(%arg0: i32) -> (i32, i32, i32) {
    %c0_i32 = arith.constant 0 : i32
    %c0_i32_0 = arith.constant 0 : i32
    %c0_i32_1 = arith.constant 0 : i32
    %c0_i32_2 = arith.constant 0 : i32
    return %c0_i32, %c0_i32_0, %c0_i32_1 : i32, i32, i32
  }
  func.func @transform_4(%arg0: i32) -> (i32, i32) {
    %c0_i32 = arith.constant 0 : i32
    %c0_i32_0 = arith.constant 0 : i32
    %c0_i32_1 = arith.constant 0 : i32
    return %c0_i32, %c0_i32_0 : i32, i32
  }
  func.func @transform_5(%arg0: i32) -> (i32, i32) {
    %c0_i32 = arith.constant 0 : i32
    %c0_i32_0 = arith.constant 0 : i32
    %c0_i32_1 = arith.constant 0 : i32
    return %c0_i32, %c0_i32_0 : i32, i32
  }
  func.func @transform_6(%arg0: i32) -> (i32, i32) {
    %c0_i32 = arith.constant 0 : i32
    %c0_i32_0 = arith.constant 0 : i32
    return %arg0, %c0_i32 : i32, i32
  }
}

</mosaic_0001>

<llo_original>
// kernel: tpu_custom_call.1
$region0: #{tpu_custom_call.1}
  #allocation0 [shape = 'u32[]', space=smem, size = 0x4, offset = 0x4, fixed_abs, tag = 'smem constant byte address 0x4 - core index']
  #allocation1 [shape = 'u32[144,128]{1,0:T(1,128)}', space=vmem, size = 0x12000, scoped, tag = 'internal scratch']
  #allocation2 [shape = 'bf16[128,128]{1,0:T(8,128)(2,1)}', space=vmem, size = 0x8000, scoped, tag = 'scratch operand']
  %s0 = inlined_call_operand.hbm [shape: f32[256,128], index: 0, kind: input, shape index: {}]
  %s1 = inlined_call_operand.hbm [shape: bf16[128,384], index: 1, kind: input, shape index: {}]
  %s2 = inlined_call_operand.vmem [shape: f32[1,384], index: 2, kind: input, shape index: {}]
  %s3 = inlined_call_operand.hbm [shape: f32[4,16,16], index: 3, kind: input, shape index: {}]
  %s4 = inlined_call_operand.hbm [shape: bf16[128,128], index: 4, kind: input, shape index: {}]
  %s5 = inlined_call_operand.vmem [shape: f32[1,128], index: 5, kind: input, shape index: {}]
  %s6 = inlined_call_operand.hbm [shape: f32[256,128], index: 6, kind: output, shape index: {}]
  %s7 = sld [smem:[#allocation0]]
  $region73: #{tpu_custom_call.1} parent=0
    _
  %s9 = ssub.s32 1, %s7
  %s10 = scalar_select 0, %s9, %s7
  $region1: #{tpu_custom_call.1} parent=0
    #allocation3 [shape = 'u8[131072]{0}', space=vmem, size = 0x20000, scoped, tag = 'input window, operand 0']
    #allocation4 [shape = 's32[2]{0}', space=sflag, size = 0x8, scoped, tag = 'scoped memory for tpu_custom_call.1']
    #allocation5 [shape = 's32[2]{0}', space=sflag, size = 0x8, scoped, tag = 'scoped memory for tpu_custom_call.1']
    #allocation6 [shape = 'u8[98304]{0}', space=vmem, size = 0x18000, scoped, tag = 'input window, operand 1, single buffered']
    #allocation7 [shape = 's32[1]{0}', space=sflag, size = 0x4, scoped, tag = 'scoped memory for tpu_custom_call.1']
    #allocation8 [shape = 'u8[32768]{0}', space=vmem, size = 0x8000, scoped, tag = 'input window, operand 3, single buffered']
    #allocation9 [shape = 'u8[32768]{0}', space=vmem, size = 0x8000, scoped, tag = 'input window, operand 4, single buffered']
    #allocation10 [shape = 's32[1]{0}', space=sflag, size = 0x4, scoped, tag = 'scoped memory for tpu_custom_call.1']
    #allocation11 [shape = 'u8[131072]{0}', space=vmem, size = 0x20000, scoped, tag = 'output window, operand 0']
    %11 = vsyncpa [#allocation4], 0
    %s12 = scalar_lea.sflag [#allocation4], 1
    %13 = vsyncpa %s12, 0
    %14 = vsyncpa [#allocation7], 0
    %15 = vsyncpa [#allocation10], 0
    %16 = vsyncpa [#allocation5], 0
    %s17 = scalar_lea.sflag [#allocation5], 1
    %18 = vsyncpa %s17, 0
    loop: start=0, step=1, limit=4
    $region2: #{tpu_custom_call.1} parent=1 // loop_pre_header
      _
    $region3: #{tpu_custom_call.1} parent=1 // loop_header
      %s20 = sphi 0, %s24
      %p21 = scmp.ge.s32.totalorder %s20, 4
      %s30 = sphi 0, %s32
      %s33 = sphi 0, %s30
      %s34 = sphi 0, %s33
      %s50 = sphi 0, %s34
      %s54 = sphi 0, %s54
      %s56 = sphi 0, %s54
      %s57 = sphi 0, %s56
      %s71 = sphi 0, %s57
      %s75 = sphi 0, %s75
      %s77 = sphi 0, %s75
      %s78 = sphi 0, %s77
      %s92 = sphi 0, %s78
      %s96 = sphi 0, %s96
      %s98 = sphi 0, %s96
      %s99 = sphi 0, %s98
      %s113 = sphi 0, %s99
      %s117 = sphi 0, %s117
      %s119 = sphi 0, %s117
      %s120 = sphi 0, %s119
      %s134 = sphi 0, %s120
      %s138 = sphi 0, %s138
      %s140 = sphi 0, %s138
      %s141 = sphi 0, %s140
      %s155 = sphi 0, %s141
      %s161 = sphi 0, %s163
      %s164 = sphi 0, %s161
      %s165 = sphi 0, %s164
      %s181 = sphi 0, %s165
    $region4: #{tpu_custom_call.1} parent=1 // loop_header_branch
      %23 = sbr.rel (%p21) target = $region8
    $region5: #{tpu_custom_call.1} parent=1 // loop_body
      %s25 = ssub.s32 %s20, 1
      %s26 = ssub.s32 %s20, 2
      %s27 = sadd.s32 %s20, 1
      %s28 = ssub.s32 %s20, %s27
      %p29 = scmp.eq.s32.totalorder %s28, 0
      %s31 = sadd.s32 %s30, 1
      %s32 = scalar_select %p29, %s30, %s31
      %p35 = pneg %p29
      %p36 = scmp.eq.s32.totalorder %s20, 1
      %p37 = por %p35, %p36
      %p38 = scmp.ne.s32.totalorder %s30, %s33
      %p39 = scmp.eq.s32.totalorder %s20, 0
      %p40 = por %p38, %p39
      %p41 = scmp.ne.s32.totalorder %s30, %s33
      %p42 = scmp.eq.s32.totalorder %s25, 1
      %p43 = por %p41, %p42
      %p44 = scmp.ne.s32.totalorder %s33, %s34
      %p45 = scmp.eq.s32.totalorder %s25, 0
      %p46 = por %p44, %p45
      %p47 = scmp.ne.s32.totalorder %s33, %s34
      %p48 = scmp.eq.s32.totalorder %s26, 1
      %p49 = por %p47, %p48
      %p51 = scmp.ne.s32.totalorder %s34, %s50
      %p52 = scmp.eq.s32.totalorder %s26, 0
      %p53 = por %p51, %p52
      %s55 = sadd.s32 %s54, 1
      %p58 = scmp.eq.s32.totalorder %s20, 1
      %p59 = scmp.ne.s32.totalorder %s54, %s56
      %p60 = scmp.eq.s32.totalorder %s20, 0
      %p61 = por %p59, %p60
      %p62 = scmp.ne.s32.totalorder %s54, %s56
      %p63 = scmp.eq.s32.totalorder %s25, 1
      %p64 = por %p62, %p63
      %p65 = scmp.ne.s32.totalorder %s56, %s57
      %p66 = scmp.eq.s32.totalorder %s25, 0
      %p67 = por %p65, %p66
      %p68 = scmp.ne.s32.totalorder %s56, %s57
      %p69 = scmp.eq.s32.totalorder %s26, 1
      %p70 = por %p68, %p69
      %p72 = scmp.ne.s32.totalorder %s57, %s71
      %p73 = scmp.eq.s32.totalorder %s26, 0
      %p74 = por %p72, %p73
      %s76 = sadd.s32 %s75, 1
      %p79 = scmp.eq.s32.totalorder %s20, 1
      %p80 = scmp.ne.s32.totalorder %s75, %s77
      %p81 = scmp.eq.s32.totalorder %s20, 0
      %p82 = por %p80, %p81
      %p83 = scmp.ne.s32.totalorder %s75, %s77
      %p84 = scmp.eq.s32.totalorder %s25, 1
      %p85 = por %p83, %p84
      %p86 = scmp.ne.s32.totalorder %s77, %s78
      %p87 = scmp.eq.s32.totalorder %s25, 0
      %p88 = por %p86, %p87
      %p89 = scmp.ne.s32.totalorder %s77, %s78
      %p90 = scmp.eq.s32.totalorder %s26, 1
      %p91 = por %p89, %p90
      %p93 = scmp.ne.s32.totalorder %s78, %s92
      %p94 = scmp.eq.s32.totalorder %s26, 0
      %p95 = por %p93, %p94
      %s97 = sadd.s32 %s96, 1
      %p100 = scmp.eq.s32.totalorder %s20, 1
      %p101 = scmp.ne.s32.totalorder %s96, %s98
      %p102 = scmp.eq.s32.totalorder %s20, 0
      %p103 = por %p101, %p102
      %p104 = scmp.ne.s32.totalorder %s96, %s98
      %p105 = scmp.eq.s32.totalorder %s25, 1
      %p106 = por %p104, %p105
      %p107 = scmp.ne.s32.totalorder %s98, %s99
      %p108 = scmp.eq.s32.totalorder %s25, 0
      %p109 = por %p107, %p108
      %p110 = scmp.ne.s32.totalorder %s98, %s99
      %p111 = scmp.eq.s32.totalorder %s26, 1
      %p112 = por %p110, %p111
      %p114 = scmp.ne.s32.totalorder %s99, %s113
      %p115 = scmp.eq.s32.totalorder %s26, 0
      %p116 = por %p114, %p115
      %s118 = sadd.s32 %s117, 1
      %p121 = scmp.eq.s32.totalorder %s20, 1
      %p122 = scmp.ne.s32.totalorder %s117, %s119
      %p123 = scmp.eq.s32.totalorder %s20, 0
      %p124 = por %p122, %p123
      %p125 = scmp.ne.s32.totalorder %s117, %s119
      %p126 = scmp.eq.s32.totalorder %s25, 1
      %p127 = por %p125, %p126
      %p128 = scmp.ne.s32.totalorder %s119, %s120
      %p129 = scmp.eq.s32.totalorder %s25, 0
      %p130 = por %p128, %p129
      %p131 = scmp.ne.s32.totalorder %s119, %s120
      %p132 = scmp.eq.s32.totalorder %s26, 1
      %p133 = por %p131, %p132
      %p135 = scmp.ne.s32.totalorder %s120, %s134
      %p136 = scmp.eq.s32.totalorder %s26, 0
      %p137 = por %p135, %p136
      %s139 = sadd.s32 %s138, 1
      %p142 = scmp.eq.s32.totalorder %s20, 1
      %p143 = scmp.ne.s32.totalorder %s138, %s140
      %p144 = scmp.eq.s32.totalorder %s20, 0
      %p145 = por %p143, %p144
      %p146 = scmp.ne.s32.totalorder %s138, %s140
      %p147 = scmp.eq.s32.totalorder %s25, 1
      %p148 = por %p146, %p147
      %p149 = scmp.ne.s32.totalorder %s140, %s141
      %p150 = scmp.eq.s32.totalorder %s25, 0
      %p151 = por %p149, %p150
      %p152 = scmp.ne.s32.totalorder %s140, %s141
      %p153 = scmp.eq.s32.totalorder %s26, 1
      %p154 = por %p152, %p153
      %p156 = scmp.ne.s32.totalorder %s141, %s155
      %p157 = scmp.eq.s32.totalorder %s26, 0
      %p158 = por %p156, %p157
      %s159 = ssub.s32 %s20, %s27
      %p160 = scmp.eq.s32.totalorder %s159, 0
      %s162 = sadd.s32 %s161, 1
      %s163 = scalar_select %p160, %s161, %s162
      %p166 = pneg %p160
      %p167 = scmp.eq.s32.totalorder %s20, 1
      %p168 = por %p166, %p167
      %p169 = scmp.ne.s32.totalorder %s161, %s164
      %p170 = scmp.eq.s32.totalorder %s20, 0
      %p171 = por %p169, %p170
      %p172 = scmp.ne.s32.totalorder %s161, %s164
      %p173 = scmp.eq.s32.totalorder %s25, 1
      %p174 = por %p172, %p173
      %p175 = scmp.ne.s32.totalorder %s164, %s165
      %p176 = scmp.eq.s32.totalorder %s25, 0
      %p177 = por %p175, %p176
      %p178 = scmp.ne.s32.totalorder %s164, %s165
      %p179 = scmp.eq.s32.totalorder %s26, 1
      %p180 = por %p178, %p179
      %p182 = scmp.ne.s32.totalorder %s165, %s181
      %p183 = scmp.eq.s32.totalorder %s26, 0
      %p184 = por %p182, %p183
      %p185 = scmp.le.s32.totalorder 1, %s20
      %p186 = scmp.lt.s32.totalorder %s20, 3
      %p187 = pnand %p185, %p186
      %p188 = pneg %p187
      // Predicated region
      $region9: #{tpu_custom_call.1} parent=5 // pred_check
        _
      $region10: #{tpu_custom_call.1} parent=5 // pred_check_branch
        %190 = sbr.rel (%p187) target = $region12
      $region11: #{tpu_custom_call.1} parent=5 // pred_region
        %s191 = ssub.s32 %s20, 1
        // Predicated region
        $region13: #{tpu_custom_call.1} parent=11 // pred_check
          %p192 = pneg %p67
        $region14: #{tpu_custom_call.1} parent=11 // pred_check_branch
          %194 = sbr.rel (%p192) target = $region16
        $region15: #{tpu_custom_call.1} parent=11 // pred_region
          %s196 = ssub.s32 3072, 3072
          %197 = vsyncadd [#allocation7], %s196
          %s198 = sshll.u32 [#allocation6], 4
          %s199 = int_to_ptr.vmem [resolvable:$true] %s198
          %204 = dma.hbm_to_vmem [thread:$0]  %s1, 3072, %s199, [#allocation7], 192, 192, 12
        $region16: #{tpu_custom_call.1} parent=11 // pred_fallthru
          _
        // Predicated region
        $region17: #{tpu_custom_call.1} parent=11 // pred_check
          %p205 = pneg %p88
        $region18: #{tpu_custom_call.1} parent=11 // pred_check_branch
          %207 = sbr.rel (%p205) target = $region20
        $region19: #{tpu_custom_call.1} parent=11 // pred_region
          _
        $region20: #{tpu_custom_call.1} parent=11 // pred_fallthru
          _
        // Predicated region
        $region21: #{tpu_custom_call.1} parent=11 // pred_check
          %p208 = pneg %p109
        $region22: #{tpu_custom_call.1} parent=11 // pred_check_branch
          %210 = sbr.rel (%p208) target = $region24
        $region23: #{tpu_custom_call.1} parent=11 // pred_region
          %s212 = ssub.s32 1024, 1024
          %213 = vsyncadd [#allocation7], %s212
          %s214 = sshll.u32 [#allocation8], 4
          %s215 = int_to_ptr.vmem [resolvable:$true] %s214
          %220 = dma.hbm_to_vmem [thread:$0]  %s3, 1024, %s215, [#allocation7], 128, 128, 8
        $region24: #{tpu_custom_call.1} parent=11 // pred_fallthru
          _
        // Predicated region
        $region25: #{tpu_custom_call.1} parent=11 // pred_check
          %p221 = pneg %p130
        $region26: #{tpu_custom_call.1} parent=11 // pred_check_branch
          %223 = sbr.rel (%p221) target = $region28
        $region27: #{tpu_custom_call.1} parent=11 // pred_region
          %s225 = ssub.s32 1024, 1024
          %226 = vsyncadd [#allocation10], %s225
          %s227 = sshll.u32 [#allocation9], 4
          %s228 = int_to_ptr.vmem [resolvable:$true] %s227
          %233 = dma.hbm_to_vmem [thread:$0]  %s4, 1024, %s228, [#allocation10], 64, 64, 4
        $region28: #{tpu_custom_call.1} parent=11 // pred_fallthru
          _
        // Predicated region
        $region29: #{tpu_custom_call.1} parent=11 // pred_check
          %p234 = pneg %p151
        $region30: #{tpu_custom_call.1} parent=11 // pred_check_branch
          %236 = sbr.rel (%p234) target = $region32
        $region31: #{tpu_custom_call.1} parent=11 // pred_region
          _
        $region32: #{tpu_custom_call.1} parent=11 // pred_fallthru
          _
      $region12: #{tpu_custom_call.1} parent=5 // pred_fallthru
        _
      %p237 = scmp.lt.s32.totalorder %s20, 2
      // Predicated region
      $region33: #{tpu_custom_call.1} parent=5 // pred_check
        %p238 = pneg %p237
      $region34: #{tpu_custom_call.1} parent=5 // pred_check_branch
        %240 = sbr.rel (%p238) target = $region36
      $region35: #{tpu_custom_call.1} parent=5 // pred_region
        // Predicated region
        $region37: #{tpu_custom_call.1} parent=35 // pred_check
          %p241 = pneg %p40
        $region38: #{tpu_custom_call.1} parent=35 // pred_check_branch
          %243 = sbr.rel (%p241) target = $region40
        $region39: #{tpu_custom_call.1} parent=35 // pred_region
          %s244 = sand.u32 %s30, 1
          %s245 = scalar_lea.sflag [#allocation4], %s244
          %s246 = sand.u32 %s30, 1
          %s247 = smul.addr %s246, 128
          %s248 = scalar_lea.vmem [#allocation3], %s247
          %s249 = smul.u32 16, %s20
          %s251 = ssub.s32 2048, 2048
          %252 = vsyncadd %s245, %s251
          %s253 = smul.addr %s249, 128
          %s254 = scalar_lea.hbm %s0, %s253
          %s255 = sshll.u32 %s248, 4
          %s256 = int_to_ptr.vmem [resolvable:$true] %s255
          %261 = dma.hbm_to_vmem [thread:$0]  %s254, 2048, %s256, %s245, 128, 128, 8
        $region40: #{tpu_custom_call.1} parent=35 // pred_fallthru
          _
      $region36: #{tpu_custom_call.1} parent=5 // pred_fallthru
        _
      %p262 = scmp.le.s32.totalorder 1, %s20
      %p263 = scmp.lt.s32.totalorder %s20, 3
      %p264 = pnand %p262, %p263
      %p265 = pneg %p264
      // Predicated region
      $region41: #{tpu_custom_call.1} parent=5 // pred_check
        _
      $region42: #{tpu_custom_call.1} parent=5 // pred_check_branch
        %267 = sbr.rel (%p264) target = $region44
      $region43: #{tpu_custom_call.1} parent=5 // pred_region
        %s268 = ssub.s32 %s20, 1
        %s269 = sand.u32 %s33, 1
        %s270 = scalar_lea.sflag [#allocation4], %s269
        %s271 = sand.u32 %s33, 1
        %s272 = smul.addr %s271, 128
        %s273 = scalar_lea.vmem [#allocation3], %s272
        // Predicated region
        $region45: #{tpu_custom_call.1} parent=43 // pred_check
          %p274 = pneg %p46
        $region46: #{tpu_custom_call.1} parent=43 // pred_check_branch
          %276 = sbr.rel (%p274) target = $region48
        $region47: #{tpu_custom_call.1} parent=43 // pred_region
          %277 = dma.done %s270, 2048
        $region48: #{tpu_custom_call.1} parent=43 // pred_fallthru
          _
        // Predicated region
        $region49: #{tpu_custom_call.1} parent=43 // pred_check
          %p278 = pneg %p67
        $region50: #{tpu_custom_call.1} parent=43 // pred_check_branch
          %280 = sbr.rel (%p278) target = $region52
        $region51: #{tpu_custom_call.1} parent=43 // pred_region
          %281 = dma.done [#allocation7], 3072
        $region52: #{tpu_custom_call.1} parent=43 // pred_fallthru
          _
        // Predicated region
        $region53: #{tpu_custom_call.1} parent=43 // pred_check
          %p282 = pneg %p109
        $region54: #{tpu_custom_call.1} parent=43 // pred_check_branch
          %284 = sbr.rel (%p282) target = $region56
        $region55: #{tpu_custom_call.1} parent=43 // pred_region
          %285 = dma.done [#allocation7], 1024
        $region56: #{tpu_custom_call.1} parent=43 // pred_fallthru
          _
        // Predicated region
        $region57: #{tpu_custom_call.1} parent=43 // pred_check
          %p286 = pneg %p130
        $region58: #{tpu_custom_call.1} parent=43 // pred_check_branch
          %288 = sbr.rel (%p286) target = $region60
        $region59: #{tpu_custom_call.1} parent=43 // pred_region
          %289 = dma.done [#allocation10], 1024
        $region60: #{tpu_custom_call.1} parent=43 // pred_fallthru
          _
        %s290 = sand.u32 %s33, 1
        %s291 = scalar_lea.sflag [#allocation4], %s290
        %s292 = sand.u32 %s33, 1
        %s293 = smul.addr %s292, 128
        %s294 = scalar_lea.vmem [#allocation3], %s293
        %p295 = pneg %p46
        %p296 = pneg %p43
        %p297 = pneg %p67
        %p298 = pneg %p64
        %p299 = pneg %p88
        %p300 = pneg %p85
        %p301 = pneg %p109
        %p302 = pneg %p106
        %p303 = pneg %p130
        %p304 = pneg %p127
        %p305 = pneg %p151
        %p306 = pneg %p148
        %p307 = pneg %p177
        %p308 = pneg %p174
        %s309 = sand.u32 %s164, 1
        %s310 = scalar_lea.sflag [#allocation5], %s309
        %s311 = sand.u32 %s164, 1
        %s312 = smul.addr %s311, 128
        %s313 = scalar_lea.vmem [#allocation11], %s312
        %s314 = smul.u32 16, %s25
        %s315 = smul.u32 16, %s25
        %v317 = vld [vmem:[%s273] sm:$0xff]
        %v318 = vld [vmem:[%s273 + $0x8] sm:$0xff]
        %v319 = vld [vmem:[%s273 + $0x10] sm:$0xff]
        %v320 = vld [vmem:[%s273 + $0x18] sm:$0xff]
        %v321 = vld [vmem:[%s273 + $0x20] sm:$0xff]
        %v322 = vld [vmem:[%s273 + $0x28] sm:$0xff]
        %v323 = vld [vmem:[%s273 + $0x30] sm:$0xff]
        %v324 = vld [vmem:[%s273 + $0x38] sm:$0xff]
        %v325 = vld [vmem:[%s273 + $0x40] sm:$0xff]
        %v326 = vld [vmem:[%s273 + $0x48] sm:$0xff]
        %v327 = vld [vmem:[%s273 + $0x50] sm:$0xff]
        %v328 = vld [vmem:[%s273 + $0x58] sm:$0xff]
        %v329 = vld [vmem:[%s273 + $0x60] sm:$0xff]
        %v330 = vld [vmem:[%s273 + $0x68] sm:$0xff]
        %v331 = vld [vmem:[%s273 + $0x70] sm:$0xff]
        %v332 = vld [vmem:[%s273 + $0x78] sm:$0xff]
        %v333 = vpack.c.bf16 %v318, %v317
        %v334 = vpack.c.bf16 %v320, %v319
        %v335 = vpack.c.bf16 %v322, %v321
        %v336 = vpack.c.bf16 %v324, %v323
        %v337 = vpack.c.bf16 %v326, %v325
        %v338 = vpack.c.bf16 %v328, %v327
        %v339 = vpack.c.bf16 %v330, %v329
        %v340 = vpack.c.bf16 %v332, %v331
        %v341 = vld [vmem:[#allocation6] sm:$0xff]
        %v342 = vld [vmem:[#allocation6 + $0x8] sm:$0xf]
        %v343 = vld [vmem:[#allocation6 + $0xc] sm:$0xff]
        %v344 = vld [vmem:[#allocation6 + $0x14] sm:$0xf]
        %v345 = vld [vmem:[#allocation6 + $0x18] sm:$0xff]
        %v346 = vld [vmem:[#allocation6 + $0x20] sm:$0xf]
        %v347 = vld [vmem:[#allocation6 + $0x24] sm:$0xff]
        %v348 = vld [vmem:[#allocation6 + $0x2c] sm:$0xf]
        %v349 = vld [vmem:[#allocation6 + $0x30] sm:$0xff]
        %v350 = vld [vmem:[#allocation6 + $0x38] sm:$0xf]
        %v351 = vld [vmem:[#allocation6 + $0x3c] sm:$0xff]
        %v352 = vld [vmem:[#allocation6 + $0x44] sm:$0xf]
        %v353 = vld [vmem:[#allocation6 + $0x48] sm:$0xff]
        %v354 = vld [vmem:[#allocation6 + $0x50] sm:$0xf]
        %v355 = vld [vmem:[#allocation6 + $0x54] sm:$0xff]
        %v356 = vld [vmem:[#allocation6 + $0x5c] sm:$0xf]
        %v357 = vld [vmem:[#allocation6 + $0x60] sm:$0xff]
        %v358 = vld [vmem:[#allocation6 + $0x68] sm:$0xf]
        %v359 = vld [vmem:[#allocation6 + $0x6c] sm:$0xff]
        %v360 = vld [vmem:[#allocation6 + $0x74] sm:$0xf]
        %v361 = vld [vmem:[#allocation6 + $0x78] sm:$0xff]
        %v362 = vld [vmem:[#allocation6 + $0x80] sm:$0xf]
        %v363 = vld [vmem:[#allocation6 + $0x84] sm:$0xff]
        %v364 = vld [vmem:[#allocation6 + $0x8c] sm:$0xf]
        %v365 = vld [vmem:[#allocation6 + $0x90] sm:$0xff]
        %v366 = vld [vmem:[#allocation6 + $0x98] sm:$0xf]
        %v367 = vld [vmem:[#allocation6 + $0x9c] sm:$0xff]
        %v368 = vld [vmem:[#allocation6 + $0xa4] sm:$0xf]
        %v369 = vld [vmem:[#allocation6 + $0xa8] sm:$0xff]
        %v370 = vld [vmem:[#allocation6 + $0xb0] sm:$0xf]
        %v371 = vld [vmem:[#allocation6 + $0xb4] sm:$0xff]
        %v372 = vld [vmem:[#allocation6 + $0xbc] sm:$0xf]
        %v373 = vld [vmem:[%s2] sm:$0x7]
        %v375 = vlaneseq
        %v376 = vshrl.u32 %v375, 7
        %v377 = vsub.s32 0, %v376
        %v378 = vrot.slane %v373, %v377
        %v379 = vlaneseq
        %v380 = vshrl.u32 %v379, 7
        %v381 = vsub.s32 1, %v380
        %v382 = vrot.slane %v373, %v381
        %v383 = vlaneseq
        %v384 = vshrl.u32 %v383, 7
        %v385 = vsub.s32 2, %v384
        %v386 = vrot.slane %v373, %v385
        %v422 = vunpack.c.l.b16 %v341
        %v423 = vunpack.c.h.b16 %v341
        %v424 = vunpack.c.l.b16 %v342
        %v425 = vunpack.c.l.b16 %v343
        %v426 = vunpack.c.h.b16 %v343
        %v427 = vunpack.c.l.b16 %v344
        %v428 = vunpack.c.l.b16 %v345
        %v429 = vunpack.c.h.b16 %v345
        %v430 = vunpack.c.l.b16 %v346
        %v431 = vunpack.c.l.b16 %v347
        %v432 = vunpack.c.h.b16 %v347
        %v433 = vunpack.c.l.b16 %v348
        %v434 = vunpack.c.l.b16 %v349
        %v435 = vunpack.c.h.b16 %v349
        %v436 = vunpack.c.l.b16 %v350
        %v437 = vunpack.c.l.b16 %v351
        %v438 = vunpack.c.h.b16 %v351
        %v439 = vunpack.c.l.b16 %v352
        %v440 = vunpack.c.l.b16 %v353
        %v441 = vunpack.c.h.b16 %v353
        %v442 = vunpack.c.l.b16 %v354
        %v443 = vunpack.c.l.b16 %v355
        %v444 = vunpack.c.h.b16 %v355
        %v445 = vunpack.c.l.b16 %v356
        %v446 = vunpack.c.l.b16 %v357
        %v447 = vunpack.c.h.b16 %v357
        %v448 = vunpack.c.l.b16 %v358
        %v449 = vunpack.c.l.b16 %v359
        %v450 = vunpack.c.h.b16 %v359
        %v451 = vunpack.c.l.b16 %v360
        %v452 = vunpack.c.l.b16 %v361
        %v453 = vunpack.c.h.b16 %v361
        %v454 = vunpack.c.l.b16 %v362
        %v455 = vunpack.c.l.b16 %v363
        %v456 = vunpack.c.h.b16 %v363
        %v457 = vunpack.c.l.b16 %v364
        %v458 = vunpack.c.l.b16 %v365
        %v459 = vunpack.c.h.b16 %v365
        %v460 = vunpack.c.l.b16 %v366
        %v461 = vunpack.c.l.b16 %v367
        %v462 = vunpack.c.h.b16 %v367
        %v463 = vunpack.c.l.b16 %v368
        %v464 = vunpack.c.l.b16 %v369
        %v465 = vunpack.c.h.b16 %v369
        %v466 = vunpack.c.l.b16 %v370
        %v467 = vunpack.c.l.b16 %v371
        %v468 = vunpack.c.h.b16 %v371
        %v469 = vunpack.c.l.b16 %v372
        %v470 = vpack.c.b16 %v425, %v422
        %v471 = vpack.c.b16 %v426, %v423
        %v472 = vpack.c.b16 %v427, %v424
        %v473 = vpack.c.b16 %v431, %v428
        %v474 = vpack.c.b16 %v432, %v429
        %v475 = vpack.c.b16 %v433, %v430
        %v476 = vpack.c.b16 %v437, %v434
        %v477 = vpack.c.b16 %v438, %v435
        %v478 = vpack.c.b16 %v439, %v436
        %v479 = vpack.c.b16 %v443, %v440
        %v480 = vpack.c.b16 %v444, %v441
        %v481 = vpack.c.b16 %v445, %v442
        %v482 = vpack.c.b16 %v449, %v446
        %v483 = vpack.c.b16 %v450, %v447
        %v484 = vpack.c.b16 %v451, %v448
        %v485 = vpack.c.b16 %v455, %v452
        %v486 = vpack.c.b16 %v456, %v453
        %v487 = vpack.c.b16 %v457, %v454
        %v488 = vpack.c.b16 %v461, %v458
        %v489 = vpack.c.b16 %v462, %v459
        %v490 = vpack.c.b16 %v463, %v460
        %v491 = vpack.c.b16 %v467, %v464
        %v492 = vpack.c.b16 %v468, %v465
        %v493 = vpack.c.b16 %v469, %v466
        %518 = vmatprep.subr.bf16.mxu0 %v492
        %519 = vmatpush1.bf16.msra.mxu0 %v491
        %520 = vmatprep.subr.bf16.mxu0 %v489
        %521 = vmatpush1.bf16.msra.mxu0 %v488
        %522 = vmatprep.subr.bf16.mxu0 %v486
        %523 = vmatpush1.bf16.msra.mxu0 %v485
        %524 = vmatprep.subr.bf16.mxu0 %v483
        %525 = vmatpush1.bf16.msra.mxu0 %v482
        %526 = vmatprep.subr.bf16.mxu0 %v480
        %527 = vmatpush1.bf16.msra.mxu0 %v479
        %528 = vmatprep.subr.bf16.mxu0 %v477
        %529 = vmatpush1.bf16.msra.mxu0 %v476
        %530 = vmatprep.subr.bf16.mxu0 %v474
        %531 = vmatpush1.bf16.msra.mxu0 %v473
        %532 = vmatprep.subr.bf16.mxu0 %v471
        %533 = vmatpush1.bf16.msra.mxu0 %v470
        %534 = vmatprep.subr.bf16.mxu0 0
        %535 = vmatpush2.bf16.msra.mxu0 0
        %536 = vmatprep.subr.bf16.mxu0 0
        %537 = vmatpush2.bf16.msra.mxu0 0
        %538 = vmatprep.subr.bf16.mxu0 0
        %539 = vmatpush2.bf16.msra.mxu0 0
        %540 = vmatprep.subr.bf16.mxu0 0
        %541 = vmatpush2.bf16.msra.mxu0 0
        %542 = vmatprep.subr.bf16.mxu0 0
        %543 = vmatpush2.bf16.msra.mxu0 0
        %544 = vmatprep.subr.bf16.mxu0 0
        %545 = vmatpush2.bf16.msra.mxu0 0
        %546 = vmatprep.subr.bf16.mxu0 0
        %547 = vmatpush2.bf16.msra.mxu0 0
        %548 = vmatprep.subr.bf16.mxu0 0
        %549 = vmatpush2.bf16.msra.mxu0 0
        %550 = vmatprep.mubr.bf16.mxu0 0
        %551 = vmatmul.mubr.bf16.gmra.mxu0 %v333
        %v552 = vpop.f32.mrf.mxu0
        %v553 = vadd.f32 %v378, %v552
        %v554 = vpop.f32.mrf.mxu0
        %v555 = vadd.f32 %v382, %v554
        %v556 = vpop.f32.mrf.mxu0
        %v557 = vadd.f32 %v378, %v556
        %v558 = vpop.f32.mrf.mxu0
        %v559 = vadd.f32 %v382, %v558
        %560 = vmatprep.mubr.bf16.mxu0 0
        %561 = vmatmul.mubr.bf16.gmra.mxu0 %v334
        %v562 = vpop.f32.mrf.mxu0
        %v563 = vadd.f32 %v378, %v562
        %v564 = vpop.f32.mrf.mxu0
        %v565 = vadd.f32 %v382, %v564
        %v566 = vpop.f32.mrf.mxu0
        %v567 = vadd.f32 %v378, %v566
        %v568 = vpop.f32.mrf.mxu0
        %v569 = vadd.f32 %v382, %v568
        %570 = vmatprep.mubr.bf16.mxu0 0
        %571 = vmatmul.mubr.bf16.gmra.mxu0 %v335
        %v572 = vpop.f32.mrf.mxu0
        %v573 = vadd.f32 %v378, %v572
        %v574 = vpop.f32.mrf.mxu0
        %v575 = vadd.f32 %v382, %v574
        %v576 = vpop.f32.mrf.mxu0
        %v577 = vadd.f32 %v378, %v576
        %v578 = vpop.f32.mrf.mxu0
        %v579 = vadd.f32 %v382, %v578
        %580 = vmatprep.mubr.bf16.mxu0 0
        %581 = vmatmul.mubr.bf16.gmra.mxu0 %v336
        %v582 = vpop.f32.mrf.mxu0
        %v583 = vadd.f32 %v378, %v582
        %v584 = vpop.f32.mrf.mxu0
        %v585 = vadd.f32 %v382, %v584
        %v586 = vpop.f32.mrf.mxu0
        %v587 = vadd.f32 %v378, %v586
        %v588 = vpop.f32.mrf.mxu0
        %v589 = vadd.f32 %v382, %v588
        %590 = vmatprep.mubr.bf16.mxu0 0
        %591 = vmatmul.mubr.bf16.gmra.mxu0 %v337
        %v592 = vpop.f32.mrf.mxu0
        %v593 = vadd.f32 %v378, %v592
        %v594 = vpop.f32.mrf.mxu0
        %v595 = vadd.f32 %v382, %v594
        %v596 = vpop.f32.mrf.mxu0
        %v597 = vadd.f32 %v378, %v596
        %v598 = vpop.f32.mrf.mxu0
        %v599 = vadd.f32 %v382, %v598
        %600 = vmatprep.mubr.bf16.mxu0 0
        %601 = vmatmul.mubr.bf16.gmra.mxu0 %v338
        %v602 = vpop.f32.mrf.mxu0
        %v603 = vadd.f32 %v378, %v602
        %v604 = vpop.f32.mrf.mxu0
        %v605 = vadd.f32 %v382, %v604
        %v606 = vpop.f32.mrf.mxu0
        %v607 = vadd.f32 %v378, %v606
        %v608 = vpop.f32.mrf.mxu0
        %v609 = vadd.f32 %v382, %v608
        %610 = vmatprep.mubr.bf16.mxu0 0
        %611 = vmatmul.mubr.bf16.gmra.mxu0 %v339
        %v612 = vpop.f32.mrf.mxu0
        %v613 = vadd.f32 %v378, %v612
        %v614 = vpop.f32.mrf.mxu0
        %v615 = vadd.f32 %v382, %v614
        %v616 = vpop.f32.mrf.mxu0
        %v617 = vadd.f32 %v378, %v616
        %v618 = vpop.f32.mrf.mxu0
        %v619 = vadd.f32 %v382, %v618
        %620 = vmatprep.mubr.bf16.mxu0 0
        %621 = vmatmul.mubr.bf16.gmra.mxu0 %v340
        %v622 = vpop.f32.mrf.mxu0
        %v623 = vadd.f32 %v378, %v622
        %v624 = vpop.f32.mrf.mxu0
        %v625 = vadd.f32 %v382, %v624
        %v626 = vpop.f32.mrf.mxu0
        %v627 = vadd.f32 %v378, %v626
        %v628 = vpop.f32.mrf.mxu0
        %v629 = vadd.f32 %v382, %v628
        %630 = vdwg.mxu0
        %631 = vmatprep.subr.bf16.mxu0 0
        %632 = vmatpush1.bf16.msra.mxu0 %v493
        %633 = vmatprep.subr.bf16.mxu0 0
        %634 = vmatpush1.bf16.msra.mxu0 %v490
        %635 = vmatprep.subr.bf16.mxu0 0
        %636 = vmatpush1.bf16.msra.mxu0 %v487
        %637 = vmatprep.subr.bf16.mxu0 0
        %638 = vmatpush1.bf16.msra.mxu0 %v484
        %639 = vmatprep.subr.bf16.mxu0 0
        %640 = vmatpush1.bf16.msra.mxu0 %v481
        %641 = vmatprep.subr.bf16.mxu0 0
        %642 = vmatpush1.bf16.msra.mxu0 %v478
        %643 = vmatprep.subr.bf16.mxu0 0
        %644 = vmatpush1.bf16.msra.mxu0 %v475
        %645 = vmatprep.subr.bf16.mxu0 0
        %646 = vmatpush1.bf16.msra.mxu0 %v472
        %647 = vmatprep.subr.bf16.mxu0 0
        %648 = vmatpush2.bf16.msra.mxu0 0
        %649 = vmatprep.subr.bf16.mxu0 0
        %650 = vmatpush2.bf16.msra.mxu0 0
        %651 = vmatprep.subr.bf16.mxu0 0
        %652 = vmatpush2.bf16.msra.mxu0 0
        %653 = vmatprep.subr.bf16.mxu0 0
        %654 = vmatpush2.bf16.msra.mxu0 0
        %655 = vmatprep.subr.bf16.mxu0 0
        %656 = vmatpush2.bf16.msra.mxu0 0
        %657 = vmatprep.subr.bf16.mxu0 0
        %658 = vmatpush2.bf16.msra.mxu0 0
        %659 = vmatprep.subr.bf16.mxu0 0
        %660 = vmatpush2.bf16.msra.mxu0 0
        %661 = vmatprep.subr.bf16.mxu0 0
        %662 = vmatpush2.bf16.msra.mxu0 0
        %663 = vmatprep.mubr.bf16.mxu0 0
        %664 = vmatmul.mubr.bf16.gmra.mxu0 %v333
        %v665 = vpop.f32.mrf.mxu0
        %v666 = vadd.f32 %v386, %v665
        %v667 = vpop.f32.mrf.mxu0
        %v668 = vpop.f32.mrf.mxu0
        %v669 = vadd.f32 %v386, %v668
        %v670 = vpop.f32.mrf.mxu0
        %671 = vmatprep.mubr.bf16.mxu0 0
        %672 = vmatmul.mubr.bf16.gmra.mxu0 %v334
        %v673 = vpop.f32.mrf.mxu0
        %v674 = vadd.f32 %v386, %v673
        %v675 = vpop.f32.mrf.mxu0
        %v676 = vpop.f32.mrf.mxu0
        %v677 = vadd.f32 %v386, %v676
        %v678 = vpop.f32.mrf.mxu0
        %679 = vmatprep.mubr.bf16.mxu0 0
        %680 = vmatmul.mubr.bf16.gmra.mxu0 %v335
        %v681 = vpop.f32.mrf.mxu0
        %v682 = vadd.f32 %v386, %v681
        %v683 = vpop.f32.mrf.mxu0
        %v684 = vpop.f32.mrf.mxu0
        %v685 = vadd.f32 %v386, %v684
        %v686 = vpop.f32.mrf.mxu0
        %687 = vmatprep.mubr.bf16.mxu0 0
        %688 = vmatmul.mubr.bf16.gmra.mxu0 %v336
        %v689 = vpop.f32.mrf.mxu0
        %v690 = vadd.f32 %v386, %v689
        %v691 = vpop.f32.mrf.mxu0
        %v692 = vpop.f32.mrf.mxu0
        %v693 = vadd.f32 %v386, %v692
        %v694 = vpop.f32.mrf.mxu0
        %695 = vmatprep.mubr.bf16.mxu0 0
        %696 = vmatmul.mubr.bf16.gmra.mxu0 %v337
        %v697 = vpop.f32.mrf.mxu0
        %v698 = vadd.f32 %v386, %v697
        %v699 = vpop.f32.mrf.mxu0
        %v700 = vpop.f32.mrf.mxu0
        %v701 = vadd.f32 %v386, %v700
        %v702 = vpop.f32.mrf.mxu0
        %703 = vmatprep.mubr.bf16.mxu0 0
        %704 = vmatmul.mubr.bf16.gmra.mxu0 %v338
        %v705 = vpop.f32.mrf.mxu0
        %v706 = vadd.f32 %v386, %v705
        %v707 = vpop.f32.mrf.mxu0
        %v708 = vpop.f32.mrf.mxu0
        %v709 = vadd.f32 %v386, %v708
        %v710 = vpop.f32.mrf.mxu0
        %711 = vmatprep.mubr.bf16.mxu0 0
        %712 = vmatmul.mubr.bf16.gmra.mxu0 %v339
        %v713 = vpop.f32.mrf.mxu0
        %v714 = vadd.f32 %v386, %v713
        %v715 = vpop.f32.mrf.mxu0
        %v716 = vpop.f32.mrf.mxu0
        %v717 = vadd.f32 %v386, %v716
        %v718 = vpop.f32.mrf.mxu0
        %719 = vmatprep.mubr.bf16.mxu0 0
        %720 = vmatmul.mubr.bf16.gmra.mxu0 %v340
        %v721 = vpop.f32.mrf.mxu0
        %v722 = vadd.f32 %v386, %v721
        %v723 = vpop.f32.mrf.mxu0
        %v724 = vpop.f32.mrf.mxu0
        %v725 = vadd.f32 %v386, %v724
        %v726 = vpop.f32.mrf.mxu0
        %727 = vdwg.mxu0
        %v728 = vpack.c.bf16 %v557, %v553
        %v729 = vpack.c.bf16 %v559, %v555
        %v730 = vpack.c.bf16 %v669, %v666
        %v731 = vpack.c.bf16 %v567, %v563
        %v732 = vpack.c.bf16 %v569, %v565
        %v733 = vpack.c.bf16 %v677, %v674
        %v734 = vpack.c.bf16 %v577, %v573
        %v735 = vpack.c.bf16 %v579, %v575
        %v736 = vpack.c.bf16 %v685, %v682
        %v737 = vpack.c.bf16 %v587, %v583
        %v738 = vpack.c.bf16 %v589, %v585
        %v739 = vpack.c.bf16 %v693, %v690
        %v740 = vpack.c.bf16 %v597, %v593
        %v741 = vpack.c.bf16 %v599, %v595
        %v742 = vpack.c.bf16 %v701, %v698
        %v743 = vpack.c.bf16 %v607, %v603
        %v744 = vpack.c.bf16 %v609, %v605
        %v745 = vpack.c.bf16 %v709, %v706
        %v746 = vpack.c.bf16 %v617, %v613
        %v747 = vpack.c.bf16 %v619, %v615
        %v748 = vpack.c.bf16 %v717, %v714
        %v749 = vpack.c.bf16 %v627, %v623
        %v750 = vpack.c.bf16 %v629, %v625
        %v751 = vpack.c.bf16 %v725, %v722
        %v752 = vld [vmem:[#allocation8] sm:$0xff]
        %v753 = vld [vmem:[#allocation8 + $0x8] sm:$0xff]
        %vm754 = vcmask 261120
        %v756 = vsel %vm754, %v729, 0
        %v759 = vsel %vm754, %v730, 0
        %761 = vmatprep.subr.bf16.mxu0 0
        %762 = vmatpush1.bf16.xpose.msra.mxu0 0
        %763 = vmatprep.subr.bf16.mxu0 0
        %764 = vmatpush1.bf16.xpose.msra.mxu0 0
        %765 = vmatprep.subr.bf16.mxu0 0
        %766 = vmatpush1.bf16.xpose.msra.mxu0 0
        %767 = vmatprep.subr.bf16.mxu0 0
        %768 = vmatpush1.bf16.xpose.msra.mxu0 0
        %769 = vmatprep.subr.bf16.mxu0 0
        %770 = vmatpush1.bf16.xpose.msra.mxu0 0
        %771 = vmatprep.subr.bf16.mxu0 0
        %772 = vmatpush1.bf16.xpose.msra.mxu0 0
        %773 = vmatprep.subr.bf16.mxu0 0
        %774 = vmatpush1.bf16.xpose.msra.mxu0 0
        %775 = vmatprep.subr.bf16.mxu0 0
        %776 = vmatpush1.bf16.xpose.msra.mxu0 %v759
        %777 = vmatprep.subr.bf16.mxu0 0
        %778 = vmatpush2.bf16.xpose.msra.mxu0 0
        %779 = vmatprep.subr.bf16.mxu0 0
        %780 = vmatpush2.bf16.xpose.msra.mxu0 0
        %781 = vmatprep.subr.bf16.mxu0 0
        %782 = vmatpush2.bf16.xpose.msra.mxu0 0
        %783 = vmatprep.subr.bf16.mxu0 0
        %784 = vmatpush2.bf16.xpose.msra.mxu0 0
        %785 = vmatprep.subr.bf16.mxu0 0
        %786 = vmatpush2.bf16.xpose.msra.mxu0 0
        %787 = vmatprep.subr.bf16.mxu0 0
        %788 = vmatpush2.bf16.xpose.msra.mxu0 0
        %789 = vmatprep.subr.bf16.mxu0 0
        %790 = vmatpush2.bf16.xpose.msra.mxu0 0
        %791 = vmatprep.subr.bf16.mxu0 0
        %792 = vmatpush2.bf16.xpose.msra.mxu0 0
        %793 = vmatprep.mubr.bf16.mxu0 0
        %794 = vmatmul.mubr.bf16.gmra.mxu0 %v756
        %v795 = vpop.f32.mrf.mxu0
        %v796 = vadd.f32 %v752, %v795
        %v797 = vpop.f32.mrf.mxu0
        %v798 = vpop.f32.mrf.mxu0
        %v799 = vadd.f32 %v753, %v798
        %v800 = vpop.f32.mrf.mxu0
        %801 = vdwg.mxu0
        %v803 = vsel %vm754, %v732, 0
        %v806 = vsel %vm754, %v733, 0
        %808 = vmatprep.subr.bf16.mxu0 0
        %809 = vmatpush1.bf16.xpose.msra.mxu0 0
        %810 = vmatprep.subr.bf16.mxu0 0
        %811 = vmatpush1.bf16.xpose.msra.mxu0 0
        %812 = vmatprep.subr.bf16.mxu0 0
        %813 = vmatpush1.bf16.xpose.msra.mxu0 0
        %814 = vmatprep.subr.bf16.mxu0 0
        %815 = vmatpush1.bf16.xpose.msra.mxu0 0
        %816 = vmatprep.subr.bf16.mxu0 0
        %817 = vmatpush1.bf16.xpose.msra.mxu0 0
        %818 = vmatprep.subr.bf16.mxu0 0
        %819 = vmatpush1.bf16.xpose.msra.mxu0 0
        %820 = vmatprep.subr.bf16.mxu0 0
        %821 = vmatpush1.bf16.xpose.msra.mxu0 0
        %822 = vmatprep.subr.bf16.mxu0 0
        %823 = vmatpush1.bf16.xpose.msra.mxu0 %v806
        %824 = vmatprep.subr.bf16.mxu0 0
        %825 = vmatpush2.bf16.xpose.msra.mxu0 0
        %826 = vmatprep.subr.bf16.mxu0 0
        %827 = vmatpush2.bf16.xpose.msra.mxu0 0
        %828 = vmatprep.subr.bf16.mxu0 0
        %829 = vmatpush2.bf16.xpose.msra.mxu0 0
        %830 = vmatprep.subr.bf16.mxu0 0
        %831 = vmatpush2.bf16.xpose.msra.mxu0 0
        %832 = vmatprep.subr.bf16.mxu0 0
        %833 = vmatpush2.bf16.xpose.msra.mxu0 0
        %834 = vmatprep.subr.bf16.mxu0 0
        %835 = vmatpush2.bf16.xpose.msra.mxu0 0
        %836 = vmatprep.subr.bf16.mxu0 0
        %837 = vmatpush2.bf16.xpose.msra.mxu0 0
        %838 = vmatprep.subr.bf16.mxu0 0
        %839 = vmatpush2.bf16.xpose.msra.mxu0 0
        %840 = vmatprep.mubr.bf16.mxu0 0
        %841 = vmatmul.mubr.bf16.gmra.mxu0 %v803
        %v842 = vpop.f32.mrf.mxu0
        %v843 = vadd.f32 %v752, %v842
        %v844 = vpop.f32.mrf.mxu0
        %v845 = vpop.f32.mrf.mxu0
        %v846 = vadd.f32 %v753, %v845
        %v847 = vpop.f32.mrf.mxu0
        %848 = vdwg.mxu0
        %v850 = vsel %vm754, %v735, 0
        %v853 = vsel %vm754, %v736, 0
        %855 = vmatprep.subr.bf16.mxu0 0
        %856 = vmatpush1.bf16.xpose.msra.mxu0 0
        %857 = vmatprep.subr.bf16.mxu0 0
        %858 = vmatpush1.bf16.xpose.msra.mxu0 0
        %859 = vmatprep.subr.bf16.mxu0 0
        %860 = vmatpush1.bf16.xpose.msra.mxu0 0
        %861 = vmatprep.subr.bf16.mxu0 0
        %862 = vmatpush1.bf16.xpose.msra.mxu0 0
        %863 = vmatprep.subr.bf16.mxu0 0
        %864 = vmatpush1.bf16.xpose.msra.mxu0 0
        %865 = vmatprep.subr.bf16.mxu0 0
        %866 = vmatpush1.bf16.xpose.msra.mxu0 0
        %867 = vmatprep.subr.bf16.mxu0 0
        %868 = vmatpush1.bf16.xpose.msra.mxu0 0
        %869 = vmatprep.subr.bf16.mxu0 0
        %870 = vmatpush1.bf16.xpose.msra.mxu0 %v853
        %871 = vmatprep.subr.bf16.mxu0 0
        %872 = vmatpush2.bf16.xpose.msra.mxu0 0
        %873 = vmatprep.subr.bf16.mxu0 0
        %874 = vmatpush2.bf16.xpose.msra.mxu0 0
        %875 = vmatprep.subr.bf16.mxu0 0
        %876 = vmatpush2.bf16.xpose.msra.mxu0 0
        %877 = vmatprep.subr.bf16.mxu0 0
        %878 = vmatpush2.bf16.xpose.msra.mxu0 0
        %879 = vmatprep.subr.bf16.mxu0 0
        %880 = vmatpush2.bf16.xpose.msra.mxu0 0
        %881 = vmatprep.subr.bf16.mxu0 0
        %882 = vmatpush2.bf16.xpose.msra.mxu0 0
        %883 = vmatprep.subr.bf16.mxu0 0
        %884 = vmatpush2.bf16.xpose.msra.mxu0 0
        %885 = vmatprep.subr.bf16.mxu0 0
        %886 = vmatpush2.bf16.xpose.msra.mxu0 0
        %887 = vmatprep.mubr.bf16.mxu0 0
        %888 = vmatmul.mubr.bf16.gmra.mxu0 %v850
        %v889 = vpop.f32.mrf.mxu0
        %v890 = vadd.f32 %v752, %v889
        %v891 = vpop.f32.mrf.mxu0
        %v892 = vpop.f32.mrf.mxu0
        %v893 = vadd.f32 %v753, %v892
        %v894 = vpop.f32.mrf.mxu0
        %895 = vdwg.mxu0
        %v897 = vsel %vm754, %v738, 0
        %v900 = vsel %vm754, %v739, 0
        %902 = vmatprep.subr.bf16.mxu0 0
        %903 = vmatpush1.bf16.xpose.msra.mxu0 0
        %904 = vmatprep.subr.bf16.mxu0 0
        %905 = vmatpush1.bf16.xpose.msra.mxu0 0
        %906 = vmatprep.subr.bf16.mxu0 0
        %907 = vmatpush1.bf16.xpose.msra.mxu0 0
        %908 = vmatprep.subr.bf16.mxu0 0
        %909 = vmatpush1.bf16.xpose.msra.mxu0 0
        %910 = vmatprep.subr.bf16.mxu0 0
        %911 = vmatpush1.bf16.xpose.msra.mxu0 0
        %912 = vmatprep.subr.bf16.mxu0 0
        %913 = vmatpush1.bf16.xpose.msra.mxu0 0
        %914 = vmatprep.subr.bf16.mxu0 0
        %915 = vmatpush1.bf16.xpose.msra.mxu0 0
        %916 = vmatprep.subr.bf16.mxu0 0
        %917 = vmatpush1.bf16.xpose.msra.mxu0 %v900
        %918 = vmatprep.subr.bf16.mxu0 0
        %919 = vmatpush2.bf16.xpose.msra.mxu0 0
        %920 = vmatprep.subr.bf16.mxu0 0
        %921 = vmatpush2.bf16.xpose.msra.mxu0 0
        %922 = vmatprep.subr.bf16.mxu0 0
        %923 = vmatpush2.bf16.xpose.msra.mxu0 0
        %924 = vmatprep.subr.bf16.mxu0 0
        %925 = vmatpush2.bf16.xpose.msra.mxu0 0
        %926 = vmatprep.subr.bf16.mxu0 0
        %927 = vmatpush2.bf16.xpose.msra.mxu0 0
        %928 = vmatprep.subr.bf16.mxu0 0
        %929 = vmatpush2.bf16.xpose.msra.mxu0 0
        %930 = vmatprep.subr.bf16.mxu0 0
        %931 = vmatpush2.bf16.xpose.msra.mxu0 0
        %932 = vmatprep.subr.bf16.mxu0 0
        %933 = vmatpush2.bf16.xpose.msra.mxu0 0
        %934 = vmatprep.mubr.bf16.mxu0 0
        %935 = vmatmul.mubr.bf16.gmra.mxu0 %v897
        %v936 = vpop.f32.mrf.mxu0
        %v937 = vadd.f32 %v752, %v936
        %v938 = vpop.f32.mrf.mxu0
        %v939 = vpop.f32.mrf.mxu0
        %v940 = vadd.f32 %v753, %v939
        %v941 = vpop.f32.mrf.mxu0
        %942 = vdwg.mxu0
        %v944 = vsel %vm754, %v741, 0
        %v947 = vsel %vm754, %v742, 0
        %949 = vmatprep.subr.bf16.mxu0 0
        %950 = vmatpush1.bf16.xpose.msra.mxu0 0
        %951 = vmatprep.subr.bf16.mxu0 0
        %952 = vmatpush1.bf16.xpose.msra.mxu0 0
        %953 = vmatprep.subr.bf16.mxu0 0
        %954 = vmatpush1.bf16.xpose.msra.mxu0 0
        %955 = vmatprep.subr.bf16.mxu0 0
        %956 = vmatpush1.bf16.xpose.msra.mxu0 0
        %957 = vmatprep.subr.bf16.mxu0 0
        %958 = vmatpush1.bf16.xpose.msra.mxu0 0
        %959 = vmatprep.subr.bf16.mxu0 0
        %960 = vmatpush1.bf16.xpose.msra.mxu0 0
        %961 = vmatprep.subr.bf16.mxu0 0
        %962 = vmatpush1.bf16.xpose.msra.mxu0 0
        %963 = vmatprep.subr.bf16.mxu0 0
        %964 = vmatpush1.bf16.xpose.msra.mxu0 %v947
        %965 = vmatprep.subr.bf16.mxu0 0
        %966 = vmatpush2.bf16.xpose.msra.mxu0 0
        %967 = vmatprep.subr.bf16.mxu0 0
        %968 = vmatpush2.bf16.xpose.msra.mxu0 0
        %969 = vmatprep.subr.bf16.mxu0 0
        %970 = vmatpush2.bf16.xpose.msra.mxu0 0
        %971 = vmatprep.subr.bf16.mxu0 0
        %972 = vmatpush2.bf16.xpose.msra.mxu0 0
        %973 = vmatprep.subr.bf16.mxu0 0
        %974 = vmatpush2.bf16.xpose.msra.mxu0 0
        %975 = vmatprep.subr.bf16.mxu0 0
        %976 = vmatpush2.bf16.xpose.msra.mxu0 0
        %977 = vmatprep.subr.bf16.mxu0 0
        %978 = vmatpush2.bf16.xpose.msra.mxu0 0
        %979 = vmatprep.subr.bf16.mxu0 0
        %980 = vmatpush2.bf16.xpose.msra.mxu0 0
        %981 = vmatprep.mubr.bf16.mxu0 0
        %982 = vmatmul.mubr.bf16.gmra.mxu0 %v944
        %v983 = vpop.f32.mrf.mxu0
        %v984 = vadd.f32 %v752, %v983
        %v985 = vpop.f32.mrf.mxu0
        %v986 = vpop.f32.mrf.mxu0
        %v987 = vadd.f32 %v753, %v986
        %v988 = vpop.f32.mrf.mxu0
        %989 = vdwg.mxu0
        %v991 = vsel %vm754, %v744, 0
        %v994 = vsel %vm754, %v745, 0
        %996 = vmatprep.subr.bf16.mxu0 0
        %997 = vmatpush1.bf16.xpose.msra.mxu0 0
        %998 = vmatprep.subr.bf16.mxu0 0
        %999 = vmatpush1.bf16.xpose.msra.mxu0 0
        %1000 = vmatprep.subr.bf16.mxu0 0
        %1001 = vmatpush1.bf16.xpose.msra.mxu0 0
        %1002 = vmatprep.subr.bf16.mxu0 0
        %1003 = vmatpush1.bf16.xpose.msra.mxu0 0
        %1004 = vmatprep.subr.bf16.mxu0 0
        %1005 = vmatpush1.bf16.xpose.msra.mxu0 0
        %1006 = vmatprep.subr.bf16.mxu0 0
        %1007 = vmatpush1.bf16.xpose.msra.mxu0 0
        %1008 = vmatprep.subr.bf16.mxu0 0
        %1009 = vmatpush1.bf16.xpose.msra.mxu0 0
        %1010 = vmatprep.subr.bf16.mxu0 0
        %1011 = vmatpush1.bf16.xpose.msra.mxu0 %v994
        %1012 = vmatprep.subr.bf16.mxu0 0
        %1013 = vmatpush2.bf16.xpose.msra.mxu0 0
        %1014 = vmatprep.subr.bf16.mxu0 0
        %1015 = vmatpush2.bf16.xpose.msra.mxu0 0
        %1016 = vmatprep.subr.bf16.mxu0 0
        %1017 = vmatpush2.bf16.xpose.msra.mxu0 0
        %1018 = vmatprep.subr.bf16.mxu0 0
        %1019 = vmatpush2.bf16.xpose.msra.mxu0 0
        %1020 = vmatprep.subr.bf16.mxu0 0
        %1021 = vmatpush2.bf16.xpose.msra.mxu0 0
        %1022 = vmatprep.subr.bf16.mxu0 0
        %1023 = vmatpush2.bf16.xpose.msra.mxu0 0
        %1024 = vmatprep.subr.bf16.mxu0 0
        %1025 = vmatpush2.bf16.xpose.msra.mxu0 0
        %1026 = vmatprep.subr.bf16.mxu0 0
        %1027 = vmatpush2.bf16.xpose.msra.mxu0 0
        %1028 = vmatprep.mubr.bf16.mxu0 0
        %1029 = vmatmul.mubr.bf16.gmra.mxu0 %v991
        %v1030 = vpop.f32.mrf.mxu0
        %v1031 = vadd.f32 %v752, %v1030
        %v1032 = vpop.f32.mrf.mxu0
        %v1033 = vpop.f32.mrf.mxu0
        %v1034 = vadd.f32 %v753, %v1033
        %v1035 = vpop.f32.mrf.mxu0
        %1036 = vdwg.mxu0
        %v1038 = vsel %vm754, %v747, 0
        %v1041 = vsel %vm754, %v748, 0
        %1043 = vmatprep.subr.bf16.mxu0 0
        %1044 = vmatpush1.bf16.xpose.msra.mxu0 0
        %1045 = vmatprep.subr.bf16.mxu0 0
        %1046 = vmatpush1.bf16.xpose.msra.mxu0 0
        %1047 = vmatprep.subr.bf16.mxu0 0
        %1048 = vmatpush1.bf16.xpose.msra.mxu0 0
        %1049 = vmatprep.subr.bf16.mxu0 0
        %1050 = vmatpush1.bf16.xpose.msra.mxu0 0
        %1051 = vmatprep.subr.bf16.mxu0 0
        %1052 = vmatpush1.bf16.xpose.msra.mxu0 0
        %1053 = vmatprep.subr.bf16.mxu0 0
        %1054 = vmatpush1.bf16.xpose.msra.mxu0 0
        %1055 = vmatprep.subr.bf16.mxu0 0
        %1056 = vmatpush1.bf16.xpose.msra.mxu0 0
        %1057 = vmatprep.subr.bf16.mxu0 0
        %1058 = vmatpush1.bf16.xpose.msra.mxu0 %v1041
        %1059 = vmatprep.subr.bf16.mxu0 0
        %1060 = vmatpush2.bf16.xpose.msra.mxu0 0
        %1061 = vmatprep.subr.bf16.mxu0 0
        %1062 = vmatpush2.bf16.xpose.msra.mxu0 0
        %1063 = vmatprep.subr.bf16.mxu0 0
        %1064 = vmatpush2.bf16.xpose.msra.mxu0 0
        %1065 = vmatprep.subr.bf16.mxu0 0
        %1066 = vmatpush2.bf16.xpose.msra.mxu0 0
        %1067 = vmatprep.subr.bf16.mxu0 0
        %1068 = vmatpush2.bf16.xpose.msra.mxu0 0
        %1069 = vmatprep.subr.bf16.mxu0 0
        %1070 = vmatpush2.bf16.xpose.msra.mxu0 0
        %1071 = vmatprep.subr.bf16.mxu0 0
        %1072 = vmatpush2.bf16.xpose.msra.mxu0 0
        %1073 = vmatprep.subr.bf16.mxu0 0
        %1074 = vmatpush2.bf16.xpose.msra.mxu0 0
        %1075 = vmatprep.mubr.bf16.mxu0 0
        %1076 = vmatmul.mubr.bf16.gmra.mxu0 %v1038
        %v1077 = vpop.f32.mrf.mxu0
        %v1078 = vadd.f32 %v752, %v1077
        %v1079 = vpop.f32.mrf.mxu0
        %v1080 = vpop.f32.mrf.mxu0
        %v1081 = vadd.f32 %v753, %v1080
        %v1082 = vpop.f32.mrf.mxu0
        %1083 = vdwg.mxu0
        %v1085 = vsel %vm754, %v750, 0
        %v1088 = vsel %vm754, %v751, 0
        %1090 = vmatprep.subr.bf16.mxu0 0
        %1091 = vmatpush1.bf16.xpose.msra.mxu0 0
        %1092 = vmatprep.subr.bf16.mxu0 0
        %1093 = vmatpush1.bf16.xpose.msra.mxu0 0
        %1094 = vmatprep.subr.bf16.mxu0 0
        %1095 = vmatpush1.bf16.xpose.msra.mxu0 0
        %1096 = vmatprep.subr.bf16.mxu0 0
        %1097 = vmatpush1.bf16.xpose.msra.mxu0 0
        %1098 = vmatprep.subr.bf16.mxu0 0
        %1099 = vmatpush1.bf16.xpose.msra.mxu0 0
        %1100 = vmatprep.subr.bf16.mxu0 0
        %1101 = vmatpush1.bf16.xpose.msra.mxu0 0
        %1102 = vmatprep.subr.bf16.mxu0 0
        %1103 = vmatpush1.bf16.xpose.msra.mxu0 0
        %1104 = vmatprep.subr.bf16.mxu0 0
        %1105 = vmatpush1.bf16.xpose.msra.mxu0 %v1088
        %1106 = vmatprep.subr.bf16.mxu0 0
        %1107 = vmatpush2.bf16.xpose.msra.mxu0 0
        %1108 = vmatprep.subr.bf16.mxu0 0
        %1109 = vmatpush2.bf16.xpose.msra.mxu0 0
        %1110 = vmatprep.subr.bf16.mxu0 0
        %1111 = vmatpush2.bf16.xpose.msra.mxu0 0
        %1112 = vmatprep.subr.bf16.mxu0 0
        %1113 = vmatpush2.bf16.xpose.msra.mxu0 0
        %1114 = vmatprep.subr.bf16.mxu0 0
        %1115 = vmatpush2.bf16.xpose.msra.mxu0 0
        %1116 = vmatprep.subr.bf16.mxu0 0
        %1117 = vmatpush2.bf16.xpose.msra.mxu0 0
        %1118 = vmatprep.subr.bf16.mxu0 0
        %1119 = vmatpush2.bf16.xpose.msra.mxu0 0
        %1120 = vmatprep.subr.bf16.mxu0 0
        %1121 = vmatpush2.bf16.xpose.msra.mxu0 0
        %1122 = vmatprep.mubr.bf16.mxu0 0
        %1123 = vmatmul.mubr.bf16.gmra.mxu0 %v1085
        %v1124 = vpop.f32.mrf.mxu0
        %v1125 = vadd.f32 %v752, %v1124
        %v1126 = vpop.f32.mrf.mxu0
        %v1127 = vpop.f32.mrf.mxu0
        %v1128 = vadd.f32 %v753, %v1127
        %v1129 = vpop.f32.mrf.mxu0
        %1130 = vdwg.mxu0
        %vm1131 = vcmask 130048
        %v1132 = vsel %vm1131, %v796, -inf
        %1133 = vmax.xlane.f32.xlu0 %v1132
        %v1134 = vpop.xlane.xlu0 %1133
        %v1135 = vsel %vm1131, %v799, -inf
        %1136 = vmax.xlane.f32.xlu0 %v1135
        %v1137 = vpop.xlane.xlu0 %1136
        %v1138 = vsel %vm1131, %v843, -inf
        %1139 = vmax.xlane.f32.xlu0 %v1138
        %v1140 = vpop.xlane.xlu0 %1139
        %v1141 = vsel %vm1131, %v846, -inf
        %1142 = vmax.xlane.f32.xlu0 %v1141
        %v1143 = vpop.xlane.xlu0 %1142
        %v1144 = vsel %vm1131, %v890, -inf
        %1145 = vmax.xlane.f32.xlu0 %v1144
        %v1146 = vpop.xlane.xlu0 %1145
        %v1147 = vsel %vm1131, %v893, -inf
        %1148 = vmax.xlane.f32.xlu0 %v1147
        %v1149 = vpop.xlane.xlu0 %1148
        %v1150 = vsel %vm1131, %v937, -inf
        %1151 = vmax.xlane.f32.xlu0 %v1150
        %v1152 = vpop.xlane.xlu0 %1151
        %v1153 = vsel %vm1131, %v940, -inf
        %1154 = vmax.xlane.f32.xlu0 %v1153
        %v1155 = vpop.xlane.xlu0 %1154
        %v1156 = vsel %vm1131, %v984, -inf
        %1157 = vmax.xlane.f32.xlu0 %v1156
        %v1158 = vpop.xlane.xlu0 %1157
        %v1159 = vsel %vm1131, %v987, -inf
        %1160 = vmax.xlane.f32.xlu0 %v1159
        %v1161 = vpop.xlane.xlu0 %1160
        %v1162 = vsel %vm1131, %v1031, -inf
        %1163 = vmax.xlane.f32.xlu0 %v1162
        %v1164 = vpop.xlane.xlu0 %1163
        %v1165 = vsel %vm1131, %v1034, -inf
        %1166 = vmax.xlane.f32.xlu0 %v1165
        %v1167 = vpop.xlane.xlu0 %1166
        %v1168 = vsel %vm1131, %v1078, -inf
        %1169 = vmax.xlane.f32.xlu0 %v1168
        %v1170 = vpop.xlane.xlu0 %1169
        %v1171 = vsel %vm1131, %v1081, -inf
        %1172 = vmax.xlane.f32.xlu0 %v1171
        %v1173 = vpop.xlane.xlu0 %1172
        %v1174 = vsel %vm1131, %v1125, -inf
        %1175 = vmax.xlane.f32.xlu0 %v1174
        %v1176 = vpop.xlane.xlu0 %1175
        %v1177 = vsel %vm1131, %v1128, -inf
        %1178 = vmax.xlane.f32.xlu0 %v1177
        %v1179 = vpop.xlane.xlu0 %1178
        %v1180 = vsub.f32 %v796, %v1134
        %v1181 = vsub.f32 %v799, %v1137
        %v1182 = vsub.f32 %v843, %v1140
        %v1183 = vsub.f32 %v846, %v1143
        %v1184 = vsub.f32 %v890, %v1146
        %v1185 = vsub.f32 %v893, %v1149
        %v1186 = vsub.f32 %v937, %v1152
        %v1187 = vsub.f32 %v940, %v1155
        %v1188 = vsub.f32 %v984, %v1158
        %v1189 = vsub.f32 %v987, %v1161
        %v1190 = vsub.f32 %v1031, %v1164
        %v1191 = vsub.f32 %v1034, %v1167
        %v1192 = vsub.f32 %v1078, %v1170
        %v1193 = vsub.f32 %v1081, %v1173
        %v1194 = vsub.f32 %v1125, %v1176
        %v1195 = vsub.f32 %v1128, %v1179
        %v1196 = vmul.f32 %v1180, 1.442695
        %v1197 = vpow.pop %v1196
        %v1198 = vmul.f32 %v1181, 1.442695
        %v1199 = vpow.pop %v1198
        %v1200 = vmul.f32 %v1182, 1.442695
        %v1201 = vpow.pop %v1200
        %v1202 = vmul.f32 %v1183, 1.442695
        %v1203 = vpow.pop %v1202
        %v1204 = vmul.f32 %v1184, 1.442695
        %v1205 = vpow.pop %v1204
        %v1206 = vmul.f32 %v1185, 1.442695
        %v1207 = vpow.pop %v1206
        %v1208 = vmul.f32 %v1186, 1.442695
        %v1209 = vpow.pop %v1208
        %v1210 = vmul.f32 %v1187, 1.442695
        %v1211 = vpow.pop %v1210
        %v1212 = vmul.f32 %v1188, 1.442695
        %v1213 = vpow.pop %v1212
        %v1214 = vmul.f32 %v1189, 1.442695
        %v1215 = vpow.pop %v1214
        %v1216 = vmul.f32 %v1190, 1.442695
        %v1217 = vpow.pop %v1216
        %v1218 = vmul.f32 %v1191, 1.442695
        %v1219 = vpow.pop %v1218
        %v1220 = vmul.f32 %v1192, 1.442695
        %v1221 = vpow.pop %v1220
        %v1222 = vmul.f32 %v1193, 1.442695
        %v1223 = vpow.pop %v1222
        %v1224 = vmul.f32 %v1194, 1.442695
        %v1225 = vpow.pop %v1224
        %v1226 = vmul.f32 %v1195, 1.442695
        %v1227 = vpow.pop %v1226
        %v1228 = vsel %vm1131, %v1197, 0.0
        %1229 = vadd.xlane.f32.xlu0 %v1228
        %v1230 = vpop.xlane.xlu0 %1229
        %v1231 = vsel %vm1131, %v1199, 0.0
        %1232 = vadd.xlane.f32.xlu0 %v1231
        %v1233 = vpop.xlane.xlu0 %1232
        %v1234 = vsel %vm1131, %v1201, 0.0
        %1235 = vadd.xlane.f32.xlu0 %v1234
        %v1236 = vpop.xlane.xlu0 %1235
        %v1237 = vsel %vm1131, %v1203, 0.0
        %1238 = vadd.xlane.f32.xlu0 %v1237
        %v1239 = vpop.xlane.xlu0 %1238
        %v1240 = vsel %vm1131, %v1205, 0.0
        %1241 = vadd.xlane.f32.xlu0 %v1240
        %v1242 = vpop.xlane.xlu0 %1241
        %v1243 = vsel %vm1131, %v1207, 0.0
        %1244 = vadd.xlane.f32.xlu0 %v1243
        %v1245 = vpop.xlane.xlu0 %1244
        %v1246 = vsel %vm1131, %v1209, 0.0
        %1247 = vadd.xlane.f32.xlu0 %v1246
        %v1248 = vpop.xlane.xlu0 %1247
        %v1249 = vsel %vm1131, %v1211, 0.0
        %1250 = vadd.xlane.f32.xlu0 %v1249
        %v1251 = vpop.xlane.xlu0 %1250
        %v1252 = vsel %vm1131, %v1213, 0.0
        %1253 = vadd.xlane.f32.xlu0 %v1252
        %v1254 = vpop.xlane.xlu0 %1253
        %v1255 = vsel %vm1131, %v1215, 0.0
        %1256 = vadd.xlane.f32.xlu0 %v1255
        %v1257 = vpop.xlane.xlu0 %1256
        %v1258 = vsel %vm1131, %v1217, 0.0
        %1259 = vadd.xlane.f32.xlu0 %v1258
        %v1260 = vpop.xlane.xlu0 %1259
        %v1261 = vsel %vm1131, %v1219, 0.0
        %1262 = vadd.xlane.f32.xlu0 %v1261
        %v1263 = vpop.xlane.xlu0 %1262
        %v1264 = vsel %vm1131, %v1221, 0.0
        %1265 = vadd.xlane.f32.xlu0 %v1264
        %v1266 = vpop.xlane.xlu0 %1265
        %v1267 = vsel %vm1131, %v1223, 0.0
        %1268 = vadd.xlane.f32.xlu0 %v1267
        %v1269 = vpop.xlane.xlu0 %1268
        %v1270 = vsel %vm1131, %v1225, 0.0
        %1271 = vadd.xlane.f32.xlu0 %v1270
        %v1272 = vpop.xlane.xlu0 %1271
        %v1273 = vsel %vm1131, %v1227, 0.0
        %1274 = vadd.xlane.f32.xlu0 %v1273
        %v1275 = vpop.xlane.xlu0 %1274
        %v1276 = vrcp.pop %v1230
        %v1277 = vrcp.pop %v1233
        %v1278 = vrcp.pop %v1236
        %v1279 = vrcp.pop %v1239
        %v1280 = vrcp.pop %v1242
        %v1281 = vrcp.pop %v1245
        %v1282 = vrcp.pop %v1248
        %v1283 = vrcp.pop %v1251
        %v1284 = vrcp.pop %v1254
        %v1285 = vrcp.pop %v1257
        %v1286 = vrcp.pop %v1260
        %v1287 = vrcp.pop %v1263
        %v1288 = vrcp.pop %v1266
        %v1289 = vrcp.pop %v1269
        %v1290 = vrcp.pop %v1272
        %v1291 = vrcp.pop %v1275
        %v1292 = vmul.f32 %v1197, %v1276
        %v1293 = vmul.f32 %v1199, %v1277
        %v1294 = vmul.f32 %v1201, %v1278
        %v1295 = vmul.f32 %v1203, %v1279
        %v1296 = vmul.f32 %v1205, %v1280
        %v1297 = vmul.f32 %v1207, %v1281
        %v1298 = vmul.f32 %v1209, %v1282
        %v1299 = vmul.f32 %v1211, %v1283
        %v1300 = vmul.f32 %v1213, %v1284
        %v1301 = vmul.f32 %v1215, %v1285
        %v1302 = vmul.f32 %v1217, %v1286
        %v1303 = vmul.f32 %v1219, %v1287
        %v1304 = vmul.f32 %v1221, %v1288
        %v1305 = vmul.f32 %v1223, %v1289
        %v1306 = vmul.f32 %v1225, %v1290
        %v1307 = vmul.f32 %v1227, %v1291
        %v1308 = vpack.c.bf16 %v1293, %v1292
        %v1309 = vpack.c.bf16 %v1295, %v1294
        %v1310 = vpack.c.bf16 %v1297, %v1296
        %v1311 = vpack.c.bf16 %v1299, %v1298
        %v1312 = vpack.c.bf16 %v1301, %v1300
        %v1313 = vpack.c.bf16 %v1303, %v1302
        %v1314 = vpack.c.bf16 %v1305, %v1304
        %v1315 = vpack.c.bf16 %v1307, %v1306
        %v1317 = vsel %vm1131, %v1308, 0
        %1319 = vmatprep.subr.bf16.mxu0 0
        %1320 = vmatpush1.bf16.msra.mxu0 0
        %1321 = vmatprep.subr.bf16.mxu0 0
        %1322 = vmatpush1.bf16.msra.mxu0 0
        %1323 = vmatprep.subr.bf16.mxu0 0
        %1324 = vmatpush1.bf16.msra.mxu0 0
        %1325 = vmatprep.subr.bf16.mxu0 0
        %1326 = vmatpush1.bf16.msra.mxu0 0
        %1327 = vmatprep.subr.bf16.mxu0 0
        %1328 = vmatpush1.bf16.msra.mxu0 0
        %1329 = vmatprep.subr.bf16.mxu0 0
        %1330 = vmatpush1.bf16.msra.mxu0 0
        %1331 = vmatprep.subr.bf16.mxu0 0
        %1332 = vmatpush1.bf16.msra.mxu0 0
        %1333 = vmatprep.subr.bf16.mxu0 0
        %1334 = vmatpush1.bf16.msra.mxu0 %v728
        %1335 = vmatprep.subr.bf16.mxu0 0
        %1336 = vmatpush2.bf16.msra.mxu0 0
        %1337 = vmatprep.subr.bf16.mxu0 0
        %1338 = vmatpush2.bf16.msra.mxu0 0
        %1339 = vmatprep.subr.bf16.mxu0 0
        %1340 = vmatpush2.bf16.msra.mxu0 0
        %1341 = vmatprep.subr.bf16.mxu0 0
        %1342 = vmatpush2.bf16.msra.mxu0 0
        %1343 = vmatprep.subr.bf16.mxu0 0
        %1344 = vmatpush2.bf16.msra.mxu0 0
        %1345 = vmatprep.subr.bf16.mxu0 0
        %1346 = vmatpush2.bf16.msra.mxu0 0
        %1347 = vmatprep.subr.bf16.mxu0 0
        %1348 = vmatpush2.bf16.msra.mxu0 0
        %1349 = vmatprep.subr.bf16.mxu0 0
        %1350 = vmatpush2.bf16.msra.mxu0 0
        %1351 = vmatprep.mubr.bf16.mxu0 0
        %1352 = vmatmul.mubr.bf16.gmra.mxu0 %v1317
        %v1353 = vpop.f32.mrf.mxu0
        %v1354 = vadd.f32 0.0, %v1353
        %v1355 = vpop.f32.mrf.mxu0
        %v1356 = vpop.f32.mrf.mxu0
        %v1357 = vadd.f32 0.0, %v1356
        %v1358 = vpop.f32.mrf.mxu0
        %1359 = vdwg.mxu0
        %v1361 = vsel %vm1131, %v1309, 0
        %1363 = vmatprep.subr.bf16.mxu0 0
        %1364 = vmatpush1.bf16.msra.mxu0 0
        %1365 = vmatprep.subr.bf16.mxu0 0
        %1366 = vmatpush1.bf16.msra.mxu0 0
        %1367 = vmatprep.subr.bf16.mxu0 0
        %1368 = vmatpush1.bf16.msra.mxu0 0
        %1369 = vmatprep.subr.bf16.mxu0 0
        %1370 = vmatpush1.bf16.msra.mxu0 0
        %1371 = vmatprep.subr.bf16.mxu0 0
        %1372 = vmatpush1.bf16.msra.mxu0 0
        %1373 = vmatprep.subr.bf16.mxu0 0
        %1374 = vmatpush1.bf16.msra.mxu0 0
        %1375 = vmatprep.subr.bf16.mxu0 0
        %1376 = vmatpush1.bf16.msra.mxu0 0
        %1377 = vmatprep.subr.bf16.mxu0 0
        %1378 = vmatpush1.bf16.msra.mxu0 %v731
        %1379 = vmatprep.subr.bf16.mxu0 0
        %1380 = vmatpush2.bf16.msra.mxu0 0
        %1381 = vmatprep.subr.bf16.mxu0 0
        %1382 = vmatpush2.bf16.msra.mxu0 0
        %1383 = vmatprep.subr.bf16.mxu0 0
        %1384 = vmatpush2.bf16.msra.mxu0 0
        %1385 = vmatprep.subr.bf16.mxu0 0
        %1386 = vmatpush2.bf16.msra.mxu0 0
        %1387 = vmatprep.subr.bf16.mxu0 0
        %1388 = vmatpush2.bf16.msra.mxu0 0
        %1389 = vmatprep.subr.bf16.mxu0 0
        %1390 = vmatpush2.bf16.msra.mxu0 0
        %1391 = vmatprep.subr.bf16.mxu0 0
        %1392 = vmatpush2.bf16.msra.mxu0 0
        %1393 = vmatprep.subr.bf16.mxu0 0
        %1394 = vmatpush2.bf16.msra.mxu0 0
        %1395 = vmatprep.mubr.bf16.mxu0 0
        %1396 = vmatmul.mubr.bf16.gmra.mxu0 %v1361
        %v1397 = vpop.f32.mrf.mxu0
        %v1398 = vadd.f32 0.0, %v1397
        %v1399 = vpop.f32.mrf.mxu0
        %v1400 = vpop.f32.mrf.mxu0
        %v1401 = vadd.f32 0.0, %v1400
        %v1402 = vpop.f32.mrf.mxu0
        %1403 = vdwg.mxu0
        %v1405 = vsel %vm1131, %v1310, 0
        %1407 = vmatprep.subr.bf16.mxu0 0
        %1408 = vmatpush1.bf16.msra.mxu0 0
        %1409 = vmatprep.subr.bf16.mxu0 0
        %1410 = vmatpush1.bf16.msra.mxu0 0
        %1411 = vmatprep.subr.bf16.mxu0 0
        %1412 = vmatpush1.bf16.msra.mxu0 0
        %1413 = vmatprep.subr.bf16.mxu0 0
        %1414 = vmatpush1.bf16.msra.mxu0 0
        %1415 = vmatprep.subr.bf16.mxu0 0
        %1416 = vmatpush1.bf16.msra.mxu0 0
        %1417 = vmatprep.subr.bf16.mxu0 0
        %1418 = vmatpush1.bf16.msra.mxu0 0
        %1419 = vmatprep.subr.bf16.mxu0 0
        %1420 = vmatpush1.bf16.msra.mxu0 0
        %1421 = vmatprep.subr.bf16.mxu0 0
        %1422 = vmatpush1.bf16.msra.mxu0 %v734
        %1423 = vmatprep.subr.bf16.mxu0 0
        %1424 = vmatpush2.bf16.msra.mxu0 0
        %1425 = vmatprep.subr.bf16.mxu0 0
        %1426 = vmatpush2.bf16.msra.mxu0 0
        %1427 = vmatprep.subr.bf16.mxu0 0
        %1428 = vmatpush2.bf16.msra.mxu0 0
        %1429 = vmatprep.subr.bf16.mxu0 0
        %1430 = vmatpush2.bf16.msra.mxu0 0
        %1431 = vmatprep.subr.bf16.mxu0 0
        %1432 = vmatpush2.bf16.msra.mxu0 0
        %1433 = vmatprep.subr.bf16.mxu0 0
        %1434 = vmatpush2.bf16.msra.mxu0 0
        %1435 = vmatprep.subr.bf16.mxu0 0
        %1436 = vmatpush2.bf16.msra.mxu0 0
        %1437 = vmatprep.subr.bf16.mxu0 0
        %1438 = vmatpush2.bf16.msra.mxu0 0
        %1439 = vmatprep.mubr.bf16.mxu0 0
        %1440 = vmatmul.mubr.bf16.gmra.mxu0 %v1405
        %v1441 = vpop.f32.mrf.mxu0
        %v1442 = vadd.f32 0.0, %v1441
        %v1443 = vpop.f32.mrf.mxu0
        %v1444 = vpop.f32.mrf.mxu0
        %v1445 = vadd.f32 0.0, %v1444
        %v1446 = vpop.f32.mrf.mxu0
        %1447 = vdwg.mxu0
        %v1449 = vsel %vm1131, %v1311, 0
        %1451 = vmatprep.subr.bf16.mxu0 0
        %1452 = vmatpush1.bf16.msra.mxu0 0
        %1453 = vmatprep.subr.bf16.mxu0 0
        %1454 = vmatpush1.bf16.msra.mxu0 0
        %1455 = vmatprep.subr.bf16.mxu0 0
        %1456 = vmatpush1.bf16.msra.mxu0 0
        %1457 = vmatprep.subr.bf16.mxu0 0
        %1458 = vmatpush1.bf16.msra.mxu0 0
        %1459 = vmatprep.subr.bf16.mxu0 0
        %1460 = vmatpush1.bf16.msra.mxu0 0
        %1461 = vmatprep.subr.bf16.mxu0 0
        %1462 = vmatpush1.bf16.msra.mxu0 0
        %1463 = vmatprep.subr.bf16.mxu0 0
        %1464 = vmatpush1.bf16.msra.mxu0 0
        %1465 = vmatprep.subr.bf16.mxu0 0
        %1466 = vmatpush1.bf16.msra.mxu0 %v737
        %1467 = vmatprep.subr.bf16.mxu0 0
        %1468 = vmatpush2.bf16.msra.mxu0 0
        %1469 = vmatprep.subr.bf16.mxu0 0
        %1470 = vmatpush2.bf16.msra.mxu0 0
        %1471 = vmatprep.subr.bf16.mxu0 0
        %1472 = vmatpush2.bf16.msra.mxu0 0
        %1473 = vmatprep.subr.bf16.mxu0 0
        %1474 = vmatpush2.bf16.msra.mxu0 0
        %1475 = vmatprep.subr.bf16.mxu0 0
        %1476 = vmatpush2.bf16.msra.mxu0 0
        %1477 = vmatprep.subr.bf16.mxu0 0
        %1478 = vmatpush2.bf16.msra.mxu0 0
        %1479 = vmatprep.subr.bf16.mxu0 0
        %1480 = vmatpush2.bf16.msra.mxu0 0
        %1481 = vmatprep.subr.bf16.mxu0 0
        %1482 = vmatpush2.bf16.msra.mxu0 0
        %1483 = vmatprep.mubr.bf16.mxu0 0
        %1484 = vmatmul.mubr.bf16.gmra.mxu0 %v1449
        %v1485 = vpop.f32.mrf.mxu0
        %v1486 = vadd.f32 0.0, %v1485
        %v1487 = vpop.f32.mrf.mxu0
        %v1488 = vpop.f32.mrf.mxu0
        %v1489 = vadd.f32 0.0, %v1488
        %v1490 = vpop.f32.mrf.mxu0
        %1491 = vdwg.mxu0
        %v1493 = vsel %vm1131, %v1312, 0
        %1495 = vmatprep.subr.bf16.mxu0 0
        %1496 = vmatpush1.bf16.msra.mxu0 0
        %1497 = vmatprep.subr.bf16.mxu0 0
        %1498 = vmatpush1.bf16.msra.mxu0 0
        %1499 = vmatprep.subr.bf16.mxu0 0
        %1500 = vmatpush1.bf16.msra.mxu0 0
        %1501 = vmatprep.subr.bf16.mxu0 0
        %1502 = vmatpush1.bf16.msra.mxu0 0
        %1503 = vmatprep.subr.bf16.mxu0 0
        %1504 = vmatpush1.bf16.msra.mxu0 0
        %1505 = vmatprep.subr.bf16.mxu0 0
        %1506 = vmatpush1.bf16.msra.mxu0 0
        %1507 = vmatprep.subr.bf16.mxu0 0
        %1508 = vmatpush1.bf16.msra.mxu0 0
        %1509 = vmatprep.subr.bf16.mxu0 0
        %1510 = vmatpush1.bf16.msra.mxu0 %v740
        %1511 = vmatprep.subr.bf16.mxu0 0
        %1512 = vmatpush2.bf16.msra.mxu0 0
        %1513 = vmatprep.subr.bf16.mxu0 0
        %1514 = vmatpush2.bf16.msra.mxu0 0
        %1515 = vmatprep.subr.bf16.mxu0 0
        %1516 = vmatpush2.bf16.msra.mxu0 0
        %1517 = vmatprep.subr.bf16.mxu0 0
        %1518 = vmatpush2.bf16.msra.mxu0 0
        %1519 = vmatprep.subr.bf16.mxu0 0
        %1520 = vmatpush2.bf16.msra.mxu0 0
        %1521 = vmatprep.subr.bf16.mxu0 0
        %1522 = vmatpush2.bf16.msra.mxu0 0
        %1523 = vmatprep.subr.bf16.mxu0 0
        %1524 = vmatpush2.bf16.msra.mxu0 0
        %1525 = vmatprep.subr.bf16.mxu0 0
        %1526 = vmatpush2.bf16.msra.mxu0 0
        %1527 = vmatprep.mubr.bf16.mxu0 0
        %1528 = vmatmul.mubr.bf16.gmra.mxu0 %v1493
        %v1529 = vpop.f32.mrf.mxu0
        %v1530 = vadd.f32 0.0, %v1529
        %v1531 = vpop.f32.mrf.mxu0
        %v1532 = vpop.f32.mrf.mxu0
        %v1533 = vadd.f32 0.0, %v1532
        %v1534 = vpop.f32.mrf.mxu0
        %1535 = vdwg.mxu0
        %v1537 = vsel %vm1131, %v1313, 0
        %1539 = vmatprep.subr.bf16.mxu0 0
        %1540 = vmatpush1.bf16.msra.mxu0 0
        %1541 = vmatprep.subr.bf16.mxu0 0
        %1542 = vmatpush1.bf16.msra.mxu0 0
        %1543 = vmatprep.subr.bf16.mxu0 0
        %1544 = vmatpush1.bf16.msra.mxu0 0
        %1545 = vmatprep.subr.bf16.mxu0 0
        %1546 = vmatpush1.bf16.msra.mxu0 0
        %1547 = vmatprep.subr.bf16.mxu0 0
        %1548 = vmatpush1.bf16.msra.mxu0 0
        %1549 = vmatprep.subr.bf16.mxu0 0
        %1550 = vmatpush1.bf16.msra.mxu0 0
        %1551 = vmatprep.subr.bf16.mxu0 0
        %1552 = vmatpush1.bf16.msra.mxu0 0
        %1553 = vmatprep.subr.bf16.mxu0 0
        %1554 = vmatpush1.bf16.msra.mxu0 %v743
        %1555 = vmatprep.subr.bf16.mxu0 0
        %1556 = vmatpush2.bf16.msra.mxu0 0
        %1557 = vmatprep.subr.bf16.mxu0 0
        %1558 = vmatpush2.bf16.msra.mxu0 0
        %1559 = vmatprep.subr.bf16.mxu0 0
        %1560 = vmatpush2.bf16.msra.mxu0 0
        %1561 = vmatprep.subr.bf16.mxu0 0
        %1562 = vmatpush2.bf16.msra.mxu0 0
        %1563 = vmatprep.subr.bf16.mxu0 0
        %1564 = vmatpush2.bf16.msra.mxu0 0
        %1565 = vmatprep.subr.bf16.mxu0 0
        %1566 = vmatpush2.bf16.msra.mxu0 0
        %1567 = vmatprep.subr.bf16.mxu0 0
        %1568 = vmatpush2.bf16.msra.mxu0 0
        %1569 = vmatprep.subr.bf16.mxu0 0
        %1570 = vmatpush2.bf16.msra.mxu0 0
        %1571 = vmatprep.mubr.bf16.mxu0 0
        %1572 = vmatmul.mubr.bf16.gmra.mxu0 %v1537
        %v1573 = vpop.f32.mrf.mxu0
        %v1574 = vadd.f32 0.0, %v1573
        %v1575 = vpop.f32.mrf.mxu0
        %v1576 = vpop.f32.mrf.mxu0
        %v1577 = vadd.f32 0.0, %v1576
        %v1578 = vpop.f32.mrf.mxu0
        %1579 = vdwg.mxu0
        %v1581 = vsel %vm1131, %v1314, 0
        %1583 = vmatprep.subr.bf16.mxu0 0
        %1584 = vmatpush1.bf16.msra.mxu0 0
        %1585 = vmatprep.subr.bf16.mxu0 0
        %1586 = vmatpush1.bf16.msra.mxu0 0
        %1587 = vmatprep.subr.bf16.mxu0 0
        %1588 = vmatpush1.bf16.msra.mxu0 0
        %1589 = vmatprep.subr.bf16.mxu0 0
        %1590 = vmatpush1.bf16.msra.mxu0 0
        %1591 = vmatprep.subr.bf16.mxu0 0
        %1592 = vmatpush1.bf16.msra.mxu0 0
        %1593 = vmatprep.subr.bf16.mxu0 0
        %1594 = vmatpush1.bf16.msra.mxu0 0
        %1595 = vmatprep.subr.bf16.mxu0 0
        %1596 = vmatpush1.bf16.msra.mxu0 0
        %1597 = vmatprep.subr.bf16.mxu0 0
        %1598 = vmatpush1.bf16.msra.mxu0 %v746
        %1599 = vmatprep.subr.bf16.mxu0 0
        %1600 = vmatpush2.bf16.msra.mxu0 0
        %1601 = vmatprep.subr.bf16.mxu0 0
        %1602 = vmatpush2.bf16.msra.mxu0 0
        %1603 = vmatprep.subr.bf16.mxu0 0
        %1604 = vmatpush2.bf16.msra.mxu0 0
        %1605 = vmatprep.subr.bf16.mxu0 0
        %1606 = vmatpush2.bf16.msra.mxu0 0
        %1607 = vmatprep.subr.bf16.mxu0 0
        %1608 = vmatpush2.bf16.msra.mxu0 0
        %1609 = vmatprep.subr.bf16.mxu0 0
        %1610 = vmatpush2.bf16.msra.mxu0 0
        %1611 = vmatprep.subr.bf16.mxu0 0
        %1612 = vmatpush2.bf16.msra.mxu0 0
        %1613 = vmatprep.subr.bf16.mxu0 0
        %1614 = vmatpush2.bf16.msra.mxu0 0
        %1615 = vmatprep.mubr.bf16.mxu0 0
        %1616 = vmatmul.mubr.bf16.gmra.mxu0 %v1581
        %v1617 = vpop.f32.mrf.mxu0
        %v1618 = vadd.f32 0.0, %v1617
        %v1619 = vpop.f32.mrf.mxu0
        %v1620 = vpop.f32.mrf.mxu0
        %v1621 = vadd.f32 0.0, %v1620
        %v1622 = vpop.f32.mrf.mxu0
        %1623 = vdwg.mxu0
        %v1625 = vsel %vm1131, %v1315, 0
        %1627 = vmatprep.subr.bf16.mxu0 0
        %1628 = vmatpush1.bf16.msra.mxu0 0
        %1629 = vmatprep.subr.bf16.mxu0 0
        %1630 = vmatpush1.bf16.msra.mxu0 0
        %1631 = vmatprep.subr.bf16.mxu0 0
        %1632 = vmatpush1.bf16.msra.mxu0 0
        %1633 = vmatprep.subr.bf16.mxu0 0
        %1634 = vmatpush1.bf16.msra.mxu0 0
        %1635 = vmatprep.subr.bf16.mxu0 0
        %1636 = vmatpush1.bf16.msra.mxu0 0
        %1637 = vmatprep.subr.bf16.mxu0 0
        %1638 = vmatpush1.bf16.msra.mxu0 0
        %1639 = vmatprep.subr.bf16.mxu0 0
        %1640 = vmatpush1.bf16.msra.mxu0 0
        %1641 = vmatprep.subr.bf16.mxu0 0
        %1642 = vmatpush1.bf16.msra.mxu0 %v749
        %1643 = vmatprep.subr.bf16.mxu0 0
        %1644 = vmatpush2.bf16.msra.mxu0 0
        %1645 = vmatprep.subr.bf16.mxu0 0
        %1646 = vmatpush2.bf16.msra.mxu0 0
        %1647 = vmatprep.subr.bf16.mxu0 0
        %1648 = vmatpush2.bf16.msra.mxu0 0
        %1649 = vmatprep.subr.bf16.mxu0 0
        %1650 = vmatpush2.bf16.msra.mxu0 0
        %1651 = vmatprep.subr.bf16.mxu0 0
        %1652 = vmatpush2.bf16.msra.mxu0 0
        %1653 = vmatprep.subr.bf16.mxu0 0
        %1654 = vmatpush2.bf16.msra.mxu0 0
        %1655 = vmatprep.subr.bf16.mxu0 0
        %1656 = vmatpush2.bf16.msra.mxu0 0
        %1657 = vmatprep.subr.bf16.mxu0 0
        %1658 = vmatpush2.bf16.msra.mxu0 0
        %1659 = vmatprep.mubr.bf16.mxu0 0
        %1660 = vmatmul.mubr.bf16.gmra.mxu0 %v1625
        %v1661 = vpop.f32.mrf.mxu0
        %v1662 = vadd.f32 0.0, %v1661
        %v1663 = vpop.f32.mrf.mxu0
        %v1664 = vpop.f32.mrf.mxu0
        %v1665 = vadd.f32 0.0, %v1664
        %v1666 = vpop.f32.mrf.mxu0
        %1667 = vdwg.mxu0
        %v1668 = vpack.c.bf16 %v1357, %v1354
        %v1669 = vpack.c.bf16 %v1401, %v1398
        %v1670 = vpack.c.bf16 %v1445, %v1442
        %v1671 = vpack.c.bf16 %v1489, %v1486
        %v1672 = vpack.c.bf16 %v1533, %v1530
        %v1673 = vpack.c.bf16 %v1577, %v1574
        %v1674 = vpack.c.bf16 %v1621, %v1618
        %v1675 = vpack.c.bf16 %v1665, %v1662
        %v1684 = vunpack.c.l.b16 %v1668
        %v1685 = vunpack.c.h.b16 %v1668
        %v1686 = vunpack.c.l.b16 %v1669
        %v1687 = vunpack.c.h.b16 %v1669
        %v1688 = vunpack.c.l.b16 %v1670
        %v1689 = vunpack.c.h.b16 %v1670
        %v1690 = vunpack.c.l.b16 %v1671
        %v1691 = vunpack.c.h.b16 %v1671
        %v1692 = vunpack.c.l.b16 %v1672
        %v1693 = vunpack.c.h.b16 %v1672
        %v1694 = vunpack.c.l.b16 %v1673
        %v1695 = vunpack.c.h.b16 %v1673
        %v1696 = vunpack.c.l.b16 %v1674
        %v1697 = vunpack.c.h.b16 %v1674
        %v1698 = vunpack.c.l.b16 %v1675
        %v1699 = vunpack.c.h.b16 %v1675
        %v1700 = vpack.c.b16 %v1684, %v1684
        %v1701 = vpack.c.b16 %v1685, %v1685
        %v1702 = vpack.c.b16 %v1686, %v1686
        %v1703 = vpack.c.b16 %v1687, %v1687
        %v1704 = vpack.c.b16 %v1688, %v1688
        %v1705 = vpack.c.b16 %v1689, %v1689
        %v1706 = vpack.c.b16 %v1690, %v1690
        %v1707 = vpack.c.b16 %v1691, %v1691
        %v1708 = vpack.c.b16 %v1692, %v1692
        %v1709 = vpack.c.b16 %v1693, %v1693
        %v1710 = vpack.c.b16 %v1694, %v1694
        %v1711 = vpack.c.b16 %v1695, %v1695
        %v1712 = vpack.c.b16 %v1696, %v1696
        %v1713 = vpack.c.b16 %v1697, %v1697
        %v1714 = vpack.c.b16 %v1698, %v1698
        %v1715 = vpack.c.b16 %v1699, %v1699
        %vm1732 = vcmask 257024
        %1733 = vst.msk [vmem:[#allocation2] sm:$0xf] %vm1732, %v1700
        %1734 = vst.msk [vmem:[#allocation2 + $0x4] sm:$0xf] %vm1732, %v1701
        %1735 = vst.msk [vmem:[#allocation2 + $0x8] sm:$0xf] %vm1732, %v1702
        %1736 = vst.msk [vmem:[#allocation2 + $0xc] sm:$0xf] %vm1732, %v1703
        %1737 = vst.msk [vmem:[#allocation2 + $0x10] sm:$0xf] %vm1732, %v1704
        %1738 = vst.msk [vmem:[#allocation2 + $0x14] sm:$0xf] %vm1732, %v1705
        %1739 = vst.msk [vmem:[#allocation2 + $0x18] sm:$0xf] %vm1732, %v1706
        %1740 = vst.msk [vmem:[#allocation2 + $0x1c] sm:$0xf] %vm1732, %v1707
        %1741 = vst.msk [vmem:[#allocation2 + $0x20] sm:$0xf] %vm1732, %v1708
        %1742 = vst.msk [vmem:[#allocation2 + $0x24] sm:$0xf] %vm1732, %v1709
        %1743 = vst.msk [vmem:[#allocation2 + $0x28] sm:$0xf] %vm1732, %v1710
        %1744 = vst.msk [vmem:[#allocation2 + $0x2c] sm:$0xf] %vm1732, %v1711
        %1745 = vst.msk [vmem:[#allocation2 + $0x30] sm:$0xf] %vm1732, %v1712
        %1746 = vst.msk [vmem:[#allocation2 + $0x34] sm:$0xf] %vm1732, %v1713
        %1747 = vst.msk [vmem:[#allocation2 + $0x38] sm:$0xf] %vm1732, %v1714
        %1748 = vst.msk [vmem:[#allocation2 + $0x3c] sm:$0xf] %vm1732, %v1715
        %s1749 = scalar_lea.vmem [#allocation8], 16
        %v1750 = vld [vmem:[%s1749] sm:$0xff]
        %v1751 = vld [vmem:[%s1749 + $0x8] sm:$0xff]
        %1753 = vrot.lane.b32.xlu0 %v729, 96
        %v1754 = vpop.permute.xlu0 %1753
        %1756 = vrot.lane.b32.xlu0 %v730, 96
        %v1757 = vpop.permute.xlu0 %1756
        %v1759 = vsel %vm754, %v1754, 0
        %v1762 = vsel %vm754, %v1757, 0
        %1764 = vmatprep.subr.bf16.mxu0 0
        %1765 = vmatpush1.bf16.xpose.msra.mxu0 0
        %1766 = vmatprep.subr.bf16.mxu0 0
        %1767 = vmatpush1.bf16.xpose.msra.mxu0 0
        %1768 = vmatprep.subr.bf16.mxu0 0
        %1769 = vmatpush1.bf16.xpose.msra.mxu0 0
        %1770 = vmatprep.subr.bf16.mxu0 0
        %1771 = vmatpush1.bf16.xpose.msra.mxu0 0
        %1772 = vmatprep.subr.bf16.mxu0 0
        %1773 = vmatpush1.bf16.xpose.msra.mxu0 0
        %1774 = vmatprep.subr.bf16.mxu0 0
        %1775 = vmatpush1.bf16.xpose.msra.mxu0 0
        %1776 = vmatprep.subr.bf16.mxu0 0
        %1777 = vmatpush1.bf16.xpose.msra.mxu0 0
        %1778 = vmatprep.subr.bf16.mxu0 0
        %1779 = vmatpush1.bf16.xpose.msra.mxu0 %v1762
        %1780 = vmatprep.subr.bf16.mxu0 0
        %1781 = vmatpush2.bf16.xpose.msra.mxu0 0
        %1782 = vmatprep.subr.bf16.mxu0 0
        %1783 = vmatpush2.bf16.xpose.msra.mxu0 0
        %1784 = vmatprep.subr.bf16.mxu0 0
        %1785 = vmatpush2.bf16.xpose.msra.mxu0 0
        %1786 = vmatprep.subr.bf16.mxu0 0
        %1787 = vmatpush2.bf16.xpose.msra.mxu0 0
        %1788 = vmatprep.subr.bf16.mxu0 0
        %1789 = vmatpush2.bf16.xpose.msra.mxu0 0
        %1790 = vmatprep.subr.bf16.mxu0 0
        %1791 = vmatpush2.bf16.xpose.msra.mxu0 0
        %1792 = vmatprep.subr.bf16.mxu0 0
        %1793 = vmatpush2.bf16.xpose.msra.mxu0 0
        %1794 = vmatprep.subr.bf16.mxu0 0
        %1795 = vmatpush2.bf16.xpose.msra.mxu0 0
        %1796 = vmatprep.mubr.bf16.mxu0 0
        %1797 = vmatmul.mubr.bf16.gmra.mxu0 %v1759
        %v1798 = vpop.f32.mrf.mxu0
        %v1799 = vadd.f32 %v1750, %v1798
        %v1800 = vpop.f32.mrf.mxu0
        %v1801 = vpop.f32.mrf.mxu0
        %v1802 = vadd.f32 %v1751, %v1801
        %v1803 = vpop.f32.mrf.mxu0
        %1804 = vdwg.mxu0
        %1806 = vrot.lane.b32.xlu0 %v732, 96
        %v1807 = vpop.permute.xlu0 %1806
        %1809 = vrot.lane.b32.xlu0 %v733, 96
        %v1810 = vpop.permute.xlu0 %1809
        %v1812 = vsel %vm754, %v1807, 0
        %v1815 = vsel %vm754, %v1810, 0
        %1817 = vmatprep.subr.bf16.mxu0 0
        %1818 = vmatpush1.bf16.xpose.msra.mxu0 0
        %1819 = vmatprep.subr.bf16.mxu0 0
        %1820 = vmatpush1.bf16.xpose.msra.mxu0 0
        %1821 = vmatprep.subr.bf16.mxu0 0
        %1822 = vmatpush1.bf16.xpose.msra.mxu0 0
        %1823 = vmatprep.subr.bf16.mxu0 0
        %1824 = vmatpush1.bf16.xpose.msra.mxu0 0
        %1825 = vmatprep.subr.bf16.mxu0 0
        %1826 = vmatpush1.bf16.xpose.msra.mxu0 0
        %1827 = vmatprep.subr.bf16.mxu0 0
        %1828 = vmatpush1.bf16.xpose.msra.mxu0 0
        %1829 = vmatprep.subr.bf16.mxu0 0
        %1830 = vmatpush1.bf16.xpose.msra.mxu0 0
        %1831 = vmatprep.subr.bf16.mxu0 0
        %1832 = vmatpush1.bf16.xpose.msra.mxu0 %v1815
        %1833 = vmatprep.subr.bf16.mxu0 0
        %1834 = vmatpush2.bf16.xpose.msra.mxu0 0
        %1835 = vmatprep.subr.bf16.mxu0 0
        %1836 = vmatpush2.bf16.xpose.msra.mxu0 0
        %1837 = vmatprep.subr.bf16.mxu0 0
        %1838 = vmatpush2.bf16.xpose.msra.mxu0 0
        %1839 = vmatprep.subr.bf16.mxu0 0
        %1840 = vmatpush2.bf16.xpose.msra.mxu0 0
        %1841 = vmatprep.subr.bf16.mxu0 0
        %1842 = vmatpush2.bf16.xpose.msra.mxu0 0
        %1843 = vmatprep.subr.bf16.mxu0 0
        %1844 = vmatpush2.bf16.xpose.msra.mxu0 0
        %1845 = vmatprep.subr.bf16.mxu0 0
        %1846 = vmatpush2.bf16.xpose.msra.mxu0 0
        %1847 = vmatprep.subr.bf16.mxu0 0
        %1848 = vmatpush2.bf16.xpose.msra.mxu0 0
        %1849 = vmatprep.mubr.bf16.mxu0 0
        %1850 = vmatmul.mubr.bf16.gmra.mxu0 %v1812
        %v1851 = vpop.f32.mrf.mxu0
        %v1852 = vadd.f32 %v1750, %v1851
        %v1853 = vpop.f32.mrf.mxu0
        %v1854 = vpop.f32.mrf.mxu0
        %v1855 = vadd.f32 %v1751, %v1854
        %v1856 = vpop.f32.mrf.mxu0
        %1857 = vdwg.mxu0
        %1859 = vrot.lane.b32.xlu0 %v735, 96
        %v1860 = vpop.permute.xlu0 %1859
        %1862 = vrot.lane.b32.xlu0 %v736, 96
        %v1863 = vpop.permute.xlu0 %1862
        %v1865 = vsel %vm754, %v1860, 0
        %v1868 = vsel %vm754, %v1863, 0
        %1870 = vmatprep.subr.bf16.mxu0 0
        %1871 = vmatpush1.bf16.xpose.msra.mxu0 0
        %1872 = vmatprep.subr.bf16.mxu0 0
        %1873 = vmatpush1.bf16.xpose.msra.mxu0 0
        %1874 = vmatprep.subr.bf16.mxu0 0
        %1875 = vmatpush1.bf16.xpose.msra.mxu0 0
        %1876 = vmatprep.subr.bf16.mxu0 0
        %1877 = vmatpush1.bf16.xpose.msra.mxu0 0
        %1878 = vmatprep.subr.bf16.mxu0 0
        %1879 = vmatpush1.bf16.xpose.msra.mxu0 0
        %1880 = vmatprep.subr.bf16.mxu0 0
        %1881 = vmatpush1.bf16.xpose.msra.mxu0 0
        %1882 = vmatprep.subr.bf16.mxu0 0
        %1883 = vmatpush1.bf16.xpose.msra.mxu0 0
        %1884 = vmatprep.subr.bf16.mxu0 0
        %1885 = vmatpush1.bf16.xpose.msra.mxu0 %v1868
        %1886 = vmatprep.subr.bf16.mxu0 0
        %1887 = vmatpush2.bf16.xpose.msra.mxu0 0
        %1888 = vmatprep.subr.bf16.mxu0 0
        %1889 = vmatpush2.bf16.xpose.msra.mxu0 0
        %1890 = vmatprep.subr.bf16.mxu0 0
        %1891 = vmatpush2.bf16.xpose.msra.mxu0 0
        %1892 = vmatprep.subr.bf16.mxu0 0
        %1893 = vmatpush2.bf16.xpose.msra.mxu0 0
        %1894 = vmatprep.subr.bf16.mxu0 0
        %1895 = vmatpush2.bf16.xpose.msra.mxu0 0
        %1896 = vmatprep.subr.bf16.mxu0 0
        %1897 = vmatpush2.bf16.xpose.msra.mxu0 0
        %1898 = vmatprep.subr.bf16.mxu0 0
        %1899 = vmatpush2.bf16.xpose.msra.mxu0 0
        %1900 = vmatprep.subr.bf16.mxu0 0
        %1901 = vmatpush2.bf16.xpose.msra.mxu0 0
        %1902 = vmatprep.mubr.bf16.mxu0 0
        %1903 = vmatmul.mubr.bf16.gmra.mxu0 %v1865
        %v1904 = vpop.f32.mrf.mxu0
        %v1905 = vadd.f32 %v1750, %v1904
        %v1906 = vpop.f32.mrf.mxu0
        %v1907 = vpop.f32.mrf.mxu0
        %v1908 = vadd.f32 %v1751, %v1907
        %v1909 = vpop.f32.mrf.mxu0
        %1910 = vdwg.mxu0
        %1912 = vrot.lane.b32.xlu0 %v738, 96
        %v1913 = vpop.permute.xlu0 %1912
        %1915 = vrot.lane.b32.xlu0 %v739, 96
        %v1916 = vpop.permute.xlu0 %1915
        %v1918 = vsel %vm754, %v1913, 0
        %v1921 = vsel %vm754, %v1916, 0
        %1923 = vmatprep.subr.bf16.mxu0 0
        %1924 = vmatpush1.bf16.xpose.msra.mxu0 0
        %1925 = vmatprep.subr.bf16.mxu0 0
        %1926 = vmatpush1.bf16.xpose.msra.mxu0 0
        %1927 = vmatprep.subr.bf16.mxu0 0
        %1928 = vmatpush1.bf16.xpose.msra.mxu0 0
        %1929 = vmatprep.subr.bf16.mxu0 0
        %1930 = vmatpush1.bf16.xpose.msra.mxu0 0
        %1931 = vmatprep.subr.bf16.mxu0 0
        %1932 = vmatpush1.bf16.xpose.msra.mxu0 0
        %1933 = vmatprep.subr.bf16.mxu0 0
        %1934 = vmatpush1.bf16.xpose.msra.mxu0 0
        %1935 = vmatprep.subr.bf16.mxu0 0
        %1936 = vmatpush1.bf16.xpose.msra.mxu0 0
        %1937 = vmatprep.subr.bf16.mxu0 0
        %1938 = vmatpush1.bf16.xpose.msra.mxu0 %v1921
        %1939 = vmatprep.subr.bf16.mxu0 0
        %1940 = vmatpush2.bf16.xpose.msra.mxu0 0
        %1941 = vmatprep.subr.bf16.mxu0 0
        %1942 = vmatpush2.bf16.xpose.msra.mxu0 0
        %1943 = vmatprep.subr.bf16.mxu0 0
        %1944 = vmatpush2.bf16.xpose.msra.mxu0 0
        %1945 = vmatprep.subr.bf16.mxu0 0
        %1946 = vmatpush2.bf16.xpose.msra.mxu0 0
        %1947 = vmatprep.subr.bf16.mxu0 0
        %1948 = vmatpush2.bf16.xpose.msra.mxu0 0
        %1949 = vmatprep.subr.bf16.mxu0 0
        %1950 = vmatpush2.bf16.xpose.msra.mxu0 0
        %1951 = vmatprep.subr.bf16.mxu0 0
        %1952 = vmatpush2.bf16.xpose.msra.mxu0 0
        %1953 = vmatprep.subr.bf16.mxu0 0
        %1954 = vmatpush2.bf16.xpose.msra.mxu0 0
        %1955 = vmatprep.mubr.bf16.mxu0 0
        %1956 = vmatmul.mubr.bf16.gmra.mxu0 %v1918
        %v1957 = vpop.f32.mrf.mxu0
        %v1958 = vadd.f32 %v1750, %v1957
        %v1959 = vpop.f32.mrf.mxu0
        %v1960 = vpop.f32.mrf.mxu0
        %v1961 = vadd.f32 %v1751, %v1960
        %v1962 = vpop.f32.mrf.mxu0
        %1963 = vdwg.mxu0
        %1965 = vrot.lane.b32.xlu0 %v741, 96
        %v1966 = vpop.permute.xlu0 %1965
        %1968 = vrot.lane.b32.xlu0 %v742, 96
        %v1969 = vpop.permute.xlu0 %1968
        %v1971 = vsel %vm754, %v1966, 0
        %v1974 = vsel %vm754, %v1969, 0
        %1976 = vmatprep.subr.bf16.mxu0 0
        %1977 = vmatpush1.bf16.xpose.msra.mxu0 0
        %1978 = vmatprep.subr.bf16.mxu0 0
        %1979 = vmatpush1.bf16.xpose.msra.mxu0 0
        %1980 = vmatprep.subr.bf16.mxu0 0
        %1981 = vmatpush1.bf16.xpose.msra.mxu0 0
        %1982 = vmatprep.subr.bf16.mxu0 0
        %1983 = vmatpush1.bf16.xpose.msra.mxu0 0
        %1984 = vmatprep.subr.bf16.mxu0 0
        %1985 = vmatpush1.bf16.xpose.msra.mxu0 0
        %1986 = vmatprep.subr.bf16.mxu0 0
        %1987 = vmatpush1.bf16.xpose.msra.mxu0 0
        %1988 = vmatprep.subr.bf16.mxu0 0
        %1989 = vmatpush1.bf16.xpose.msra.mxu0 0
        %1990 = vmatprep.subr.bf16.mxu0 0
        %1991 = vmatpush1.bf16.xpose.msra.mxu0 %v1974
        %1992 = vmatprep.subr.bf16.mxu0 0
        %1993 = vmatpush2.bf16.xpose.msra.mxu0 0
        %1994 = vmatprep.subr.bf16.mxu0 0
        %1995 = vmatpush2.bf16.xpose.msra.mxu0 0
        %1996 = vmatprep.subr.bf16.mxu0 0
        %1997 = vmatpush2.bf16.xpose.msra.mxu0 0
        %1998 = vmatprep.subr.bf16.mxu0 0
        %1999 = vmatpush2.bf16.xpose.msra.mxu0 0
        %2000 = vmatprep.subr.bf16.mxu0 0
        %2001 = vmatpush2.bf16.xpose.msra.mxu0 0
        %2002 = vmatprep.subr.bf16.mxu0 0
        %2003 = vmatpush2.bf16.xpose.msra.mxu0 0
        %2004 = vmatprep.subr.bf16.mxu0 0
        %2005 = vmatpush2.bf16.xpose.msra.mxu0 0
        %2006 = vmatprep.subr.bf16.mxu0 0
        %2007 = vmatpush2.bf16.xpose.msra.mxu0 0
        %2008 = vmatprep.mubr.bf16.mxu0 0
        %2009 = vmatmul.mubr.bf16.gmra.mxu0 %v1971
        %v2010 = vpop.f32.mrf.mxu0
        %v2011 = vadd.f32 %v1750, %v2010
        %v2012 = vpop.f32.mrf.mxu0
        %v2013 = vpop.f32.mrf.mxu0
        %v2014 = vadd.f32 %v1751, %v2013
        %v2015 = vpop.f32.mrf.mxu0
        %2016 = vdwg.mxu0
        %2018 = vrot.lane.b32.xlu0 %v744, 96
        %v2019 = vpop.permute.xlu0 %2018
        %2021 = vrot.lane.b32.xlu0 %v745, 96
        %v2022 = vpop.permute.xlu0 %2021
        %v2024 = vsel %vm754, %v2019, 0
        %v2027 = vsel %vm754, %v2022, 0
        %2029 = vmatprep.subr.bf16.mxu0 0
        %2030 = vmatpush1.bf16.xpose.msra.mxu0 0
        %2031 = vmatprep.subr.bf16.mxu0 0
        %2032 = vmatpush1.bf16.xpose.msra.mxu0 0
        %2033 = vmatprep.subr.bf16.mxu0 0
        %2034 = vmatpush1.bf16.xpose.msra.mxu0 0
        %2035 = vmatprep.subr.bf16.mxu0 0
        %2036 = vmatpush1.bf16.xpose.msra.mxu0 0
        %2037 = vmatprep.subr.bf16.mxu0 0
        %2038 = vmatpush1.bf16.xpose.msra.mxu0 0
        %2039 = vmatprep.subr.bf16.mxu0 0
        %2040 = vmatpush1.bf16.xpose.msra.mxu0 0
        %2041 = vmatprep.subr.bf16.mxu0 0
        %2042 = vmatpush1.bf16.xpose.msra.mxu0 0
        %2043 = vmatprep.subr.bf16.mxu0 0
        %2044 = vmatpush1.bf16.xpose.msra.mxu0 %v2027
        %2045 = vmatprep.subr.bf16.mxu0 0
        %2046 = vmatpush2.bf16.xpose.msra.mxu0 0
        %2047 = vmatprep.subr.bf16.mxu0 0
        %2048 = vmatpush2.bf16.xpose.msra.mxu0 0
        %2049 = vmatprep.subr.bf16.mxu0 0
        %2050 = vmatpush2.bf16.xpose.msra.mxu0 0
        %2051 = vmatprep.subr.bf16.mxu0 0
        %2052 = vmatpush2.bf16.xpose.msra.mxu0 0
        %2053 = vmatprep.subr.bf16.mxu0 0
        %2054 = vmatpush2.bf16.xpose.msra.mxu0 0
        %2055 = vmatprep.subr.bf16.mxu0 0
        %2056 = vmatpush2.bf16.xpose.msra.mxu0 0
        %2057 = vmatprep.subr.bf16.mxu0 0
        %2058 = vmatpush2.bf16.xpose.msra.mxu0 0
        %2059 = vmatprep.subr.bf16.mxu0 0
        %2060 = vmatpush2.bf16.xpose.msra.mxu0 0
        %2061 = vmatprep.mubr.bf16.mxu0 0
        %2062 = vmatmul.mubr.bf16.gmra.mxu0 %v2024
        %v2063 = vpop.f32.mrf.mxu0
        %v2064 = vadd.f32 %v1750, %v2063
        %v2065 = vpop.f32.mrf.mxu0
        %v2066 = vpop.f32.mrf.mxu0
        %v2067 = vadd.f32 %v1751, %v2066
        %v2068 = vpop.f32.mrf.mxu0
        %2069 = vdwg.mxu0
        %2071 = vrot.lane.b32.xlu0 %v747, 96
        %v2072 = vpop.permute.xlu0 %2071
        %2074 = vrot.lane.b32.xlu0 %v748, 96
        %v2075 = vpop.permute.xlu0 %2074
        %v2077 = vsel %vm754, %v2072, 0
        %v2080 = vsel %vm754, %v2075, 0
        %2082 = vmatprep.subr.bf16.mxu0 0
        %2083 = vmatpush1.bf16.xpose.msra.mxu0 0
        %2084 = vmatprep.subr.bf16.mxu0 0
        %2085 = vmatpush1.bf16.xpose.msra.mxu0 0
        %2086 = vmatprep.subr.bf16.mxu0 0
        %2087 = vmatpush1.bf16.xpose.msra.mxu0 0
        %2088 = vmatprep.subr.bf16.mxu0 0
        %2089 = vmatpush1.bf16.xpose.msra.mxu0 0
        %2090 = vmatprep.subr.bf16.mxu0 0
        %2091 = vmatpush1.bf16.xpose.msra.mxu0 0
        %2092 = vmatprep.subr.bf16.mxu0 0
        %2093 = vmatpush1.bf16.xpose.msra.mxu0 0
        %2094 = vmatprep.subr.bf16.mxu0 0
        %2095 = vmatpush1.bf16.xpose.msra.mxu0 0
        %2096 = vmatprep.subr.bf16.mxu0 0
        %2097 = vmatpush1.bf16.xpose.msra.mxu0 %v2080
        %2098 = vmatprep.subr.bf16.mxu0 0
        %2099 = vmatpush2.bf16.xpose.msra.mxu0 0
        %2100 = vmatprep.subr.bf16.mxu0 0
        %2101 = vmatpush2.bf16.xpose.msra.mxu0 0
        %2102 = vmatprep.subr.bf16.mxu0 0
        %2103 = vmatpush2.bf16.xpose.msra.mxu0 0
        %2104 = vmatprep.subr.bf16.mxu0 0
        %2105 = vmatpush2.bf16.xpose.msra.mxu0 0
        %2106 = vmatprep.subr.bf16.mxu0 0
        %2107 = vmatpush2.bf16.xpose.msra.mxu0 0
        %2108 = vmatprep.subr.bf16.mxu0 0
        %2109 = vmatpush2.bf16.xpose.msra.mxu0 0
        %2110 = vmatprep.subr.bf16.mxu0 0
        %2111 = vmatpush2.bf16.xpose.msra.mxu0 0
        %2112 = vmatprep.subr.bf16.mxu0 0
        %2113 = vmatpush2.bf16.xpose.msra.mxu0 0
        %2114 = vmatprep.mubr.bf16.mxu0 0
        %2115 = vmatmul.mubr.bf16.gmra.mxu0 %v2077
        %v2116 = vpop.f32.mrf.mxu0
        %v2117 = vadd.f32 %v1750, %v2116
        %v2118 = vpop.f32.mrf.mxu0
        %v2119 = vpop.f32.mrf.mxu0
        %v2120 = vadd.f32 %v1751, %v2119
        %v2121 = vpop.f32.mrf.mxu0
        %2122 = vdwg.mxu0
        %2124 = vrot.lane.b32.xlu0 %v750, 96
        %v2125 = vpop.permute.xlu0 %2124
        %2127 = vrot.lane.b32.xlu0 %v751, 96
        %v2128 = vpop.permute.xlu0 %2127
        %v2130 = vsel %vm754, %v2125, 0
        %v2133 = vsel %vm754, %v2128, 0
        %2135 = vmatprep.subr.bf16.mxu0 0
        %2136 = vmatpush1.bf16.xpose.msra.mxu0 0
        %2137 = vmatprep.subr.bf16.mxu0 0
        %2138 = vmatpush1.bf16.xpose.msra.mxu0 0
        %2139 = vmatprep.subr.bf16.mxu0 0
        %2140 = vmatpush1.bf16.xpose.msra.mxu0 0
        %2141 = vmatprep.subr.bf16.mxu0 0
        %2142 = vmatpush1.bf16.xpose.msra.mxu0 0
        %2143 = vmatprep.subr.bf16.mxu0 0
        %2144 = vmatpush1.bf16.xpose.msra.mxu0 0
        %2145 = vmatprep.subr.bf16.mxu0 0
        %2146 = vmatpush1.bf16.xpose.msra.mxu0 0
        %2147 = vmatprep.subr.bf16.mxu0 0
        %2148 = vmatpush1.bf16.xpose.msra.mxu0 0
        %2149 = vmatprep.subr.bf16.mxu0 0
        %2150 = vmatpush1.bf16.xpose.msra.mxu0 %v2133
        %2151 = vmatprep.subr.bf16.mxu0 0
        %2152 = vmatpush2.bf16.xpose.msra.mxu0 0
        %2153 = vmatprep.subr.bf16.mxu0 0
        %2154 = vmatpush2.bf16.xpose.msra.mxu0 0
        %2155 = vmatprep.subr.bf16.mxu0 0
        %2156 = vmatpush2.bf16.xpose.msra.mxu0 0
        %2157 = vmatprep.subr.bf16.mxu0 0
        %2158 = vmatpush2.bf16.xpose.msra.mxu0 0
        %2159 = vmatprep.subr.bf16.mxu0 0
        %2160 = vmatpush2.bf16.xpose.msra.mxu0 0
        %2161 = vmatprep.subr.bf16.mxu0 0
        %2162 = vmatpush2.bf16.xpose.msra.mxu0 0
        %2163 = vmatprep.subr.bf16.mxu0 0
        %2164 = vmatpush2.bf16.xpose.msra.mxu0 0
        %2165 = vmatprep.subr.bf16.mxu0 0
        %2166 = vmatpush2.bf16.xpose.msra.mxu0 0
        %2167 = vmatprep.mubr.bf16.mxu0 0
        %2168 = vmatmul.mubr.bf16.gmra.mxu0 %v2130
        %v2169 = vpop.f32.mrf.mxu0
        %v2170 = vadd.f32 %v1750, %v2169
        %v2171 = vpop.f32.mrf.mxu0
        %v2172 = vpop.f32.mrf.mxu0
        %v2173 = vadd.f32 %v1751, %v2172
        %v2174 = vpop.f32.mrf.mxu0
        %2175 = vdwg.mxu0
        %v2176 = vsel %vm1131, %v1799, -inf
        %2177 = vmax.xlane.f32.xlu0 %v2176
        %v2178 = vpop.xlane.xlu0 %2177
        %v2179 = vsel %vm1131, %v1802, -inf
        %2180 = vmax.xlane.f32.xlu0 %v2179
        %v2181 = vpop.xlane.xlu0 %2180
        %v2182 = vsel %vm1131, %v1852, -inf
        %2183 = vmax.xlane.f32.xlu0 %v2182
        %v2184 = vpop.xlane.xlu0 %2183
        %v2185 = vsel %vm1131, %v1855, -inf
        %2186 = vmax.xlane.f32.xlu0 %v2185
        %v2187 = vpop.xlane.xlu0 %2186
        %v2188 = vsel %vm1131, %v1905, -inf
        %2189 = vmax.xlane.f32.xlu0 %v2188
        %v2190 = vpop.xlane.xlu0 %2189
        %v2191 = vsel %vm1131, %v1908, -inf
        %2192 = vmax.xlane.f32.xlu0 %v2191
        %v2193 = vpop.xlane.xlu0 %2192
        %v2194 = vsel %vm1131, %v1958, -inf
        %2195 = vmax.xlane.f32.xlu0 %v2194
        %v2196 = vpop.xlane.xlu0 %2195
        %v2197 = vsel %vm1131, %v1961, -inf
        %2198 = vmax.xlane.f32.xlu0 %v2197
        %v2199 = vpop.xlane.xlu0 %2198
        %v2200 = vsel %vm1131, %v2011, -inf
        %2201 = vmax.xlane.f32.xlu0 %v2200
        %v2202 = vpop.xlane.xlu0 %2201
        %v2203 = vsel %vm1131, %v2014, -inf
        %2204 = vmax.xlane.f32.xlu0 %v2203
        %v2205 = vpop.xlane.xlu0 %2204
        %v2206 = vsel %vm1131, %v2064, -inf
        %2207 = vmax.xlane.f32.xlu0 %v2206
        %v2208 = vpop.xlane.xlu0 %2207
        %v2209 = vsel %vm1131, %v2067, -inf
        %2210 = vmax.xlane.f32.xlu0 %v2209
        %v2211 = vpop.xlane.xlu0 %2210
        %v2212 = vsel %vm1131, %v2117, -inf
        %2213 = vmax.xlane.f32.xlu0 %v2212
        %v2214 = vpop.xlane.xlu0 %2213
        %v2215 = vsel %vm1131, %v2120, -inf
        %2216 = vmax.xlane.f32.xlu0 %v2215
        %v2217 = vpop.xlane.xlu0 %2216
        %v2218 = vsel %vm1131, %v2170, -inf
        %2219 = vmax.xlane.f32.xlu0 %v2218
        %v2220 = vpop.xlane.xlu0 %2219
        %v2221 = vsel %vm1131, %v2173, -inf
        %2222 = vmax.xlane.f32.xlu0 %v2221
        %v2223 = vpop.xlane.xlu0 %2222
        %v2224 = vsub.f32 %v1799, %v2178
        %v2225 = vsub.f32 %v1802, %v2181
        %v2226 = vsub.f32 %v1852, %v2184
        %v2227 = vsub.f32 %v1855, %v2187
        %v2228 = vsub.f32 %v1905, %v2190
        %v2229 = vsub.f32 %v1908, %v2193
        %v2230 = vsub.f32 %v1958, %v2196
        %v2231 = vsub.f32 %v1961, %v2199
        %v2232 = vsub.f32 %v2011, %v2202
        %v2233 = vsub.f32 %v2014, %v2205
        %v2234 = vsub.f32 %v2064, %v2208
        %v2235 = vsub.f32 %v2067, %v2211
        %v2236 = vsub.f32 %v2117, %v2214
        %v2237 = vsub.f32 %v2120, %v2217
        %v2238 = vsub.f32 %v2170, %v2220
        %v2239 = vsub.f32 %v2173, %v2223
        %v2240 = vmul.f32 %v2224, 1.442695
        %v2241 = vpow.pop %v2240
        %v2242 = vmul.f32 %v2225, 1.442695
        %v2243 = vpow.pop %v2242
        %v2244 = vmul.f32 %v2226, 1.442695
        %v2245 = vpow.pop %v2244
        %v2246 = vmul.f32 %v2227, 1.442695
        %v2247 = vpow.pop %v2246
        %v2248 = vmul.f32 %v2228, 1.442695
        %v2249 = vpow.pop %v2248
        %v2250 = vmul.f32 %v2229, 1.442695
        %v2251 = vpow.pop %v2250
        %v2252 = vmul.f32 %v2230, 1.442695
        %v2253 = vpow.pop %v2252
        %v2254 = vmul.f32 %v2231, 1.442695
        %v2255 = vpow.pop %v2254
        %v2256 = vmul.f32 %v2232, 1.442695
        %v2257 = vpow.pop %v2256
        %v2258 = vmul.f32 %v2233, 1.442695
        %v2259 = vpow.pop %v2258
        %v2260 = vmul.f32 %v2234, 1.442695
        %v2261 = vpow.pop %v2260
        %v2262 = vmul.f32 %v2235, 1.442695
        %v2263 = vpow.pop %v2262
        %v2264 = vmul.f32 %v2236, 1.442695
        %v2265 = vpow.pop %v2264
        %v2266 = vmul.f32 %v2237, 1.442695
        %v2267 = vpow.pop %v2266
        %v2268 = vmul.f32 %v2238, 1.442695
        %v2269 = vpow.pop %v2268
        %v2270 = vmul.f32 %v2239, 1.442695
        %v2271 = vpow.pop %v2270
        %v2272 = vsel %vm1131, %v2241, 0.0
        %2273 = vadd.xlane.f32.xlu0 %v2272
        %v2274 = vpop.xlane.xlu0 %2273
        %v2275 = vsel %vm1131, %v2243, 0.0
        %2276 = vadd.xlane.f32.xlu0 %v2275
        %v2277 = vpop.xlane.xlu0 %2276
        %v2278 = vsel %vm1131, %v2245, 0.0
        %2279 = vadd.xlane.f32.xlu0 %v2278
        %v2280 = vpop.xlane.xlu0 %2279
        %v2281 = vsel %vm1131, %v2247, 0.0
        %2282 = vadd.xlane.f32.xlu0 %v2281
        %v2283 = vpop.xlane.xlu0 %2282
        %v2284 = vsel %vm1131, %v2249, 0.0
        %2285 = vadd.xlane.f32.xlu0 %v2284
        %v2286 = vpop.xlane.xlu0 %2285
        %v2287 = vsel %vm1131, %v2251, 0.0
        %2288 = vadd.xlane.f32.xlu0 %v2287
        %v2289 = vpop.xlane.xlu0 %2288
        %v2290 = vsel %vm1131, %v2253, 0.0
        %2291 = vadd.xlane.f32.xlu0 %v2290
        %v2292 = vpop.xlane.xlu0 %2291
        %v2293 = vsel %vm1131, %v2255, 0.0
        %2294 = vadd.xlane.f32.xlu0 %v2293
        %v2295 = vpop.xlane.xlu0 %2294
        %v2296 = vsel %vm1131, %v2257, 0.0
        %2297 = vadd.xlane.f32.xlu0 %v2296
        %v2298 = vpop.xlane.xlu0 %2297
        %v2299 = vsel %vm1131, %v2259, 0.0
        %2300 = vadd.xlane.f32.xlu0 %v2299
        %v2301 = vpop.xlane.xlu0 %2300
        %v2302 = vsel %vm1131, %v2261, 0.0
        %2303 = vadd.xlane.f32.xlu0 %v2302
        %v2304 = vpop.xlane.xlu0 %2303
        %v2305 = vsel %vm1131, %v2263, 0.0
        %2306 = vadd.xlane.f32.xlu0 %v2305
        %v2307 = vpop.xlane.xlu0 %2306
        %v2308 = vsel %vm1131, %v2265, 0.0
        %2309 = vadd.xlane.f32.xlu0 %v2308
        %v2310 = vpop.xlane.xlu0 %2309
        %v2311 = vsel %vm1131, %v2267, 0.0
        %2312 = vadd.xlane.f32.xlu0 %v2311
        %v2313 = vpop.xlane.xlu0 %2312
        %v2314 = vsel %vm1131, %v2269, 0.0
        %2315 = vadd.xlane.f32.xlu0 %v2314
        %v2316 = vpop.xlane.xlu0 %2315
        %v2317 = vsel %vm1131, %v2271, 0.0
        %2318 = vadd.xlane.f32.xlu0 %v2317
        %v2319 = vpop.xlane.xlu0 %2318
        %v2320 = vrcp.pop %v2274
        %v2321 = vrcp.pop %v2277
        %v2322 = vrcp.pop %v2280
        %v2323 = vrcp.pop %v2283
        %v2324 = vrcp.pop %v2286
        %v2325 = vrcp.pop %v2289
        %v2326 = vrcp.pop %v2292
        %v2327 = vrcp.pop %v2295
        %v2328 = vrcp.pop %v2298
        %v2329 = vrcp.pop %v2301
        %v2330 = vrcp.pop %v2304
        %v2331 = vrcp.pop %v2307
        %v2332 = vrcp.pop %v2310
        %v2333 = vrcp.pop %v2313
        %v2334 = vrcp.pop %v2316
        %v2335 = vrcp.pop %v2319
        %v2336 = vmul.f32 %v2241, %v2320
        %v2337 = vmul.f32 %v2243, %v2321
        %v2338 = vmul.f32 %v2245, %v2322
        %v2339 = vmul.f32 %v2247, %v2323
        %v2340 = vmul.f32 %v2249, %v2324
        %v2341 = vmul.f32 %v2251, %v2325
        %v2342 = vmul.f32 %v2253, %v2326
        %v2343 = vmul.f32 %v2255, %v2327
        %v2344 = vmul.f32 %v2257, %v2328
        %v2345 = vmul.f32 %v2259, %v2329
        %v2346 = vmul.f32 %v2261, %v2330
        %v2347 = vmul.f32 %v2263, %v2331
        %v2348 = vmul.f32 %v2265, %v2332
        %v2349 = vmul.f32 %v2267, %v2333
        %v2350 = vmul.f32 %v2269, %v2334
        %v2351 = vmul.f32 %v2271, %v2335
        %v2352 = vpack.c.bf16 %v2337, %v2336
        %v2353 = vpack.c.bf16 %v2339, %v2338
        %v2354 = vpack.c.bf16 %v2341, %v2340
        %v2355 = vpack.c.bf16 %v2343, %v2342
        %v2356 = vpack.c.bf16 %v2345, %v2344
        %v2357 = vpack.c.bf16 %v2347, %v2346
        %v2358 = vpack.c.bf16 %v2349, %v2348
        %v2359 = vpack.c.bf16 %v2351, %v2350
        %2361 = vrot.lane.b32.xlu0 %v728, 96
        %v2362 = vpop.permute.xlu0 %2361
        %v2365 = vsel %vm1131, %v2352, 0
        %2367 = vmatprep.subr.bf16.mxu0 0
        %2368 = vmatpush1.bf16.msra.mxu0 0
        %2369 = vmatprep.subr.bf16.mxu0 0
        %2370 = vmatpush1.bf16.msra.mxu0 0
        %2371 = vmatprep.subr.bf16.mxu0 0
        %2372 = vmatpush1.bf16.msra.mxu0 0
        %2373 = vmatprep.subr.bf16.mxu0 0
        %2374 = vmatpush1.bf16.msra.mxu0 0
        %2375 = vmatprep.subr.bf16.mxu0 0
        %2376 = vmatpush1.bf16.msra.mxu0 0
        %2377 = vmatprep.subr.bf16.mxu0 0
        %2378 = vmatpush1.bf16.msra.mxu0 0
        %2379 = vmatprep.subr.bf16.mxu0 0
        %2380 = vmatpush1.bf16.msra.mxu0 0
        %2381 = vmatprep.subr.bf16.mxu0 0
        %2382 = vmatpush1.bf16.msra.mxu0 %v2362
        %2383 = vmatprep.subr.bf16.mxu0 0
        %2384 = vmatpush2.bf16.msra.mxu0 0
        %2385 = vmatprep.subr.bf16.mxu0 0
        %2386 = vmatpush2.bf16.msra.mxu0 0
        %2387 = vmatprep.subr.bf16.mxu0 0
        %2388 = vmatpush2.bf16.msra.mxu0 0
        %2389 = vmatprep.subr.bf16.mxu0 0
        %2390 = vmatpush2.bf16.msra.mxu0 0
        %2391 = vmatprep.subr.bf16.mxu0 0
        %2392 = vmatpush2.bf16.msra.mxu0 0
        %2393 = vmatprep.subr.bf16.mxu0 0
        %2394 = vmatpush2.bf16.msra.mxu0 0
        %2395 = vmatprep.subr.bf16.mxu0 0
        %2396 = vmatpush2.bf16.msra.mxu0 0
        %2397 = vmatprep.subr.bf16.mxu0 0
        %2398 = vmatpush2.bf16.msra.mxu0 0
        %2399 = vmatprep.mubr.bf16.mxu0 0
        %2400 = vmatmul.mubr.bf16.gmra.mxu0 %v2365
        %v2401 = vpop.f32.mrf.mxu0
        %v2402 = vadd.f32 0.0, %v2401
        %v2403 = vpop.f32.mrf.mxu0
        %v2404 = vpop.f32.mrf.mxu0
        %v2405 = vadd.f32 0.0, %v2404
        %v2406 = vpop.f32.mrf.mxu0
        %2407 = vdwg.mxu0
        %2409 = vrot.lane.b32.xlu0 %v731, 96
        %v2410 = vpop.permute.xlu0 %2409
        %v2413 = vsel %vm1131, %v2353, 0
        %2415 = vmatprep.subr.bf16.mxu0 0
        %2416 = vmatpush1.bf16.msra.mxu0 0
        %2417 = vmatprep.subr.bf16.mxu0 0
        %2418 = vmatpush1.bf16.msra.mxu0 0
        %2419 = vmatprep.subr.bf16.mxu0 0
        %2420 = vmatpush1.bf16.msra.mxu0 0
        %2421 = vmatprep.subr.bf16.mxu0 0
        %2422 = vmatpush1.bf16.msra.mxu0 0
        %2423 = vmatprep.subr.bf16.mxu0 0
        %2424 = vmatpush1.bf16.msra.mxu0 0
        %2425 = vmatprep.subr.bf16.mxu0 0
        %2426 = vmatpush1.bf16.msra.mxu0 0
        %2427 = vmatprep.subr.bf16.mxu0 0
        %2428 = vmatpush1.bf16.msra.mxu0 0
        %2429 = vmatprep.subr.bf16.mxu0 0
        %2430 = vmatpush1.bf16.msra.mxu0 %v2410
        %2431 = vmatprep.subr.bf16.mxu0 0
        %2432 = vmatpush2.bf16.msra.mxu0 0
        %2433 = vmatprep.subr.bf16.mxu0 0
        %2434 = vmatpush2.bf16.msra.mxu0 0
        %2435 = vmatprep.subr.bf16.mxu0 0
        %2436 = vmatpush2.bf16.msra.mxu0 0
        %2437 = vmatprep.subr.bf16.mxu0 0
        %2438 = vmatpush2.bf16.msra.mxu0 0
        %2439 = vmatprep.subr.bf16.mxu0 0
        %2440 = vmatpush2.bf16.msra.mxu0 0
        %2441 = vmatprep.subr.bf16.mxu0 0
        %2442 = vmatpush2.bf16.msra.mxu0 0
        %2443 = vmatprep.subr.bf16.mxu0 0
        %2444 = vmatpush2.bf16.msra.mxu0 0
        %2445 = vmatprep.subr.bf16.mxu0 0
        %2446 = vmatpush2.bf16.msra.mxu0 0
        %2447 = vmatprep.mubr.bf16.mxu0 0
        %2448 = vmatmul.mubr.bf16.gmra.mxu0 %v2413
        %v2449 = vpop.f32.mrf.mxu0
        %v2450 = vadd.f32 0.0, %v2449
        %v2451 = vpop.f32.mrf.mxu0
        %v2452 = vpop.f32.mrf.mxu0
        %v2453 = vadd.f32 0.0, %v2452
        %v2454 = vpop.f32.mrf.mxu0
        %2455 = vdwg.mxu0
        %2457 = vrot.lane.b32.xlu0 %v734, 96
        %v2458 = vpop.permute.xlu0 %2457
        %v2461 = vsel %vm1131, %v2354, 0
        %2463 = vmatprep.subr.bf16.mxu0 0
        %2464 = vmatpush1.bf16.msra.mxu0 0
        %2465 = vmatprep.subr.bf16.mxu0 0
        %2466 = vmatpush1.bf16.msra.mxu0 0
        %2467 = vmatprep.subr.bf16.mxu0 0
        %2468 = vmatpush1.bf16.msra.mxu0 0
        %2469 = vmatprep.subr.bf16.mxu0 0
        %2470 = vmatpush1.bf16.msra.mxu0 0
        %2471 = vmatprep.subr.bf16.mxu0 0
        %2472 = vmatpush1.bf16.msra.mxu0 0
        %2473 = vmatprep.subr.bf16.mxu0 0
        %2474 = vmatpush1.bf16.msra.mxu0 0
        %2475 = vmatprep.subr.bf16.mxu0 0
        %2476 = vmatpush1.bf16.msra.mxu0 0
        %2477 = vmatprep.subr.bf16.mxu0 0
        %2478 = vmatpush1.bf16.msra.mxu0 %v2458
        %2479 = vmatprep.subr.bf16.mxu0 0
        %2480 = vmatpush2.bf16.msra.mxu0 0
        %2481 = vmatprep.subr.bf16.mxu0 0
        %2482 = vmatpush2.bf16.msra.mxu0 0
        %2483 = vmatprep.subr.bf16.mxu0 0
        %2484 = vmatpush2.bf16.msra.mxu0 0
        %2485 = vmatprep.subr.bf16.mxu0 0
        %2486 = vmatpush2.bf16.msra.mxu0 0
        %2487 = vmatprep.subr.bf16.mxu0 0
        %2488 = vmatpush2.bf16.msra.mxu0 0
        %2489 = vmatprep.subr.bf16.mxu0 0
        %2490 = vmatpush2.bf16.msra.mxu0 0
        %2491 = vmatprep.subr.bf16.mxu0 0
        %2492 = vmatpush2.bf16.msra.mxu0 0
        %2493 = vmatprep.subr.bf16.mxu0 0
        %2494 = vmatpush2.bf16.msra.mxu0 0
        %2495 = vmatprep.mubr.bf16.mxu0 0
        %2496 = vmatmul.mubr.bf16.gmra.mxu0 %v2461
        %v2497 = vpop.f32.mrf.mxu0
        %v2498 = vadd.f32 0.0, %v2497
        %v2499 = vpop.f32.mrf.mxu0
        %v2500 = vpop.f32.mrf.mxu0
        %v2501 = vadd.f32 0.0, %v2500
        %v2502 = vpop.f32.mrf.mxu0
        %2503 = vdwg.mxu0
        %2505 = vrot.lane.b32.xlu0 %v737, 96
        %v2506 = vpop.permute.xlu0 %2505
        %v2509 = vsel %vm1131, %v2355, 0
        %2511 = vmatprep.subr.bf16.mxu0 0
        %2512 = vmatpush1.bf16.msra.mxu0 0
        %2513 = vmatprep.subr.bf16.mxu0 0
        %2514 = vmatpush1.bf16.msra.mxu0 0
        %2515 = vmatprep.subr.bf16.mxu0 0
        %2516 = vmatpush1.bf16.msra.mxu0 0
        %2517 = vmatprep.subr.bf16.mxu0 0
        %2518 = vmatpush1.bf16.msra.mxu0 0
        %2519 = vmatprep.subr.bf16.mxu0 0
        %2520 = vmatpush1.bf16.msra.mxu0 0
        %2521 = vmatprep.subr.bf16.mxu0 0
        %2522 = vmatpush1.bf16.msra.mxu0 0
        %2523 = vmatprep.subr.bf16.mxu0 0
        %2524 = vmatpush1.bf16.msra.mxu0 0
        %2525 = vmatprep.subr.bf16.mxu0 0
        %2526 = vmatpush1.bf16.msra.mxu0 %v2506
        %2527 = vmatprep.subr.bf16.mxu0 0
        %2528 = vmatpush2.bf16.msra.mxu0 0
        %2529 = vmatprep.subr.bf16.mxu0 0
        %2530 = vmatpush2.bf16.msra.mxu0 0
        %2531 = vmatprep.subr.bf16.mxu0 0
        %2532 = vmatpush2.bf16.msra.mxu0 0
        %2533 = vmatprep.subr.bf16.mxu0 0
        %2534 = vmatpush2.bf16.msra.mxu0 0
        %2535 = vmatprep.subr.bf16.mxu0 0
        %2536 = vmatpush2.bf16.msra.mxu0 0
        %2537 = vmatprep.subr.bf16.mxu0 0
        %2538 = vmatpush2.bf16.msra.mxu0 0
        %2539 = vmatprep.subr.bf16.mxu0 0
        %2540 = vmatpush2.bf16.msra.mxu0 0
        %2541 = vmatprep.subr.bf16.mxu0 0
        %2542 = vmatpush2.bf16.msra.mxu0 0
        %2543 = vmatprep.mubr.bf16.mxu0 0
        %2544 = vmatmul.mubr.bf16.gmra.mxu0 %v2509
        %v2545 = vpop.f32.mrf.mxu0
        %v2546 = vadd.f32 0.0, %v2545
        %v2547 = vpop.f32.mrf.mxu0
        %v2548 = vpop.f32.mrf.mxu0
        %v2549 = vadd.f32 0.0, %v2548
        %v2550 = vpop.f32.mrf.mxu0
        %2551 = vdwg.mxu0
        %2553 = vrot.lane.b32.xlu0 %v740, 96
        %v2554 = vpop.permute.xlu0 %2553
        %v2557 = vsel %vm1131, %v2356, 0
        %2559 = vmatprep.subr.bf16.mxu0 0
        %2560 = vmatpush1.bf16.msra.mxu0 0
        %2561 = vmatprep.subr.bf16.mxu0 0
        %2562 = vmatpush1.bf16.msra.mxu0 0
        %2563 = vmatprep.subr.bf16.mxu0 0
        %2564 = vmatpush1.bf16.msra.mxu0 0
        %2565 = vmatprep.subr.bf16.mxu0 0
        %2566 = vmatpush1.bf16.msra.mxu0 0
        %2567 = vmatprep.subr.bf16.mxu0 0
        %2568 = vmatpush1.bf16.msra.mxu0 0
        %2569 = vmatprep.subr.bf16.mxu0 0
        %2570 = vmatpush1.bf16.msra.mxu0 0
        %2571 = vmatprep.subr.bf16.mxu0 0
        %2572 = vmatpush1.bf16.msra.mxu0 0
        %2573 = vmatprep.subr.bf16.mxu0 0
        %2574 = vmatpush1.bf16.msra.mxu0 %v2554
        %2575 = vmatprep.subr.bf16.mxu0 0
        %2576 = vmatpush2.bf16.msra.mxu0 0
        %2577 = vmatprep.subr.bf16.mxu0 0
        %2578 = vmatpush2.bf16.msra.mxu0 0
        %2579 = vmatprep.subr.bf16.mxu0 0
        %2580 = vmatpush2.bf16.msra.mxu0 0
        %2581 = vmatprep.subr.bf16.mxu0 0
        %2582 = vmatpush2.bf16.msra.mxu0 0
        %2583 = vmatprep.subr.bf16.mxu0 0
        %2584 = vmatpush2.bf16.msra.mxu0 0
        %2585 = vmatprep.subr.bf16.mxu0 0
        %2586 = vmatpush2.bf16.msra.mxu0 0
        %2587 = vmatprep.subr.bf16.mxu0 0
        %2588 = vmatpush2.bf16.msra.mxu0 0
        %2589 = vmatprep.subr.bf16.mxu0 0
        %2590 = vmatpush2.bf16.msra.mxu0 0
        %2591 = vmatprep.mubr.bf16.mxu0 0
        %2592 = vmatmul.mubr.bf16.gmra.mxu0 %v2557
        %v2593 = vpop.f32.mrf.mxu0
        %v2594 = vadd.f32 0.0, %v2593
        %v2595 = vpop.f32.mrf.mxu0
        %v2596 = vpop.f32.mrf.mxu0
        %v2597 = vadd.f32 0.0, %v2596
        %v2598 = vpop.f32.mrf.mxu0
        %2599 = vdwg.mxu0
        %2601 = vrot.lane.b32.xlu0 %v743, 96
        %v2602 = vpop.permute.xlu0 %2601
        %v2605 = vsel %vm1131, %v2357, 0
        %2607 = vmatprep.subr.bf16.mxu0 0
        %2608 = vmatpush1.bf16.msra.mxu0 0
        %2609 = vmatprep.subr.bf16.mxu0 0
        %2610 = vmatpush1.bf16.msra.mxu0 0
        %2611 = vmatprep.subr.bf16.mxu0 0
        %2612 = vmatpush1.bf16.msra.mxu0 0
        %2613 = vmatprep.subr.bf16.mxu0 0
        %2614 = vmatpush1.bf16.msra.mxu0 0
        %2615 = vmatprep.subr.bf16.mxu0 0
        %2616 = vmatpush1.bf16.msra.mxu0 0
        %2617 = vmatprep.subr.bf16.mxu0 0
        %2618 = vmatpush1.bf16.msra.mxu0 0
        %2619 = vmatprep.subr.bf16.mxu0 0
        %2620 = vmatpush1.bf16.msra.mxu0 0
        %2621 = vmatprep.subr.bf16.mxu0 0
        %2622 = vmatpush1.bf16.msra.mxu0 %v2602
        %2623 = vmatprep.subr.bf16.mxu0 0
        %2624 = vmatpush2.bf16.msra.mxu0 0
        %2625 = vmatprep.subr.bf16.mxu0 0
        %2626 = vmatpush2.bf16.msra.mxu0 0
        %2627 = vmatprep.subr.bf16.mxu0 0
        %2628 = vmatpush2.bf16.msra.mxu0 0
        %2629 = vmatprep.subr.bf16.mxu0 0
        %2630 = vmatpush2.bf16.msra.mxu0 0
        %2631 = vmatprep.subr.bf16.mxu0 0
        %2632 = vmatpush2.bf16.msra.mxu0 0
        %2633 = vmatprep.subr.bf16.mxu0 0
        %2634 = vmatpush2.bf16.msra.mxu0 0
        %2635 = vmatprep.subr.bf16.mxu0 0
        %2636 = vmatpush2.bf16.msra.mxu0 0
        %2637 = vmatprep.subr.bf16.mxu0 0
        %2638 = vmatpush2.bf16.msra.mxu0 0
        %2639 = vmatprep.mubr.bf16.mxu0 0
        %2640 = vmatmul.mubr.bf16.gmra.mxu0 %v2605
        %v2641 = vpop.f32.mrf.mxu0
        %v2642 = vadd.f32 0.0, %v2641
        %v2643 = vpop.f32.mrf.mxu0
        %v2644 = vpop.f32.mrf.mxu0
        %v2645 = vadd.f32 0.0, %v2644
        %v2646 = vpop.f32.mrf.mxu0
        %2647 = vdwg.mxu0
        %2649 = vrot.lane.b32.xlu0 %v746, 96
        %v2650 = vpop.permute.xlu0 %2649
        %v2653 = vsel %vm1131, %v2358, 0
        %2655 = vmatprep.subr.bf16.mxu0 0
        %2656 = vmatpush1.bf16.msra.mxu0 0
        %2657 = vmatprep.subr.bf16.mxu0 0
        %2658 = vmatpush1.bf16.msra.mxu0 0
        %2659 = vmatprep.subr.bf16.mxu0 0
        %2660 = vmatpush1.bf16.msra.mxu0 0
        %2661 = vmatprep.subr.bf16.mxu0 0
        %2662 = vmatpush1.bf16.msra.mxu0 0
        %2663 = vmatprep.subr.bf16.mxu0 0
        %2664 = vmatpush1.bf16.msra.mxu0 0
        %2665 = vmatprep.subr.bf16.mxu0 0
        %2666 = vmatpush1.bf16.msra.mxu0 0
        %2667 = vmatprep.subr.bf16.mxu0 0
        %2668 = vmatpush1.bf16.msra.mxu0 0
        %2669 = vmatprep.subr.bf16.mxu0 0
        %2670 = vmatpush1.bf16.msra.mxu0 %v2650
        %2671 = vmatprep.subr.bf16.mxu0 0
        %2672 = vmatpush2.bf16.msra.mxu0 0
        %2673 = vmatprep.subr.bf16.mxu0 0
        %2674 = vmatpush2.bf16.msra.mxu0 0
        %2675 = vmatprep.subr.bf16.mxu0 0
        %2676 = vmatpush2.bf16.msra.mxu0 0
        %2677 = vmatprep.subr.bf16.mxu0 0
        %2678 = vmatpush2.bf16.msra.mxu0 0
        %2679 = vmatprep.subr.bf16.mxu0 0
        %2680 = vmatpush2.bf16.msra.mxu0 0
        %2681 = vmatprep.subr.bf16.mxu0 0
        %2682 = vmatpush2.bf16.msra.mxu0 0
        %2683 = vmatprep.subr.bf16.mxu0 0
        %2684 = vmatpush2.bf16.msra.mxu0 0
        %2685 = vmatprep.subr.bf16.mxu0 0
        %2686 = vmatpush2.bf16.msra.mxu0 0
        %2687 = vmatprep.mubr.bf16.mxu0 0
        %2688 = vmatmul.mubr.bf16.gmra.mxu0 %v2653
        %v2689 = vpop.f32.mrf.mxu0
        %v2690 = vadd.f32 0.0, %v2689
        %v2691 = vpop.f32.mrf.mxu0
        %v2692 = vpop.f32.mrf.mxu0
        %v2693 = vadd.f32 0.0, %v2692
        %v2694 = vpop.f32.mrf.mxu0
        %2695 = vdwg.mxu0
        %2697 = vrot.lane.b32.xlu0 %v749, 96
        %v2698 = vpop.permute.xlu0 %2697
        %v2701 = vsel %vm1131, %v2359, 0
        %2703 = vmatprep.subr.bf16.mxu0 0
        %2704 = vmatpush1.bf16.msra.mxu0 0
        %2705 = vmatprep.subr.bf16.mxu0 0
        %2706 = vmatpush1.bf16.msra.mxu0 0
        %2707 = vmatprep.subr.bf16.mxu0 0
        %2708 = vmatpush1.bf16.msra.mxu0 0
        %2709 = vmatprep.subr.bf16.mxu0 0
        %2710 = vmatpush1.bf16.msra.mxu0 0
        %2711 = vmatprep.subr.bf16.mxu0 0
        %2712 = vmatpush1.bf16.msra.mxu0 0
        %2713 = vmatprep.subr.bf16.mxu0 0
        %2714 = vmatpush1.bf16.msra.mxu0 0
        %2715 = vmatprep.subr.bf16.mxu0 0
        %2716 = vmatpush1.bf16.msra.mxu0 0
        %2717 = vmatprep.subr.bf16.mxu0 0
        %2718 = vmatpush1.bf16.msra.mxu0 %v2698
        %2719 = vmatprep.subr.bf16.mxu0 0
        %2720 = vmatpush2.bf16.msra.mxu0 0
        %2721 = vmatprep.subr.bf16.mxu0 0
        %2722 = vmatpush2.bf16.msra.mxu0 0
        %2723 = vmatprep.subr.bf16.mxu0 0
        %2724 = vmatpush2.bf16.msra.mxu0 0
        %2725 = vmatprep.subr.bf16.mxu0 0
        %2726 = vmatpush2.bf16.msra.mxu0 0
        %2727 = vmatprep.subr.bf16.mxu0 0
        %2728 = vmatpush2.bf16.msra.mxu0 0
        %2729 = vmatprep.subr.bf16.mxu0 0
        %2730 = vmatpush2.bf16.msra.mxu0 0
        %2731 = vmatprep.subr.bf16.mxu0 0
        %2732 = vmatpush2.bf16.msra.mxu0 0
        %2733 = vmatprep.subr.bf16.mxu0 0
        %2734 = vmatpush2.bf16.msra.mxu0 0
        %2735 = vmatprep.mubr.bf16.mxu0 0
        %2736 = vmatmul.mubr.bf16.gmra.mxu0 %v2701
        %v2737 = vpop.f32.mrf.mxu0
        %v2738 = vadd.f32 0.0, %v2737
        %v2739 = vpop.f32.mrf.mxu0
        %v2740 = vpop.f32.mrf.mxu0
        %v2741 = vadd.f32 0.0, %v2740
        %v2742 = vpop.f32.mrf.mxu0
        %2743 = vdwg.mxu0
        %v2744 = vpack.c.bf16 %v2405, %v2402
        %v2745 = vpack.c.bf16 %v2453, %v2450
        %v2746 = vpack.c.bf16 %v2501, %v2498
        %v2747 = vpack.c.bf16 %v2549, %v2546
        %v2748 = vpack.c.bf16 %v2597, %v2594
        %v2749 = vpack.c.bf16 %v2645, %v2642
        %v2750 = vpack.c.bf16 %v2693, %v2690
        %v2751 = vpack.c.bf16 %v2741, %v2738
        %v2760 = vunpack.c.l.b16 %v2744
        %v2761 = vunpack.c.h.b16 %v2744
        %v2762 = vunpack.c.l.b16 %v2745
        %v2763 = vunpack.c.h.b16 %v2745
        %v2764 = vunpack.c.l.b16 %v2746
        %v2765 = vunpack.c.h.b16 %v2746
        %v2766 = vunpack.c.l.b16 %v2747
        %v2767 = vunpack.c.h.b16 %v2747
        %v2768 = vunpack.c.l.b16 %v2748
        %v2769 = vunpack.c.h.b16 %v2748
        %v2770 = vunpack.c.l.b16 %v2749
        %v2771 = vunpack.c.h.b16 %v2749
        %v2772 = vunpack.c.l.b16 %v2750
        %v2773 = vunpack.c.h.b16 %v2750
        %v2774 = vunpack.c.l.b16 %v2751
        %v2775 = vunpack.c.h.b16 %v2751
        %v2776 = vpack.c.b16 %v2760, %v2760
        %v2777 = vpack.c.b16 %v2761, %v2761
        %v2778 = vpack.c.b16 %v2762, %v2762
        %v2779 = vpack.c.b16 %v2763, %v2763
        %v2780 = vpack.c.b16 %v2764, %v2764
        %v2781 = vpack.c.b16 %v2765, %v2765
        %v2782 = vpack.c.b16 %v2766, %v2766
        %v2783 = vpack.c.b16 %v2767, %v2767
        %v2784 = vpack.c.b16 %v2768, %v2768
        %v2785 = vpack.c.b16 %v2769, %v2769
        %v2786 = vpack.c.b16 %v2770, %v2770
        %v2787 = vpack.c.b16 %v2771, %v2771
        %v2788 = vpack.c.b16 %v2772, %v2772
        %v2789 = vpack.c.b16 %v2773, %v2773
        %v2790 = vpack.c.b16 %v2774, %v2774
        %v2791 = vpack.c.b16 %v2775, %v2775
        %2792 = vrot.lane.b32.xlu0 %v2776, 32
        %v2793 = vpop.permute.xlu0 %2792
        %2794 = vrot.lane.b32.xlu0 %v2777, 32
        %v2795 = vpop.permute.xlu0 %2794
        %2796 = vrot.lane.b32.xlu0 %v2778, 32
        %v2797 = vpop.permute.xlu0 %2796
        %2798 = vrot.lane.b32.xlu0 %v2779, 32
        %v2799 = vpop.permute.xlu0 %2798
        %2800 = vrot.lane.b32.xlu0 %v2780, 32
        %v2801 = vpop.permute.xlu0 %2800
        %2802 = vrot.lane.b32.xlu0 %v2781, 32
        %v2803 = vpop.permute.xlu0 %2802
        %2804 = vrot.lane.b32.xlu0 %v2782, 32
        %v2805 = vpop.permute.xlu0 %2804
        %2806 = vrot.lane.b32.xlu0 %v2783, 32
        %v2807 = vpop.permute.xlu0 %2806
        %2808 = vrot.lane.b32.xlu0 %v2784, 32
        %v2809 = vpop.permute.xlu0 %2808
        %2810 = vrot.lane.b32.xlu0 %v2785, 32
        %v2811 = vpop.permute.xlu0 %2810
        %2812 = vrot.lane.b32.xlu0 %v2786, 32
        %v2813 = vpop.permute.xlu0 %2812
        %2814 = vrot.lane.b32.xlu0 %v2787, 32
        %v2815 = vpop.permute.xlu0 %2814
        %2816 = vrot.lane.b32.xlu0 %v2788, 32
        %v2817 = vpop.permute.xlu0 %2816
        %2818 = vrot.lane.b32.xlu0 %v2789, 32
        %v2819 = vpop.permute.xlu0 %2818
        %2820 = vrot.lane.b32.xlu0 %v2790, 32
        %v2821 = vpop.permute.xlu0 %2820
        %2822 = vrot.lane.b32.xlu0 %v2791, 32
        %v2823 = vpop.permute.xlu0 %2822
        %vm2840 = vcmask 519424
        %2841 = vst.msk [vmem:[#allocation2] sm:$0xf] %vm2840, %v2793
        %2842 = vst.msk [vmem:[#allocation2 + $0x4] sm:$0xf] %vm2840, %v2795
        %2843 = vst.msk [vmem:[#allocation2 + $0x8] sm:$0xf] %vm2840, %v2797
        %2844 = vst.msk [vmem:[#allocation2 + $0xc] sm:$0xf] %vm2840, %v2799
        %2845 = vst.msk [vmem:[#allocation2 + $0x10] sm:$0xf] %vm2840, %v2801
        %2846 = vst.msk [vmem:[#allocation2 + $0x14] sm:$0xf] %vm2840, %v2803
        %2847 = vst.msk [vmem:[#allocation2 + $0x18] sm:$0xf] %vm2840, %v2805
        %2848 = vst.msk [vmem:[#allocation2 + $0x1c] sm:$0xf] %vm2840, %v2807
        %2849 = vst.msk [vmem:[#allocation2 + $0x20] sm:$0xf] %vm2840, %v2809
        %2850 = vst.msk [vmem:[#allocation2 + $0x24] sm:$0xf] %vm2840, %v2811
        %2851 = vst.msk [vmem:[#allocation2 + $0x28] sm:$0xf] %vm2840, %v2813
        %2852 = vst.msk [vmem:[#allocation2 + $0x2c] sm:$0xf] %vm2840, %v2815
        %2853 = vst.msk [vmem:[#allocation2 + $0x30] sm:$0xf] %vm2840, %v2817
        %2854 = vst.msk [vmem:[#allocation2 + $0x34] sm:$0xf] %vm2840, %v2819
        %2855 = vst.msk [vmem:[#allocation2 + $0x38] sm:$0xf] %vm2840, %v2821
        %2856 = vst.msk [vmem:[#allocation2 + $0x3c] sm:$0xf] %vm2840, %v2823
        %s2857 = scalar_lea.vmem [#allocation8], 32
        %v2858 = vld [vmem:[%s2857] sm:$0xff]
        %v2859 = vld [vmem:[%s2857 + $0x8] sm:$0xff]
        %2860 = vrot.lane.b32.xlu0 %v729, 64
        %v2861 = vpop.permute.xlu0 %2860
        %2862 = vrot.lane.b32.xlu0 %v730, 64
        %v2863 = vpop.permute.xlu0 %2862
        %v2865 = vsel %vm754, %v2861, 0
        %v2868 = vsel %vm754, %v2863, 0
        %2870 = vmatprep.subr.bf16.mxu0 0
        %2871 = vmatpush1.bf16.xpose.msra.mxu0 0
        %2872 = vmatprep.subr.bf16.mxu0 0
        %2873 = vmatpush1.bf16.xpose.msra.mxu0 0
        %2874 = vmatprep.subr.bf16.mxu0 0
        %2875 = vmatpush1.bf16.xpose.msra.mxu0 0
        %2876 = vmatprep.subr.bf16.mxu0 0
        %2877 = vmatpush1.bf16.xpose.msra.mxu0 0
        %2878 = vmatprep.subr.bf16.mxu0 0
        %2879 = vmatpush1.bf16.xpose.msra.mxu0 0
        %2880 = vmatprep.subr.bf16.mxu0 0
        %2881 = vmatpush1.bf16.xpose.msra.mxu0 0
        %2882 = vmatprep.subr.bf16.mxu0 0
        %2883 = vmatpush1.bf16.xpose.msra.mxu0 0
        %2884 = vmatprep.subr.bf16.mxu0 0
        %2885 = vmatpush1.bf16.xpose.msra.mxu0 %v2868
        %2886 = vmatprep.subr.bf16.mxu0 0
        %2887 = vmatpush2.bf16.xpose.msra.mxu0 0
        %2888 = vmatprep.subr.bf16.mxu0 0
        %2889 = vmatpush2.bf16.xpose.msra.mxu0 0
        %2890 = vmatprep.subr.bf16.mxu0 0
        %2891 = vmatpush2.bf16.xpose.msra.mxu0 0
        %2892 = vmatprep.subr.bf16.mxu0 0
        %2893 = vmatpush2.bf16.xpose.msra.mxu0 0
        %2894 = vmatprep.subr.bf16.mxu0 0
        %2895 = vmatpush2.bf16.xpose.msra.mxu0 0
        %2896 = vmatprep.subr.bf16.mxu0 0
        %2897 = vmatpush2.bf16.xpose.msra.mxu0 0
        %2898 = vmatprep.subr.bf16.mxu0 0
        %2899 = vmatpush2.bf16.xpose.msra.mxu0 0
        %2900 = vmatprep.subr.bf16.mxu0 0
        %2901 = vmatpush2.bf16.xpose.msra.mxu0 0
        %2902 = vmatprep.mubr.bf16.mxu0 0
        %2903 = vmatmul.mubr.bf16.gmra.mxu0 %v2865
        %v2904 = vpop.f32.mrf.mxu0
        %v2905 = vadd.f32 %v2858, %v2904
        %v2906 = vpop.f32.mrf.mxu0
        %v2907 = vpop.f32.mrf.mxu0
        %v2908 = vadd.f32 %v2859, %v2907
        %v2909 = vpop.f32.mrf.mxu0
        %2910 = vdwg.mxu0
        %2911 = vrot.lane.b32.xlu0 %v732, 64
        %v2912 = vpop.permute.xlu0 %2911
        %2913 = vrot.lane.b32.xlu0 %v733, 64
        %v2914 = vpop.permute.xlu0 %2913
        %v2916 = vsel %vm754, %v2912, 0
        %v2919 = vsel %vm754, %v2914, 0
        %2921 = vmatprep.subr.bf16.mxu0 0
        %2922 = vmatpush1.bf16.xpose.msra.mxu0 0
        %2923 = vmatprep.subr.bf16.mxu0 0
        %2924 = vmatpush1.bf16.xpose.msra.mxu0 0
        %2925 = vmatprep.subr.bf16.mxu0 0
        %2926 = vmatpush1.bf16.xpose.msra.mxu0 0
        %2927 = vmatprep.subr.bf16.mxu0 0
        %2928 = vmatpush1.bf16.xpose.msra.mxu0 0
        %2929 = vmatprep.subr.bf16.mxu0 0
        %2930 = vmatpush1.bf16.xpose.msra.mxu0 0
        %2931 = vmatprep.subr.bf16.mxu0 0
        %2932 = vmatpush1.bf16.xpose.msra.mxu0 0
        %2933 = vmatprep.subr.bf16.mxu0 0
        %2934 = vmatpush1.bf16.xpose.msra.mxu0 0
        %2935 = vmatprep.subr.bf16.mxu0 0
        %2936 = vmatpush1.bf16.xpose.msra.mxu0 %v2919
        %2937 = vmatprep.subr.bf16.mxu0 0
        %2938 = vmatpush2.bf16.xpose.msra.mxu0 0
        %2939 = vmatprep.subr.bf16.mxu0 0
        %2940 = vmatpush2.bf16.xpose.msra.mxu0 0
        %2941 = vmatprep.subr.bf16.mxu0 0
        %2942 = vmatpush2.bf16.xpose.msra.mxu0 0
        %2943 = vmatprep.subr.bf16.mxu0 0
        %2944 = vmatpush2.bf16.xpose.msra.mxu0 0
        %2945 = vmatprep.subr.bf16.mxu0 0
        %2946 = vmatpush2.bf16.xpose.msra.mxu0 0
        %2947 = vmatprep.subr.bf16.mxu0 0
        %2948 = vmatpush2.bf16.xpose.msra.mxu0 0
        %2949 = vmatprep.subr.bf16.mxu0 0
        %2950 = vmatpush2.bf16.xpose.msra.mxu0 0
        %2951 = vmatprep.subr.bf16.mxu0 0
        %2952 = vmatpush2.bf16.xpose.msra.mxu0 0
        %2953 = vmatprep.mubr.bf16.mxu0 0
        %2954 = vmatmul.mubr.bf16.gmra.mxu0 %v2916
        %v2955 = vpop.f32.mrf.mxu0
        %v2956 = vadd.f32 %v2858, %v2955
        %v2957 = vpop.f32.mrf.mxu0
        %v2958 = vpop.f32.mrf.mxu0
        %v2959 = vadd.f32 %v2859, %v2958
        %v2960 = vpop.f32.mrf.mxu0
        %2961 = vdwg.mxu0
        %2962 = vrot.lane.b32.xlu0 %v735, 64
        %v2963 = vpop.permute.xlu0 %2962
        %2964 = vrot.lane.b32.xlu0 %v736, 64
        %v2965 = vpop.permute.xlu0 %2964
        %v2967 = vsel %vm754, %v2963, 0
        %v2970 = vsel %vm754, %v2965, 0
        %2972 = vmatprep.subr.bf16.mxu0 0
        %2973 = vmatpush1.bf16.xpose.msra.mxu0 0
        %2974 = vmatprep.subr.bf16.mxu0 0
        %2975 = vmatpush1.bf16.xpose.msra.mxu0 0
        %2976 = vmatprep.subr.bf16.mxu0 0
        %2977 = vmatpush1.bf16.xpose.msra.mxu0 0
        %2978 = vmatprep.subr.bf16.mxu0 0
        %2979 = vmatpush1.bf16.xpose.msra.mxu0 0
        %2980 = vmatprep.subr.bf16.mxu0 0
        %2981 = vmatpush1.bf16.xpose.msra.mxu0 0
        %2982 = vmatprep.subr.bf16.mxu0 0
        %2983 = vmatpush1.bf16.xpose.msra.mxu0 0
        %2984 = vmatprep.subr.bf16.mxu0 0
        %2985 = vmatpush1.bf16.xpose.msra.mxu0 0
        %2986 = vmatprep.subr.bf16.mxu0 0
        %2987 = vmatpush1.bf16.xpose.msra.mxu0 %v2970
        %2988 = vmatprep.subr.bf16.mxu0 0
        %2989 = vmatpush2.bf16.xpose.msra.mxu0 0
        %2990 = vmatprep.subr.bf16.mxu0 0
        %2991 = vmatpush2.bf16.xpose.msra.mxu0 0
        %2992 = vmatprep.subr.bf16.mxu0 0
        %2993 = vmatpush2.bf16.xpose.msra.mxu0 0
        %2994 = vmatprep.subr.bf16.mxu0 0
        %2995 = vmatpush2.bf16.xpose.msra.mxu0 0
        %2996 = vmatprep.subr.bf16.mxu0 0
        %2997 = vmatpush2.bf16.xpose.msra.mxu0 0
        %2998 = vmatprep.subr.bf16.mxu0 0
        %2999 = vmatpush2.bf16.xpose.msra.mxu0 0
        %3000 = vmatprep.subr.bf16.mxu0 0
        %3001 = vmatpush2.bf16.xpose.msra.mxu0 0
        %3002 = vmatprep.subr.bf16.mxu0 0
        %3003 = vmatpush2.bf16.xpose.msra.mxu0 0
        %3004 = vmatprep.mubr.bf16.mxu0 0
        %3005 = vmatmul.mubr.bf16.gmra.mxu0 %v2967
        %v3006 = vpop.f32.mrf.mxu0
        %v3007 = vadd.f32 %v2858, %v3006
        %v3008 = vpop.f32.mrf.mxu0
        %v3009 = vpop.f32.mrf.mxu0
        %v3010 = vadd.f32 %v2859, %v3009
        %v3011 = vpop.f32.mrf.mxu0
        %3012 = vdwg.mxu0
        %3013 = vrot.lane.b32.xlu0 %v738, 64
        %v3014 = vpop.permute.xlu0 %3013
        %3015 = vrot.lane.b32.xlu0 %v739, 64
        %v3016 = vpop.permute.xlu0 %3015
        %v3018 = vsel %vm754, %v3014, 0
        %v3021 = vsel %vm754, %v3016, 0
        %3023 = vmatprep.subr.bf16.mxu0 0
        %3024 = vmatpush1.bf16.xpose.msra.mxu0 0
        %3025 = vmatprep.subr.bf16.mxu0 0
        %3026 = vmatpush1.bf16.xpose.msra.mxu0 0
        %3027 = vmatprep.subr.bf16.mxu0 0
        %3028 = vmatpush1.bf16.xpose.msra.mxu0 0
        %3029 = vmatprep.subr.bf16.mxu0 0
        %3030 = vmatpush1.bf16.xpose.msra.mxu0 0
        %3031 = vmatprep.subr.bf16.mxu0 0
        %3032 = vmatpush1.bf16.xpose.msra.mxu0 0
        %3033 = vmatprep.subr.bf16.mxu0 0
        %3034 = vmatpush1.bf16.xpose.msra.mxu0 0
        %3035 = vmatprep.subr.bf16.mxu0 0
        %3036 = vmatpush1.bf16.xpose.msra.mxu0 0
        %3037 = vmatprep.subr.bf16.mxu0 0
        %3038 = vmatpush1.bf16.xpose.msra.mxu0 %v3021
        %3039 = vmatprep.subr.bf16.mxu0 0
        %3040 = vmatpush2.bf16.xpose.msra.mxu0 0
        %3041 = vmatprep.subr.bf16.mxu0 0
        %3042 = vmatpush2.bf16.xpose.msra.mxu0 0
        %3043 = vmatprep.subr.bf16.mxu0 0
        %3044 = vmatpush2.bf16.xpose.msra.mxu0 0
        %3045 = vmatprep.subr.bf16.mxu0 0
        %3046 = vmatpush2.bf16.xpose.msra.mxu0 0
        %3047 = vmatprep.subr.bf16.mxu0 0
        %3048 = vmatpush2.bf16.xpose.msra.mxu0 0
        %3049 = vmatprep.subr.bf16.mxu0 0
        %3050 = vmatpush2.bf16.xpose.msra.mxu0 0
        %3051 = vmatprep.subr.bf16.mxu0 0
        %3052 = vmatpush2.bf16.xpose.msra.mxu0 0
        %3053 = vmatprep.subr.bf16.mxu0 0
        %3054 = vmatpush2.bf16.xpose.msra.mxu0 0
        %3055 = vmatprep.mubr.bf16.mxu0 0
        %3056 = vmatmul.mubr.bf16.gmra.mxu0 %v3018
        %v3057 = vpop.f32.mrf.mxu0
        %v3058 = vadd.f32 %v2858, %v3057
        %v3059 = vpop.f32.mrf.mxu0
        %v3060 = vpop.f32.mrf.mxu0
        %v3061 = vadd.f32 %v2859, %v3060
        %v3062 = vpop.f32.mrf.mxu0
        %3063 = vdwg.mxu0
        %3064 = vrot.lane.b32.xlu0 %v741, 64
        %v3065 = vpop.permute.xlu0 %3064
        %3066 = vrot.lane.b32.xlu0 %v742, 64
        %v3067 = vpop.permute.xlu0 %3066
        %v3069 = vsel %vm754, %v3065, 0
        %v3072 = vsel %vm754, %v3067, 0
        %3074 = vmatprep.subr.bf16.mxu0 0
        %3075 = vmatpush1.bf16.xpose.msra.mxu0 0
        %3076 = vmatprep.subr.bf16.mxu0 0
        %3077 = vmatpush1.bf16.xpose.msra.mxu0 0
        %3078 = vmatprep.subr.bf16.mxu0 0
        %3079 = vmatpush1.bf16.xpose.msra.mxu0 0
        %3080 = vmatprep.subr.bf16.mxu0 0
        %3081 = vmatpush1.bf16.xpose.msra.mxu0 0
        %3082 = vmatprep.subr.bf16.mxu0 0
        %3083 = vmatpush1.bf16.xpose.msra.mxu0 0
        %3084 = vmatprep.subr.bf16.mxu0 0
        %3085 = vmatpush1.bf16.xpose.msra.mxu0 0
        %3086 = vmatprep.subr.bf16.mxu0 0
        %3087 = vmatpush1.bf16.xpose.msra.mxu0 0
        %3088 = vmatprep.subr.bf16.mxu0 0
        %3089 = vmatpush1.bf16.xpose.msra.mxu0 %v3072
        %3090 = vmatprep.subr.bf16.mxu0 0
        %3091 = vmatpush2.bf16.xpose.msra.mxu0 0
        %3092 = vmatprep.subr.bf16.mxu0 0
        %3093 = vmatpush2.bf16.xpose.msra.mxu0 0
        %3094 = vmatprep.subr.bf16.mxu0 0
        %3095 = vmatpush2.bf16.xpose.msra.mxu0 0
        %3096 = vmatprep.subr.bf16.mxu0 0
        %3097 = vmatpush2.bf16.xpose.msra.mxu0 0
        %3098 = vmatprep.subr.bf16.mxu0 0
        %3099 = vmatpush2.bf16.xpose.msra.mxu0 0
        %3100 = vmatprep.subr.bf16.mxu0 0
        %3101 = vmatpush2.bf16.xpose.msra.mxu0 0
        %3102 = vmatprep.subr.bf16.mxu0 0
        %3103 = vmatpush2.bf16.xpose.msra.mxu0 0
        %3104 = vmatprep.subr.bf16.mxu0 0
        %3105 = vmatpush2.bf16.xpose.msra.mxu0 0
        %3106 = vmatprep.mubr.bf16.mxu0 0
        %3107 = vmatmul.mubr.bf16.gmra.mxu0 %v3069
        %v3108 = vpop.f32.mrf.mxu0
        %v3109 = vadd.f32 %v2858, %v3108
        %v3110 = vpop.f32.mrf.mxu0
        %v3111 = vpop.f32.mrf.mxu0
        %v3112 = vadd.f32 %v2859, %v3111
        %v3113 = vpop.f32.mrf.mxu0
        %3114 = vdwg.mxu0
        %3115 = vrot.lane.b32.xlu0 %v744, 64
        %v3116 = vpop.permute.xlu0 %3115
        %3117 = vrot.lane.b32.xlu0 %v745, 64
        %v3118 = vpop.permute.xlu0 %3117
        %v3120 = vsel %vm754, %v3116, 0
        %v3123 = vsel %vm754, %v3118, 0
        %3125 = vmatprep.subr.bf16.mxu0 0
        %3126 = vmatpush1.bf16.xpose.msra.mxu0 0
        %3127 = vmatprep.subr.bf16.mxu0 0
        %3128 = vmatpush1.bf16.xpose.msra.mxu0 0
        %3129 = vmatprep.subr.bf16.mxu0 0
        %3130 = vmatpush1.bf16.xpose.msra.mxu0 0
        %3131 = vmatprep.subr.bf16.mxu0 0
        %3132 = vmatpush1.bf16.xpose.msra.mxu0 0
        %3133 = vmatprep.subr.bf16.mxu0 0
        %3134 = vmatpush1.bf16.xpose.msra.mxu0 0
        %3135 = vmatprep.subr.bf16.mxu0 0
        %3136 = vmatpush1.bf16.xpose.msra.mxu0 0
        %3137 = vmatprep.subr.bf16.mxu0 0
        %3138 = vmatpush1.bf16.xpose.msra.mxu0 0
        %3139 = vmatprep.subr.bf16.mxu0 0
        %3140 = vmatpush1.bf16.xpose.msra.mxu0 %v3123
        %3141 = vmatprep.subr.bf16.mxu0 0
        %3142 = vmatpush2.bf16.xpose.msra.mxu0 0
        %3143 = vmatprep.subr.bf16.mxu0 0
        %3144 = vmatpush2.bf16.xpose.msra.mxu0 0
        %3145 = vmatprep.subr.bf16.mxu0 0
        %3146 = vmatpush2.bf16.xpose.msra.mxu0 0
        %3147 = vmatprep.subr.bf16.mxu0 0
        %3148 = vmatpush2.bf16.xpose.msra.mxu0 0
        %3149 = vmatprep.subr.bf16.mxu0 0
        %3150 = vmatpush2.bf16.xpose.msra.mxu0 0
        %3151 = vmatprep.subr.bf16.mxu0 0
        %3152 = vmatpush2.bf16.xpose.msra.mxu0 0
        %3153 = vmatprep.subr.bf16.mxu0 0
        %3154 = vmatpush2.bf16.xpose.msra.mxu0 0
        %3155 = vmatprep.subr.bf16.mxu0 0
        %3156 = vmatpush2.bf16.xpose.msra.mxu0 0
        %3157 = vmatprep.mubr.bf16.mxu0 0
        %3158 = vmatmul.mubr.bf16.gmra.mxu0 %v3120
        %v3159 = vpop.f32.mrf.mxu0
        %v3160 = vadd.f32 %v2858, %v3159
        %v3161 = vpop.f32.mrf.mxu0
        %v3162 = vpop.f32.mrf.mxu0
        %v3163 = vadd.f32 %v2859, %v3162
        %v3164 = vpop.f32.mrf.mxu0
        %3165 = vdwg.mxu0
        %3166 = vrot.lane.b32.xlu0 %v747, 64
        %v3167 = vpop.permute.xlu0 %3166
        %3168 = vrot.lane.b32.xlu0 %v748, 64
        %v3169 = vpop.permute.xlu0 %3168
        %v3171 = vsel %vm754, %v3167, 0
        %v3174 = vsel %vm754, %v3169, 0
        %3176 = vmatprep.subr.bf16.mxu0 0
        %3177 = vmatpush1.bf16.xpose.msra.mxu0 0
        %3178 = vmatprep.subr.bf16.mxu0 0
        %3179 = vmatpush1.bf16.xpose.msra.mxu0 0
        %3180 = vmatprep.subr.bf16.mxu0 0
        %3181 = vmatpush1.bf16.xpose.msra.mxu0 0
        %3182 = vmatprep.subr.bf16.mxu0 0
        %3183 = vmatpush1.bf16.xpose.msra.mxu0 0
        %3184 = vmatprep.subr.bf16.mxu0 0
        %3185 = vmatpush1.bf16.xpose.msra.mxu0 0
        %3186 = vmatprep.subr.bf16.mxu0 0
        %3187 = vmatpush1.bf16.xpose.msra.mxu0 0
        %3188 = vmatprep.subr.bf16.mxu0 0
        %3189 = vmatpush1.bf16.xpose.msra.mxu0 0
        %3190 = vmatprep.subr.bf16.mxu0 0
        %3191 = vmatpush1.bf16.xpose.msra.mxu0 %v3174
        %3192 = vmatprep.subr.bf16.mxu0 0
        %3193 = vmatpush2.bf16.xpose.msra.mxu0 0
        %3194 = vmatprep.subr.bf16.mxu0 0
        %3195 = vmatpush2.bf16.xpose.msra.mxu0 0
        %3196 = vmatprep.subr.bf16.mxu0 0
        %3197 = vmatpush2.bf16.xpose.msra.mxu0 0
        %3198 = vmatprep.subr.bf16.mxu0 0
        %3199 = vmatpush2.bf16.xpose.msra.mxu0 0
        %3200 = vmatprep.subr.bf16.mxu0 0
        %3201 = vmatpush2.bf16.xpose.msra.mxu0 0
        %3202 = vmatprep.subr.bf16.mxu0 0
        %3203 = vmatpush2.bf16.xpose.msra.mxu0 0
        %3204 = vmatprep.subr.bf16.mxu0 0
        %3205 = vmatpush2.bf16.xpose.msra.mxu0 0
        %3206 = vmatprep.subr.bf16.mxu0 0
        %3207 = vmatpush2.bf16.xpose.msra.mxu0 0
        %3208 = vmatprep.mubr.bf16.mxu0 0
        %3209 = vmatmul.mubr.bf16.gmra.mxu0 %v3171
        %v3210 = vpop.f32.mrf.mxu0
        %v3211 = vadd.f32 %v2858, %v3210
        %v3212 = vpop.f32.mrf.mxu0
        %v3213 = vpop.f32.mrf.mxu0
        %v3214 = vadd.f32 %v2859, %v3213
        %v3215 = vpop.f32.mrf.mxu0
        %3216 = vdwg.mxu0
        %3217 = vrot.lane.b32.xlu0 %v750, 64
        %v3218 = vpop.permute.xlu0 %3217
        %3219 = vrot.lane.b32.xlu0 %v751, 64
        %v3220 = vpop.permute.xlu0 %3219
        %v3222 = vsel %vm754, %v3218, 0
        %v3225 = vsel %vm754, %v3220, 0
        %3227 = vmatprep.subr.bf16.mxu0 0
        %3228 = vmatpush1.bf16.xpose.msra.mxu0 0
        %3229 = vmatprep.subr.bf16.mxu0 0
        %3230 = vmatpush1.bf16.xpose.msra.mxu0 0
        %3231 = vmatprep.subr.bf16.mxu0 0
        %3232 = vmatpush1.bf16.xpose.msra.mxu0 0
        %3233 = vmatprep.subr.bf16.mxu0 0
        %3234 = vmatpush1.bf16.xpose.msra.mxu0 0
        %3235 = vmatprep.subr.bf16.mxu0 0
        %3236 = vmatpush1.bf16.xpose.msra.mxu0 0
        %3237 = vmatprep.subr.bf16.mxu0 0
        %3238 = vmatpush1.bf16.xpose.msra.mxu0 0
        %3239 = vmatprep.subr.bf16.mxu0 0
        %3240 = vmatpush1.bf16.xpose.msra.mxu0 0
        %3241 = vmatprep.subr.bf16.mxu0 0
        %3242 = vmatpush1.bf16.xpose.msra.mxu0 %v3225
        %3243 = vmatprep.subr.bf16.mxu0 0
        %3244 = vmatpush2.bf16.xpose.msra.mxu0 0
        %3245 = vmatprep.subr.bf16.mxu0 0
        %3246 = vmatpush2.bf16.xpose.msra.mxu0 0
        %3247 = vmatprep.subr.bf16.mxu0 0
        %3248 = vmatpush2.bf16.xpose.msra.mxu0 0
        %3249 = vmatprep.subr.bf16.mxu0 0
        %3250 = vmatpush2.bf16.xpose.msra.mxu0 0
        %3251 = vmatprep.subr.bf16.mxu0 0
        %3252 = vmatpush2.bf16.xpose.msra.mxu0 0
        %3253 = vmatprep.subr.bf16.mxu0 0
        %3254 = vmatpush2.bf16.xpose.msra.mxu0 0
        %3255 = vmatprep.subr.bf16.mxu0 0
        %3256 = vmatpush2.bf16.xpose.msra.mxu0 0
        %3257 = vmatprep.subr.bf16.mxu0 0
        %3258 = vmatpush2.bf16.xpose.msra.mxu0 0
        %3259 = vmatprep.mubr.bf16.mxu0 0
        %3260 = vmatmul.mubr.bf16.gmra.mxu0 %v3222
        %v3261 = vpop.f32.mrf.mxu0
        %v3262 = vadd.f32 %v2858, %v3261
        %v3263 = vpop.f32.mrf.mxu0
        %v3264 = vpop.f32.mrf.mxu0
        %v3265 = vadd.f32 %v2859, %v3264
        %v3266 = vpop.f32.mrf.mxu0
        %3267 = vdwg.mxu0
        %v3268 = vsel %vm1131, %v2905, -inf
        %3269 = vmax.xlane.f32.xlu0 %v3268
        %v3270 = vpop.xlane.xlu0 %3269
        %v3271 = vsel %vm1131, %v2908, -inf
        %3272 = vmax.xlane.f32.xlu0 %v3271
        %v3273 = vpop.xlane.xlu0 %3272
        %v3274 = vsel %vm1131, %v2956, -inf
        %3275 = vmax.xlane.f32.xlu0 %v3274
        %v3276 = vpop.xlane.xlu0 %3275
        %v3277 = vsel %vm1131, %v2959, -inf
        %3278 = vmax.xlane.f32.xlu0 %v3277
        %v3279 = vpop.xlane.xlu0 %3278
        %v3280 = vsel %vm1131, %v3007, -inf
        %3281 = vmax.xlane.f32.xlu0 %v3280
        %v3282 = vpop.xlane.xlu0 %3281
        %v3283 = vsel %vm1131, %v3010, -inf
        %3284 = vmax.xlane.f32.xlu0 %v3283
        %v3285 = vpop.xlane.xlu0 %3284
        %v3286 = vsel %vm1131, %v3058, -inf
        %3287 = vmax.xlane.f32.xlu0 %v3286
        %v3288 = vpop.xlane.xlu0 %3287
        %v3289 = vsel %vm1131, %v3061, -inf
        %3290 = vmax.xlane.f32.xlu0 %v3289
        %v3291 = vpop.xlane.xlu0 %3290
        %v3292 = vsel %vm1131, %v3109, -inf
        %3293 = vmax.xlane.f32.xlu0 %v3292
        %v3294 = vpop.xlane.xlu0 %3293
        %v3295 = vsel %vm1131, %v3112, -inf
        %3296 = vmax.xlane.f32.xlu0 %v3295
        %v3297 = vpop.xlane.xlu0 %3296
        %v3298 = vsel %vm1131, %v3160, -inf
        %3299 = vmax.xlane.f32.xlu0 %v3298
        %v3300 = vpop.xlane.xlu0 %3299
        %v3301 = vsel %vm1131, %v3163, -inf
        %3302 = vmax.xlane.f32.xlu0 %v3301
        %v3303 = vpop.xlane.xlu0 %3302
        %v3304 = vsel %vm1131, %v3211, -inf
        %3305 = vmax.xlane.f32.xlu0 %v3304
        %v3306 = vpop.xlane.xlu0 %3305
        %v3307 = vsel %vm1131, %v3214, -inf
        %3308 = vmax.xlane.f32.xlu0 %v3307
        %v3309 = vpop.xlane.xlu0 %3308
        %v3310 = vsel %vm1131, %v3262, -inf
        %3311 = vmax.xlane.f32.xlu0 %v3310
        %v3312 = vpop.xlane.xlu0 %3311
        %v3313 = vsel %vm1131, %v3265, -inf
        %3314 = vmax.xlane.f32.xlu0 %v3313
        %v3315 = vpop.xlane.xlu0 %3314
        %v3316 = vsub.f32 %v2905, %v3270
        %v3317 = vsub.f32 %v2908, %v3273
        %v3318 = vsub.f32 %v2956, %v3276
        %v3319 = vsub.f32 %v2959, %v3279
        %v3320 = vsub.f32 %v3007, %v3282
        %v3321 = vsub.f32 %v3010, %v3285
        %v3322 = vsub.f32 %v3058, %v3288
        %v3323 = vsub.f32 %v3061, %v3291
        %v3324 = vsub.f32 %v3109, %v3294
        %v3325 = vsub.f32 %v3112, %v3297
        %v3326 = vsub.f32 %v3160, %v3300
        %v3327 = vsub.f32 %v3163, %v3303
        %v3328 = vsub.f32 %v3211, %v3306
        %v3329 = vsub.f32 %v3214, %v3309
        %v3330 = vsub.f32 %v3262, %v3312
        %v3331 = vsub.f32 %v3265, %v3315
        %v3332 = vmul.f32 %v3316, 1.442695
        %v3333 = vpow.pop %v3332
        %v3334 = vmul.f32 %v3317, 1.442695
        %v3335 = vpow.pop %v3334
        %v3336 = vmul.f32 %v3318, 1.442695
        %v3337 = vpow.pop %v3336
        %v3338 = vmul.f32 %v3319, 1.442695
        %v3339 = vpow.pop %v3338
        %v3340 = vmul.f32 %v3320, 1.442695
        %v3341 = vpow.pop %v3340
        %v3342 = vmul.f32 %v3321, 1.442695
        %v3343 = vpow.pop %v3342
        %v3344 = vmul.f32 %v3322, 1.442695
        %v3345 = vpow.pop %v3344
        %v3346 = vmul.f32 %v3323, 1.442695
        %v3347 = vpow.pop %v3346
        %v3348 = vmul.f32 %v3324, 1.442695
        %v3349 = vpow.pop %v3348
        %v3350 = vmul.f32 %v3325, 1.442695
        %v3351 = vpow.pop %v3350
        %v3352 = vmul.f32 %v3326, 1.442695
        %v3353 = vpow.pop %v3352
        %v3354 = vmul.f32 %v3327, 1.442695
        %v3355 = vpow.pop %v3354
        %v3356 = vmul.f32 %v3328, 1.442695
        %v3357 = vpow.pop %v3356
        %v3358 = vmul.f32 %v3329, 1.442695
        %v3359 = vpow.pop %v3358
        %v3360 = vmul.f32 %v3330, 1.442695
        %v3361 = vpow.pop %v3360
        %v3362 = vmul.f32 %v3331, 1.442695
        %v3363 = vpow.pop %v3362
        %v3364 = vsel %vm1131, %v3333, 0.0
        %3365 = vadd.xlane.f32.xlu0 %v3364
        %v3366 = vpop.xlane.xlu0 %3365
        %v3367 = vsel %vm1131, %v3335, 0.0
        %3368 = vadd.xlane.f32.xlu0 %v3367
        %v3369 = vpop.xlane.xlu0 %3368
        %v3370 = vsel %vm1131, %v3337, 0.0
        %3371 = vadd.xlane.f32.xlu0 %v3370
        %v3372 = vpop.xlane.xlu0 %3371
        %v3373 = vsel %vm1131, %v3339, 0.0
        %3374 = vadd.xlane.f32.xlu0 %v3373
        %v3375 = vpop.xlane.xlu0 %3374
        %v3376 = vsel %vm1131, %v3341, 0.0
        %3377 = vadd.xlane.f32.xlu0 %v3376
        %v3378 = vpop.xlane.xlu0 %3377
        %v3379 = vsel %vm1131, %v3343, 0.0
        %3380 = vadd.xlane.f32.xlu0 %v3379
        %v3381 = vpop.xlane.xlu0 %3380
        %v3382 = vsel %vm1131, %v3345, 0.0
        %3383 = vadd.xlane.f32.xlu0 %v3382
        %v3384 = vpop.xlane.xlu0 %3383
        %v3385 = vsel %vm1131, %v3347, 0.0
        %3386 = vadd.xlane.f32.xlu0 %v3385
        %v3387 = vpop.xlane.xlu0 %3386
        %v3388 = vsel %vm1131, %v3349, 0.0
        %3389 = vadd.xlane.f32.xlu0 %v3388
        %v3390 = vpop.xlane.xlu0 %3389
        %v3391 = vsel %vm1131, %v3351, 0.0
        %3392 = vadd.xlane.f32.xlu0 %v3391
        %v3393 = vpop.xlane.xlu0 %3392
        %v3394 = vsel %vm1131, %v3353, 0.0
        %3395 = vadd.xlane.f32.xlu0 %v3394
        %v3396 = vpop.xlane.xlu0 %3395
        %v3397 = vsel %vm1131, %v3355, 0.0
        %3398 = vadd.xlane.f32.xlu0 %v3397
        %v3399 = vpop.xlane.xlu0 %3398
        %v3400 = vsel %vm1131, %v3357, 0.0
        %3401 = vadd.xlane.f32.xlu0 %v3400
        %v3402 = vpop.xlane.xlu0 %3401
        %v3403 = vsel %vm1131, %v3359, 0.0
        %3404 = vadd.xlane.f32.xlu0 %v3403
        %v3405 = vpop.xlane.xlu0 %3404
        %v3406 = vsel %vm1131, %v3361, 0.0
        %3407 = vadd.xlane.f32.xlu0 %v3406
        %v3408 = vpop.xlane.xlu0 %3407
        %v3409 = vsel %vm1131, %v3363, 0.0
        %3410 = vadd.xlane.f32.xlu0 %v3409
        %v3411 = vpop.xlane.xlu0 %3410
        %v3412 = vrcp.pop %v3366
        %v3413 = vrcp.pop %v3369
        %v3414 = vrcp.pop %v3372
        %v3415 = vrcp.pop %v3375
        %v3416 = vrcp.pop %v3378
        %v3417 = vrcp.pop %v3381
        %v3418 = vrcp.pop %v3384
        %v3419 = vrcp.pop %v3387
        %v3420 = vrcp.pop %v3390
        %v3421 = vrcp.pop %v3393
        %v3422 = vrcp.pop %v3396
        %v3423 = vrcp.pop %v3399
        %v3424 = vrcp.pop %v3402
        %v3425 = vrcp.pop %v3405
        %v3426 = vrcp.pop %v3408
        %v3427 = vrcp.pop %v3411
        %v3428 = vmul.f32 %v3333, %v3412
        %v3429 = vmul.f32 %v3335, %v3413
        %v3430 = vmul.f32 %v3337, %v3414
        %v3431 = vmul.f32 %v3339, %v3415
        %v3432 = vmul.f32 %v3341, %v3416
        %v3433 = vmul.f32 %v3343, %v3417
        %v3434 = vmul.f32 %v3345, %v3418
        %v3435 = vmul.f32 %v3347, %v3419
        %v3436 = vmul.f32 %v3349, %v3420
        %v3437 = vmul.f32 %v3351, %v3421
        %v3438 = vmul.f32 %v3353, %v3422
        %v3439 = vmul.f32 %v3355, %v3423
        %v3440 = vmul.f32 %v3357, %v3424
        %v3441 = vmul.f32 %v3359, %v3425
        %v3442 = vmul.f32 %v3361, %v3426
        %v3443 = vmul.f32 %v3363, %v3427
        %v3444 = vpack.c.bf16 %v3429, %v3428
        %v3445 = vpack.c.bf16 %v3431, %v3430
        %v3446 = vpack.c.bf16 %v3433, %v3432
        %v3447 = vpack.c.bf16 %v3435, %v3434
        %v3448 = vpack.c.bf16 %v3437, %v3436
        %v3449 = vpack.c.bf16 %v3439, %v3438
        %v3450 = vpack.c.bf16 %v3441, %v3440
        %v3451 = vpack.c.bf16 %v3443, %v3442
        %3452 = vrot.lane.b32.xlu0 %v728, 64
        %v3453 = vpop.permute.xlu0 %3452
        %v3456 = vsel %vm1131, %v3444, 0
        %3458 = vmatprep.subr.bf16.mxu0 0
        %3459 = vmatpush1.bf16.msra.mxu0 0
        %3460 = vmatprep.subr.bf16.mxu0 0
        %3461 = vmatpush1.bf16.msra.mxu0 0
        %3462 = vmatprep.subr.bf16.mxu0 0
        %3463 = vmatpush1.bf16.msra.mxu0 0
        %3464 = vmatprep.subr.bf16.mxu0 0
        %3465 = vmatpush1.bf16.msra.mxu0 0
        %3466 = vmatprep.subr.bf16.mxu0 0
        %3467 = vmatpush1.bf16.msra.mxu0 0
        %3468 = vmatprep.subr.bf16.mxu0 0
        %3469 = vmatpush1.bf16.msra.mxu0 0
        %3470 = vmatprep.subr.bf16.mxu0 0
        %3471 = vmatpush1.bf16.msra.mxu0 0
        %3472 = vmatprep.subr.bf16.mxu0 0
        %3473 = vmatpush1.bf16.msra.mxu0 %v3453
        %3474 = vmatprep.subr.bf16.mxu0 0
        %3475 = vmatpush2.bf16.msra.mxu0 0
        %3476 = vmatprep.subr.bf16.mxu0 0
        %3477 = vmatpush2.bf16.msra.mxu0 0
        %3478 = vmatprep.subr.bf16.mxu0 0
        %3479 = vmatpush2.bf16.msra.mxu0 0
        %3480 = vmatprep.subr.bf16.mxu0 0
        %3481 = vmatpush2.bf16.msra.mxu0 0
        %3482 = vmatprep.subr.bf16.mxu0 0
        %3483 = vmatpush2.bf16.msra.mxu0 0
        %3484 = vmatprep.subr.bf16.mxu0 0
        %3485 = vmatpush2.bf16.msra.mxu0 0
        %3486 = vmatprep.subr.bf16.mxu0 0
        %3487 = vmatpush2.bf16.msra.mxu0 0
        %3488 = vmatprep.subr.bf16.mxu0 0
        %3489 = vmatpush2.bf16.msra.mxu0 0
        %3490 = vmatprep.mubr.bf16.mxu0 0
        %3491 = vmatmul.mubr.bf16.gmra.mxu0 %v3456
        %v3492 = vpop.f32.mrf.mxu0
        %v3493 = vadd.f32 0.0, %v3492
        %v3494 = vpop.f32.mrf.mxu0
        %v3495 = vpop.f32.mrf.mxu0
        %v3496 = vadd.f32 0.0, %v3495
        %v3497 = vpop.f32.mrf.mxu0
        %3498 = vdwg.mxu0
        %3499 = vrot.lane.b32.xlu0 %v731, 64
        %v3500 = vpop.permute.xlu0 %3499
        %v3503 = vsel %vm1131, %v3445, 0
        %3505 = vmatprep.subr.bf16.mxu0 0
        %3506 = vmatpush1.bf16.msra.mxu0 0
        %3507 = vmatprep.subr.bf16.mxu0 0
        %3508 = vmatpush1.bf16.msra.mxu0 0
        %3509 = vmatprep.subr.bf16.mxu0 0
        %3510 = vmatpush1.bf16.msra.mxu0 0
        %3511 = vmatprep.subr.bf16.mxu0 0
        %3512 = vmatpush1.bf16.msra.mxu0 0
        %3513 = vmatprep.subr.bf16.mxu0 0
        %3514 = vmatpush1.bf16.msra.mxu0 0
        %3515 = vmatprep.subr.bf16.mxu0 0
        %3516 = vmatpush1.bf16.msra.mxu0 0
        %3517 = vmatprep.subr.bf16.mxu0 0
        %3518 = vmatpush1.bf16.msra.mxu0 0
        %3519 = vmatprep.subr.bf16.mxu0 0
        %3520 = vmatpush1.bf16.msra.mxu0 %v3500
        %3521 = vmatprep.subr.bf16.mxu0 0
        %3522 = vmatpush2.bf16.msra.mxu0 0
        %3523 = vmatprep.subr.bf16.mxu0 0
        %3524 = vmatpush2.bf16.msra.mxu0 0
        %3525 = vmatprep.subr.bf16.mxu0 0
        %3526 = vmatpush2.bf16.msra.mxu0 0
        %3527 = vmatprep.subr.bf16.mxu0 0
        %3528 = vmatpush2.bf16.msra.mxu0 0
        %3529 = vmatprep.subr.bf16.mxu0 0
        %3530 = vmatpush2.bf16.msra.mxu0 0
        %3531 = vmatprep.subr.bf16.mxu0 0
        %3532 = vmatpush2.bf16.msra.mxu0 0
        %3533 = vmatprep.subr.bf16.mxu0 0
        %3534 = vmatpush2.bf16.msra.mxu0 0
        %3535 = vmatprep.subr.bf16.mxu0 0
        %3536 = vmatpush2.bf16.msra.mxu0 0
        %3537 = vmatprep.mubr.bf16.mxu0 0
        %3538 = vmatmul.mubr.bf16.gmra.mxu0 %v3503
        %v3539 = vpop.f32.mrf.mxu0
        %v3540 = vadd.f32 0.0, %v3539
        %v3541 = vpop.f32.mrf.mxu0
        %v3542 = vpop.f32.mrf.mxu0
        %v3543 = vadd.f32 0.0, %v3542
        %v3544 = vpop.f32.mrf.mxu0
        %3545 = vdwg.mxu0
        %3546 = vrot.lane.b32.xlu0 %v734, 64
        %v3547 = vpop.permute.xlu0 %3546
        %v3550 = vsel %vm1131, %v3446, 0
        %3552 = vmatprep.subr.bf16.mxu0 0
        %3553 = vmatpush1.bf16.msra.mxu0 0
        %3554 = vmatprep.subr.bf16.mxu0 0
        %3555 = vmatpush1.bf16.msra.mxu0 0
        %3556 = vmatprep.subr.bf16.mxu0 0
        %3557 = vmatpush1.bf16.msra.mxu0 0
        %3558 = vmatprep.subr.bf16.mxu0 0
        %3559 = vmatpush1.bf16.msra.mxu0 0
        %3560 = vmatprep.subr.bf16.mxu0 0
        %3561 = vmatpush1.bf16.msra.mxu0 0
        %3562 = vmatprep.subr.bf16.mxu0 0
        %3563 = vmatpush1.bf16.msra.mxu0 0
        %3564 = vmatprep.subr.bf16.mxu0 0
        %3565 = vmatpush1.bf16.msra.mxu0 0
        %3566 = vmatprep.subr.bf16.mxu0 0
        %3567 = vmatpush1.bf16.msra.mxu0 %v3547
        %3568 = vmatprep.subr.bf16.mxu0 0
        %3569 = vmatpush2.bf16.msra.mxu0 0
        %3570 = vmatprep.subr.bf16.mxu0 0
        %3571 = vmatpush2.bf16.msra.mxu0 0
        %3572 = vmatprep.subr.bf16.mxu0 0
        %3573 = vmatpush2.bf16.msra.mxu0 0
        %3574 = vmatprep.subr.bf16.mxu0 0
        %3575 = vmatpush2.bf16.msra.mxu0 0
        %3576 = vmatprep.subr.bf16.mxu0 0
        %3577 = vmatpush2.bf16.msra.mxu0 0
        %3578 = vmatprep.subr.bf16.mxu0 0
        %3579 = vmatpush2.bf16.msra.mxu0 0
        %3580 = vmatprep.subr.bf16.mxu0 0
        %3581 = vmatpush2.bf16.msra.mxu0 0
        %3582 = vmatprep.subr.bf16.mxu0 0
        %3583 = vmatpush2.bf16.msra.mxu0 0
        %3584 = vmatprep.mubr.bf16.mxu0 0
        %3585 = vmatmul.mubr.bf16.gmra.mxu0 %v3550
        %v3586 = vpop.f32.mrf.mxu0
        %v3587 = vadd.f32 0.0, %v3586
        %v3588 = vpop.f32.mrf.mxu0
        %v3589 = vpop.f32.mrf.mxu0
        %v3590 = vadd.f32 0.0, %v3589
        %v3591 = vpop.f32.mrf.mxu0
        %3592 = vdwg.mxu0
        %3593 = vrot.lane.b32.xlu0 %v737, 64
        %v3594 = vpop.permute.xlu0 %3593
        %v3597 = vsel %vm1131, %v3447, 0
        %3599 = vmatprep.subr.bf16.mxu0 0
        %3600 = vmatpush1.bf16.msra.mxu0 0
        %3601 = vmatprep.subr.bf16.mxu0 0
        %3602 = vmatpush1.bf16.msra.mxu0 0
        %3603 = vmatprep.subr.bf16.mxu0 0
        %3604 = vmatpush1.bf16.msra.mxu0 0
        %3605 = vmatprep.subr.bf16.mxu0 0
        %3606 = vmatpush1.bf16.msra.mxu0 0
        %3607 = vmatprep.subr.bf16.mxu0 0
        %3608 = vmatpush1.bf16.msra.mxu0 0
        %3609 = vmatprep.subr.bf16.mxu0 0
        %3610 = vmatpush1.bf16.msra.mxu0 0
        %3611 = vmatprep.subr.bf16.mxu0 0
        %3612 = vmatpush1.bf16.msra.mxu0 0
        %3613 = vmatprep.subr.bf16.mxu0 0
        %3614 = vmatpush1.bf16.msra.mxu0 %v3594
        %3615 = vmatprep.subr.bf16.mxu0 0
        %3616 = vmatpush2.bf16.msra.mxu0 0
        %3617 = vmatprep.subr.bf16.mxu0 0
        %3618 = vmatpush2.bf16.msra.mxu0 0
        %3619 = vmatprep.subr.bf16.mxu0 0
        %3620 = vmatpush2.bf16.msra.mxu0 0
        %3621 = vmatprep.subr.bf16.mxu0 0
        %3622 = vmatpush2.bf16.msra.mxu0 0
        %3623 = vmatprep.subr.bf16.mxu0 0
        %3624 = vmatpush2.bf16.msra.mxu0 0
        %3625 = vmatprep.subr.bf16.mxu0 0
        %3626 = vmatpush2.bf16.msra.mxu0 0
        %3627 = vmatprep.subr.bf16.mxu0 0
        %3628 = vmatpush2.bf16.msra.mxu0 0
        %3629 = vmatprep.subr.bf16.mxu0 0
        %3630 = vmatpush2.bf16.msra.mxu0 0
        %3631 = vmatprep.mubr.bf16.mxu0 0
        %3632 = vmatmul.mubr.bf16.gmra.mxu0 %v3597
        %v3633 = vpop.f32.mrf.mxu0
        %v3634 = vadd.f32 0.0, %v3633
        %v3635 = vpop.f32.mrf.mxu0
        %v3636 = vpop.f32.mrf.mxu0
        %v3637 = vadd.f32 0.0, %v3636
        %v3638 = vpop.f32.mrf.mxu0
        %3639 = vdwg.mxu0
        %3640 = vrot.lane.b32.xlu0 %v740, 64
        %v3641 = vpop.permute.xlu0 %3640
        %v3644 = vsel %vm1131, %v3448, 0
        %3646 = vmatprep.subr.bf16.mxu0 0
        %3647 = vmatpush1.bf16.msra.mxu0 0
        %3648 = vmatprep.subr.bf16.mxu0 0
        %3649 = vmatpush1.bf16.msra.mxu0 0
        %3650 = vmatprep.subr.bf16.mxu0 0
        %3651 = vmatpush1.bf16.msra.mxu0 0
        %3652 = vmatprep.subr.bf16.mxu0 0
        %3653 = vmatpush1.bf16.msra.mxu0 0
        %3654 = vmatprep.subr.bf16.mxu0 0
        %3655 = vmatpush1.bf16.msra.mxu0 0
        %3656 = vmatprep.subr.bf16.mxu0 0
        %3657 = vmatpush1.bf16.msra.mxu0 0
        %3658 = vmatprep.subr.bf16.mxu0 0
        %3659 = vmatpush1.bf16.msra.mxu0 0
        %3660 = vmatprep.subr.bf16.mxu0 0
        %3661 = vmatpush1.bf16.msra.mxu0 %v3641
        %3662 = vmatprep.subr.bf16.mxu0 0
        %3663 = vmatpush2.bf16.msra.mxu0 0
        %3664 = vmatprep.subr.bf16.mxu0 0
        %3665 = vmatpush2.bf16.msra.mxu0 0
        %3666 = vmatprep.subr.bf16.mxu0 0
        %3667 = vmatpush2.bf16.msra.mxu0 0
        %3668 = vmatprep.subr.bf16.mxu0 0
        %3669 = vmatpush2.bf16.msra.mxu0 0
        %3670 = vmatprep.subr.bf16.mxu0 0
        %3671 = vmatpush2.bf16.msra.mxu0 0
        %3672 = vmatprep.subr.bf16.mxu0 0
        %3673 = vmatpush2.bf16.msra.mxu0 0
        %3674 = vmatprep.subr.bf16.mxu0 0
        %3675 = vmatpush2.bf16.msra.mxu0 0
        %3676 = vmatprep.subr.bf16.mxu0 0
        %3677 = vmatpush2.bf16.msra.mxu0 0
        %3678 = vmatprep.mubr.bf16.mxu0 0
        %3679 = vmatmul.mubr.bf16.gmra.mxu0 %v3644
        %v3680 = vpop.f32.mrf.mxu0
        %v3681 = vadd.f32 0.0, %v3680
        %v3682 = vpop.f32.mrf.mxu0
        %v3683 = vpop.f32.mrf.mxu0
        %v3684 = vadd.f32 0.0, %v3683
        %v3685 = vpop.f32.mrf.mxu0
        %3686 = vdwg.mxu0
        %3687 = vrot.lane.b32.xlu0 %v743, 64
        %v3688 = vpop.permute.xlu0 %3687
        %v3691 = vsel %vm1131, %v3449, 0
        %3693 = vmatprep.subr.bf16.mxu0 0
        %3694 = vmatpush1.bf16.msra.mxu0 0
        %3695 = vmatprep.subr.bf16.mxu0 0
        %3696 = vmatpush1.bf16.msra.mxu0 0
        %3697 = vmatprep.subr.bf16.mxu0 0
        %3698 = vmatpush1.bf16.msra.mxu0 0
        %3699 = vmatprep.subr.bf16.mxu0 0
        %3700 = vmatpush1.bf16.msra.mxu0 0
        %3701 = vmatprep.subr.bf16.mxu0 0
        %3702 = vmatpush1.bf16.msra.mxu0 0
        %3703 = vmatprep.subr.bf16.mxu0 0
        %3704 = vmatpush1.bf16.msra.mxu0 0
        %3705 = vmatprep.subr.bf16.mxu0 0
        %3706 = vmatpush1.bf16.msra.mxu0 0
        %3707 = vmatprep.subr.bf16.mxu0 0
        %3708 = vmatpush1.bf16.msra.mxu0 %v3688
        %3709 = vmatprep.subr.bf16.mxu0 0
        %3710 = vmatpush2.bf16.msra.mxu0 0
        %3711 = vmatprep.subr.bf16.mxu0 0
        %3712 = vmatpush2.bf16.msra.mxu0 0
        %3713 = vmatprep.subr.bf16.mxu0 0
        %3714 = vmatpush2.bf16.msra.mxu0 0
        %3715 = vmatprep.subr.bf16.mxu0 0
        %3716 = vmatpush2.bf16.msra.mxu0 0
        %3717 = vmatprep.subr.bf16.mxu0 0
        %3718 = vmatpush2.bf16.msra.mxu0 0
        %3719 = vmatprep.subr.bf16.mxu0 0
        %3720 = vmatpush2.bf16.msra.mxu0 0
        %3721 = vmatprep.subr.bf16.mxu0 0
        %3722 = vmatpush2.bf16.msra.mxu0 0
        %3723 = vmatprep.subr.bf16.mxu0 0
        %3724 = vmatpush2.bf16.msra.mxu0 0
        %3725 = vmatprep.mubr.bf16.mxu0 0
        %3726 = vmatmul.mubr.bf16.gmra.mxu0 %v3691
        %v3727 = vpop.f32.mrf.mxu0
        %v3728 = vadd.f32 0.0, %v3727
        %v3729 = vpop.f32.mrf.mxu0
        %v3730 = vpop.f32.mrf.mxu0
        %v3731 = vadd.f32 0.0, %v3730
        %v3732 = vpop.f32.mrf.mxu0
        %3733 = vdwg.mxu0
        %3734 = vrot.lane.b32.xlu0 %v746, 64
        %v3735 = vpop.permute.xlu0 %3734
        %v3738 = vsel %vm1131, %v3450, 0
        %3740 = vmatprep.subr.bf16.mxu0 0
        %3741 = vmatpush1.bf16.msra.mxu0 0
        %3742 = vmatprep.subr.bf16.mxu0 0
        %3743 = vmatpush1.bf16.msra.mxu0 0
        %3744 = vmatprep.subr.bf16.mxu0 0
        %3745 = vmatpush1.bf16.msra.mxu0 0
        %3746 = vmatprep.subr.bf16.mxu0 0
        %3747 = vmatpush1.bf16.msra.mxu0 0
        %3748 = vmatprep.subr.bf16.mxu0 0
        %3749 = vmatpush1.bf16.msra.mxu0 0
        %3750 = vmatprep.subr.bf16.mxu0 0
        %3751 = vmatpush1.bf16.msra.mxu0 0
        %3752 = vmatprep.subr.bf16.mxu0 0
        %3753 = vmatpush1.bf16.msra.mxu0 0
        %3754 = vmatprep.subr.bf16.mxu0 0
        %3755 = vmatpush1.bf16.msra.mxu0 %v3735
        %3756 = vmatprep.subr.bf16.mxu0 0
        %3757 = vmatpush2.bf16.msra.mxu0 0
        %3758 = vmatprep.subr.bf16.mxu0 0
        %3759 = vmatpush2.bf16.msra.mxu0 0
        %3760 = vmatprep.subr.bf16.mxu0 0
        %3761 = vmatpush2.bf16.msra.mxu0 0
        %3762 = vmatprep.subr.bf16.mxu0 0
        %3763 = vmatpush2.bf16.msra.mxu0 0
        %3764 = vmatprep.subr.bf16.mxu0 0
        %3765 = vmatpush2.bf16.msra.mxu0 0
        %3766 = vmatprep.subr.bf16.mxu0 0
        %3767 = vmatpush2.bf16.msra.mxu0 0
        %3768 = vmatprep.subr.bf16.mxu0 0
        %3769 = vmatpush2.bf16.msra.mxu0 0
        %3770 = vmatprep.subr.bf16.mxu0 0
        %3771 = vmatpush2.bf16.msra.mxu0 0
        %3772 = vmatprep.mubr.bf16.mxu0 0
        %3773 = vmatmul.mubr.bf16.gmra.mxu0 %v3738
        %v3774 = vpop.f32.mrf.mxu0
        %v3775 = vadd.f32 0.0, %v3774
        %v3776 = vpop.f32.mrf.mxu0
        %v3777 = vpop.f32.mrf.mxu0
        %v3778 = vadd.f32 0.0, %v3777
        %v3779 = vpop.f32.mrf.mxu0
        %3780 = vdwg.mxu0
        %3781 = vrot.lane.b32.xlu0 %v749, 64
        %v3782 = vpop.permute.xlu0 %3781
        %v3785 = vsel %vm1131, %v3451, 0
        %3787 = vmatprep.subr.bf16.mxu0 0
        %3788 = vmatpush1.bf16.msra.mxu0 0
        %3789 = vmatprep.subr.bf16.mxu0 0
        %3790 = vmatpush1.bf16.msra.mxu0 0
        %3791 = vmatprep.subr.bf16.mxu0 0
        %3792 = vmatpush1.bf16.msra.mxu0 0
        %3793 = vmatprep.subr.bf16.mxu0 0
        %3794 = vmatpush1.bf16.msra.mxu0 0
        %3795 = vmatprep.subr.bf16.mxu0 0
        %3796 = vmatpush1.bf16.msra.mxu0 0
        %3797 = vmatprep.subr.bf16.mxu0 0
        %3798 = vmatpush1.bf16.msra.mxu0 0
        %3799 = vmatprep.subr.bf16.mxu0 0
        %3800 = vmatpush1.bf16.msra.mxu0 0
        %3801 = vmatprep.subr.bf16.mxu0 0
        %3802 = vmatpush1.bf16.msra.mxu0 %v3782
        %3803 = vmatprep.subr.bf16.mxu0 0
        %3804 = vmatpush2.bf16.msra.mxu0 0
        %3805 = vmatprep.subr.bf16.mxu0 0
        %3806 = vmatpush2.bf16.msra.mxu0 0
        %3807 = vmatprep.subr.bf16.mxu0 0
        %3808 = vmatpush2.bf16.msra.mxu0 0
        %3809 = vmatprep.subr.bf16.mxu0 0
        %3810 = vmatpush2.bf16.msra.mxu0 0
        %3811 = vmatprep.subr.bf16.mxu0 0
        %3812 = vmatpush2.bf16.msra.mxu0 0
        %3813 = vmatprep.subr.bf16.mxu0 0
        %3814 = vmatpush2.bf16.msra.mxu0 0
        %3815 = vmatprep.subr.bf16.mxu0 0
        %3816 = vmatpush2.bf16.msra.mxu0 0
        %3817 = vmatprep.subr.bf16.mxu0 0
        %3818 = vmatpush2.bf16.msra.mxu0 0
        %3819 = vmatprep.mubr.bf16.mxu0 0
        %3820 = vmatmul.mubr.bf16.gmra.mxu0 %v3785
        %v3821 = vpop.f32.mrf.mxu0
        %v3822 = vadd.f32 0.0, %v3821
        %v3823 = vpop.f32.mrf.mxu0
        %v3824 = vpop.f32.mrf.mxu0
        %v3825 = vadd.f32 0.0, %v3824
        %v3826 = vpop.f32.mrf.mxu0
        %3827 = vdwg.mxu0
        %v3828 = vpack.c.bf16 %v3496, %v3493
        %v3829 = vpack.c.bf16 %v3543, %v3540
        %v3830 = vpack.c.bf16 %v3590, %v3587
        %v3831 = vpack.c.bf16 %v3637, %v3634
        %v3832 = vpack.c.bf16 %v3684, %v3681
        %v3833 = vpack.c.bf16 %v3731, %v3728
        %v3834 = vpack.c.bf16 %v3778, %v3775
        %v3835 = vpack.c.bf16 %v3825, %v3822
        %v3844 = vunpack.c.l.b16 %v3828
        %v3845 = vunpack.c.h.b16 %v3828
        %v3846 = vunpack.c.l.b16 %v3829
        %v3847 = vunpack.c.h.b16 %v3829
        %v3848 = vunpack.c.l.b16 %v3830
        %v3849 = vunpack.c.h.b16 %v3830
        %v3850 = vunpack.c.l.b16 %v3831
        %v3851 = vunpack.c.h.b16 %v3831
        %v3852 = vunpack.c.l.b16 %v3832
        %v3853 = vunpack.c.h.b16 %v3832
        %v3854 = vunpack.c.l.b16 %v3833
        %v3855 = vunpack.c.h.b16 %v3833
        %v3856 = vunpack.c.l.b16 %v3834
        %v3857 = vunpack.c.h.b16 %v3834
        %v3858 = vunpack.c.l.b16 %v3835
        %v3859 = vunpack.c.h.b16 %v3835
        %v3860 = vpack.c.b16 %v3844, %v3844
        %v3861 = vpack.c.b16 %v3845, %v3845
        %v3862 = vpack.c.b16 %v3846, %v3846
        %v3863 = vpack.c.b16 %v3847, %v3847
        %v3864 = vpack.c.b16 %v3848, %v3848
        %v3865 = vpack.c.b16 %v3849, %v3849
        %v3866 = vpack.c.b16 %v3850, %v3850
        %v3867 = vpack.c.b16 %v3851, %v3851
        %v3868 = vpack.c.b16 %v3852, %v3852
        %v3869 = vpack.c.b16 %v3853, %v3853
        %v3870 = vpack.c.b16 %v3854, %v3854
        %v3871 = vpack.c.b16 %v3855, %v3855
        %v3872 = vpack.c.b16 %v3856, %v3856
        %v3873 = vpack.c.b16 %v3857, %v3857
        %v3874 = vpack.c.b16 %v3858, %v3858
        %v3875 = vpack.c.b16 %v3859, %v3859
        %3876 = vrot.lane.b32.xlu0 %v3860, 64
        %v3877 = vpop.permute.xlu0 %3876
        %3878 = vrot.lane.b32.xlu0 %v3861, 64
        %v3879 = vpop.permute.xlu0 %3878
        %3880 = vrot.lane.b32.xlu0 %v3862, 64
        %v3881 = vpop.permute.xlu0 %3880
        %3882 = vrot.lane.b32.xlu0 %v3863, 64
        %v3883 = vpop.permute.xlu0 %3882
        %3884 = vrot.lane.b32.xlu0 %v3864, 64
        %v3885 = vpop.permute.xlu0 %3884
        %3886 = vrot.lane.b32.xlu0 %v3865, 64
        %v3887 = vpop.permute.xlu0 %3886
        %3888 = vrot.lane.b32.xlu0 %v3866, 64
        %v3889 = vpop.permute.xlu0 %3888
        %3890 = vrot.lane.b32.xlu0 %v3867, 64
        %v3891 = vpop.permute.xlu0 %3890
        %3892 = vrot.lane.b32.xlu0 %v3868, 64
        %v3893 = vpop.permute.xlu0 %3892
        %3894 = vrot.lane.b32.xlu0 %v3869, 64
        %v3895 = vpop.permute.xlu0 %3894
        %3896 = vrot.lane.b32.xlu0 %v3870, 64
        %v3897 = vpop.permute.xlu0 %3896
        %3898 = vrot.lane.b32.xlu0 %v3871, 64
        %v3899 = vpop.permute.xlu0 %3898
        %3900 = vrot.lane.b32.xlu0 %v3872, 64
        %v3901 = vpop.permute.xlu0 %3900
        %3902 = vrot.lane.b32.xlu0 %v3873, 64
        %v3903 = vpop.permute.xlu0 %3902
        %3904 = vrot.lane.b32.xlu0 %v3874, 64
        %v3905 = vpop.permute.xlu0 %3904
        %3906 = vrot.lane.b32.xlu0 %v3875, 64
        %v3907 = vpop.permute.xlu0 %3906
        %vm3924 = vcmask 781824
        %3925 = vst.msk [vmem:[#allocation2] sm:$0xf] %vm3924, %v3877
        %3926 = vst.msk [vmem:[#allocation2 + $0x4] sm:$0xf] %vm3924, %v3879
        %3927 = vst.msk [vmem:[#allocation2 + $0x8] sm:$0xf] %vm3924, %v3881
        %3928 = vst.msk [vmem:[#allocation2 + $0xc] sm:$0xf] %vm3924, %v3883
        %3929 = vst.msk [vmem:[#allocation2 + $0x10] sm:$0xf] %vm3924, %v3885
        %3930 = vst.msk [vmem:[#allocation2 + $0x14] sm:$0xf] %vm3924, %v3887
        %3931 = vst.msk [vmem:[#allocation2 + $0x18] sm:$0xf] %vm3924, %v3889
        %3932 = vst.msk [vmem:[#allocation2 + $0x1c] sm:$0xf] %vm3924, %v3891
        %3933 = vst.msk [vmem:[#allocation2 + $0x20] sm:$0xf] %vm3924, %v3893
        %3934 = vst.msk [vmem:[#allocation2 + $0x24] sm:$0xf] %vm3924, %v3895
        %3935 = vst.msk [vmem:[#allocation2 + $0x28] sm:$0xf] %vm3924, %v3897
        %3936 = vst.msk [vmem:[#allocation2 + $0x2c] sm:$0xf] %vm3924, %v3899
        %3937 = vst.msk [vmem:[#allocation2 + $0x30] sm:$0xf] %vm3924, %v3901
        %3938 = vst.msk [vmem:[#allocation2 + $0x34] sm:$0xf] %vm3924, %v3903
        %3939 = vst.msk [vmem:[#allocation2 + $0x38] sm:$0xf] %vm3924, %v3905
        %3940 = vst.msk [vmem:[#allocation2 + $0x3c] sm:$0xf] %vm3924, %v3907
        %s3941 = scalar_lea.vmem [#allocation8], 48
        %v3942 = vld [vmem:[%s3941] sm:$0xff]
        %v3943 = vld [vmem:[%s3941 + $0x8] sm:$0xff]
        %3944 = vrot.lane.b32.xlu0 %v729, 32
        %v3945 = vpop.permute.xlu0 %3944
        %3946 = vrot.lane.b32.xlu0 %v730, 32
        %v3947 = vpop.permute.xlu0 %3946
        %v3949 = vsel %vm754, %v3945, 0
        %v3952 = vsel %vm754, %v3947, 0
        %3954 = vmatprep.subr.bf16.mxu0 0
        %3955 = vmatpush1.bf16.xpose.msra.mxu0 0
        %3956 = vmatprep.subr.bf16.mxu0 0
        %3957 = vmatpush1.bf16.xpose.msra.mxu0 0
        %3958 = vmatprep.subr.bf16.mxu0 0
        %3959 = vmatpush1.bf16.xpose.msra.mxu0 0
        %3960 = vmatprep.subr.bf16.mxu0 0
        %3961 = vmatpush1.bf16.xpose.msra.mxu0 0
        %3962 = vmatprep.subr.bf16.mxu0 0
        %3963 = vmatpush1.bf16.xpose.msra.mxu0 0
        %3964 = vmatprep.subr.bf16.mxu0 0
        %3965 = vmatpush1.bf16.xpose.msra.mxu0 0
        %3966 = vmatprep.subr.bf16.mxu0 0
        %3967 = vmatpush1.bf16.xpose.msra.mxu0 0
        %3968 = vmatprep.subr.bf16.mxu0 0
        %3969 = vmatpush1.bf16.xpose.msra.mxu0 %v3952
        %3970 = vmatprep.subr.bf16.mxu0 0
        %3971 = vmatpush2.bf16.xpose.msra.mxu0 0
        %3972 = vmatprep.subr.bf16.mxu0 0
        %3973 = vmatpush2.bf16.xpose.msra.mxu0 0
        %3974 = vmatprep.subr.bf16.mxu0 0
        %3975 = vmatpush2.bf16.xpose.msra.mxu0 0
        %3976 = vmatprep.subr.bf16.mxu0 0
        %3977 = vmatpush2.bf16.xpose.msra.mxu0 0
        %3978 = vmatprep.subr.bf16.mxu0 0
        %3979 = vmatpush2.bf16.xpose.msra.mxu0 0
        %3980 = vmatprep.subr.bf16.mxu0 0
        %3981 = vmatpush2.bf16.xpose.msra.mxu0 0
        %3982 = vmatprep.subr.bf16.mxu0 0
        %3983 = vmatpush2.bf16.xpose.msra.mxu0 0
        %3984 = vmatprep.subr.bf16.mxu0 0
        %3985 = vmatpush2.bf16.xpose.msra.mxu0 0
        %3986 = vmatprep.mubr.bf16.mxu0 0
        %3987 = vmatmul.mubr.bf16.gmra.mxu0 %v3949
        %v3988 = vpop.f32.mrf.mxu0
        %v3989 = vadd.f32 %v3942, %v3988
        %v3990 = vpop.f32.mrf.mxu0
        %v3991 = vpop.f32.mrf.mxu0
        %v3992 = vadd.f32 %v3943, %v3991
        %v3993 = vpop.f32.mrf.mxu0
        %3994 = vdwg.mxu0
        %3995 = vrot.lane.b32.xlu0 %v732, 32
        %v3996 = vpop.permute.xlu0 %3995
        %3997 = vrot.lane.b32.xlu0 %v733, 32
        %v3998 = vpop.permute.xlu0 %3997
        %v4000 = vsel %vm754, %v3996, 0
        %v4003 = vsel %vm754, %v3998, 0
        %4005 = vmatprep.subr.bf16.mxu0 0
        %4006 = vmatpush1.bf16.xpose.msra.mxu0 0
        %4007 = vmatprep.subr.bf16.mxu0 0
        %4008 = vmatpush1.bf16.xpose.msra.mxu0 0
        %4009 = vmatprep.subr.bf16.mxu0 0
        %4010 = vmatpush1.bf16.xpose.msra.mxu0 0
        %4011 = vmatprep.subr.bf16.mxu0 0
        %4012 = vmatpush1.bf16.xpose.msra.mxu0 0
        %4013 = vmatprep.subr.bf16.mxu0 0
        %4014 = vmatpush1.bf16.xpose.msra.mxu0 0
        %4015 = vmatprep.subr.bf16.mxu0 0
        %4016 = vmatpush1.bf16.xpose.msra.mxu0 0
        %4017 = vmatprep.subr.bf16.mxu0 0
        %4018 = vmatpush1.bf16.xpose.msra.mxu0 0
        %4019 = vmatprep.subr.bf16.mxu0 0
        %4020 = vmatpush1.bf16.xpose.msra.mxu0 %v4003
        %4021 = vmatprep.subr.bf16.mxu0 0
        %4022 = vmatpush2.bf16.xpose.msra.mxu0 0
        %4023 = vmatprep.subr.bf16.mxu0 0
        %4024 = vmatpush2.bf16.xpose.msra.mxu0 0
        %4025 = vmatprep.subr.bf16.mxu0 0
        %4026 = vmatpush2.bf16.xpose.msra.mxu0 0
        %4027 = vmatprep.subr.bf16.mxu0 0
        %4028 = vmatpush2.bf16.xpose.msra.mxu0 0
        %4029 = vmatprep.subr.bf16.mxu0 0
        %4030 = vmatpush2.bf16.xpose.msra.mxu0 0
        %4031 = vmatprep.subr.bf16.mxu0 0
        %4032 = vmatpush2.bf16.xpose.msra.mxu0 0
        %4033 = vmatprep.subr.bf16.mxu0 0
        %4034 = vmatpush2.bf16.xpose.msra.mxu0 0
        %4035 = vmatprep.subr.bf16.mxu0 0
        %4036 = vmatpush2.bf16.xpose.msra.mxu0 0
        %4037 = vmatprep.mubr.bf16.mxu0 0
        %4038 = vmatmul.mubr.bf16.gmra.mxu0 %v4000
        %v4039 = vpop.f32.mrf.mxu0
        %v4040 = vadd.f32 %v3942, %v4039
        %v4041 = vpop.f32.mrf.mxu0
        %v4042 = vpop.f32.mrf.mxu0
        %v4043 = vadd.f32 %v3943, %v4042
        %v4044 = vpop.f32.mrf.mxu0
        %4045 = vdwg.mxu0
        %4046 = vrot.lane.b32.xlu0 %v735, 32
        %v4047 = vpop.permute.xlu0 %4046
        %4048 = vrot.lane.b32.xlu0 %v736, 32
        %v4049 = vpop.permute.xlu0 %4048
        %v4051 = vsel %vm754, %v4047, 0
        %v4054 = vsel %vm754, %v4049, 0
        %4056 = vmatprep.subr.bf16.mxu0 0
        %4057 = vmatpush1.bf16.xpose.msra.mxu0 0
        %4058 = vmatprep.subr.bf16.mxu0 0
        %4059 = vmatpush1.bf16.xpose.msra.mxu0 0
        %4060 = vmatprep.subr.bf16.mxu0 0
        %4061 = vmatpush1.bf16.xpose.msra.mxu0 0
        %4062 = vmatprep.subr.bf16.mxu0 0
        %4063 = vmatpush1.bf16.xpose.msra.mxu0 0
        %4064 = vmatprep.subr.bf16.mxu0 0
        %4065 = vmatpush1.bf16.xpose.msra.mxu0 0
        %4066 = vmatprep.subr.bf16.mxu0 0
        %4067 = vmatpush1.bf16.xpose.msra.mxu0 0
        %4068 = vmatprep.subr.bf16.mxu0 0
        %4069 = vmatpush1.bf16.xpose.msra.mxu0 0
        %4070 = vmatprep.subr.bf16.mxu0 0
        %4071 = vmatpush1.bf16.xpose.msra.mxu0 %v4054
        %4072 = vmatprep.subr.bf16.mxu0 0
        %4073 = vmatpush2.bf16.xpose.msra.mxu0 0
        %4074 = vmatprep.subr.bf16.mxu0 0
        %4075 = vmatpush2.bf16.xpose.msra.mxu0 0
        %4076 = vmatprep.subr.bf16.mxu0 0
        %4077 = vmatpush2.bf16.xpose.msra.mxu0 0
        %4078 = vmatprep.subr.bf16.mxu0 0
        %4079 = vmatpush2.bf16.xpose.msra.mxu0 0
        %4080 = vmatprep.subr.bf16.mxu0 0
        %4081 = vmatpush2.bf16.xpose.msra.mxu0 0
        %4082 = vmatprep.subr.bf16.mxu0 0
        %4083 = vmatpush2.bf16.xpose.msra.mxu0 0
        %4084 = vmatprep.subr.bf16.mxu0 0
        %4085 = vmatpush2.bf16.xpose.msra.mxu0 0
        %4086 = vmatprep.subr.bf16.mxu0 0
        %4087 = vmatpush2.bf16.xpose.msra.mxu0 0
        %4088 = vmatprep.mubr.bf16.mxu0 0
        %4089 = vmatmul.mubr.bf16.gmra.mxu0 %v4051
        %v4090 = vpop.f32.mrf.mxu0
        %v4091 = vadd.f32 %v3942, %v4090
        %v4092 = vpop.f32.mrf.mxu0
        %v4093 = vpop.f32.mrf.mxu0
        %v4094 = vadd.f32 %v3943, %v4093
        %v4095 = vpop.f32.mrf.mxu0
        %4096 = vdwg.mxu0
        %4097 = vrot.lane.b32.xlu0 %v738, 32
        %v4098 = vpop.permute.xlu0 %4097
        %4099 = vrot.lane.b32.xlu0 %v739, 32
        %v4100 = vpop.permute.xlu0 %4099
        %v4102 = vsel %vm754, %v4098, 0
        %v4105 = vsel %vm754, %v4100, 0
        %4107 = vmatprep.subr.bf16.mxu0 0
        %4108 = vmatpush1.bf16.xpose.msra.mxu0 0
        %4109 = vmatprep.subr.bf16.mxu0 0
        %4110 = vmatpush1.bf16.xpose.msra.mxu0 0
        %4111 = vmatprep.subr.bf16.mxu0 0
        %4112 = vmatpush1.bf16.xpose.msra.mxu0 0
        %4113 = vmatprep.subr.bf16.mxu0 0
        %4114 = vmatpush1.bf16.xpose.msra.mxu0 0
        %4115 = vmatprep.subr.bf16.mxu0 0
        %4116 = vmatpush1.bf16.xpose.msra.mxu0 0
        %4117 = vmatprep.subr.bf16.mxu0 0
        %4118 = vmatpush1.bf16.xpose.msra.mxu0 0
        %4119 = vmatprep.subr.bf16.mxu0 0
        %4120 = vmatpush1.bf16.xpose.msra.mxu0 0
        %4121 = vmatprep.subr.bf16.mxu0 0
        %4122 = vmatpush1.bf16.xpose.msra.mxu0 %v4105
        %4123 = vmatprep.subr.bf16.mxu0 0
        %4124 = vmatpush2.bf16.xpose.msra.mxu0 0
        %4125 = vmatprep.subr.bf16.mxu0 0
        %4126 = vmatpush2.bf16.xpose.msra.mxu0 0
        %4127 = vmatprep.subr.bf16.mxu0 0
        %4128 = vmatpush2.bf16.xpose.msra.mxu0 0
        %4129 = vmatprep.subr.bf16.mxu0 0
        %4130 = vmatpush2.bf16.xpose.msra.mxu0 0
        %4131 = vmatprep.subr.bf16.mxu0 0
        %4132 = vmatpush2.bf16.xpose.msra.mxu0 0
        %4133 = vmatprep.subr.bf16.mxu0 0
        %4134 = vmatpush2.bf16.xpose.msra.mxu0 0
        %4135 = vmatprep.subr.bf16.mxu0 0
        %4136 = vmatpush2.bf16.xpose.msra.mxu0 0
        %4137 = vmatprep.subr.bf16.mxu0 0
        %4138 = vmatpush2.bf16.xpose.msra.mxu0 0
        %4139 = vmatprep.mubr.bf16.mxu0 0
        %4140 = vmatmul.mubr.bf16.gmra.mxu0 %v4102
        %v4141 = vpop.f32.mrf.mxu0
        %v4142 = vadd.f32 %v3942, %v4141
        %v4143 = vpop.f32.mrf.mxu0
        %v4144 = vpop.f32.mrf.mxu0
        %v4145 = vadd.f32 %v3943, %v4144
        %v4146 = vpop.f32.mrf.mxu0
        %4147 = vdwg.mxu0
        %4148 = vrot.lane.b32.xlu0 %v741, 32
        %v4149 = vpop.permute.xlu0 %4148
        %4150 = vrot.lane.b32.xlu0 %v742, 32
        %v4151 = vpop.permute.xlu0 %4150
        %v4153 = vsel %vm754, %v4149, 0
        %v4156 = vsel %vm754, %v4151, 0
        %4158 = vmatprep.subr.bf16.mxu0 0
        %4159 = vmatpush1.bf16.xpose.msra.mxu0 0
        %4160 = vmatprep.subr.bf16.mxu0 0
        %4161 = vmatpush1.bf16.xpose.msra.mxu0 0
        %4162 = vmatprep.subr.bf16.mxu0 0
        %4163 = vmatpush1.bf16.xpose.msra.mxu0 0
        %4164 = vmatprep.subr.bf16.mxu0 0
        %4165 = vmatpush1.bf16.xpose.msra.mxu0 0
        %4166 = vmatprep.subr.bf16.mxu0 0
        %4167 = vmatpush1.bf16.xpose.msra.mxu0 0
        %4168 = vmatprep.subr.bf16.mxu0 0
        %4169 = vmatpush1.bf16.xpose.msra.mxu0 0
        %4170 = vmatprep.subr.bf16.mxu0 0
        %4171 = vmatpush1.bf16.xpose.msra.mxu0 0
        %4172 = vmatprep.subr.bf16.mxu0 0
        %4173 = vmatpush1.bf16.xpose.msra.mxu0 %v4156
        %4174 = vmatprep.subr.bf16.mxu0 0
        %4175 = vmatpush2.bf16.xpose.msra.mxu0 0
        %4176 = vmatprep.subr.bf16.mxu0 0
        %4177 = vmatpush2.bf16.xpose.msra.mxu0 0
        %4178 = vmatprep.subr.bf16.mxu0 0
        %4179 = vmatpush2.bf16.xpose.msra.mxu0 0
        %4180 = vmatprep.subr.bf16.mxu0 0
        %4181 = vmatpush2.bf16.xpose.msra.mxu0 0
        %4182 = vmatprep.subr.bf16.mxu0 0
        %4183 = vmatpush2.bf16.xpose.msra.mxu0 0
        %4184 = vmatprep.subr.bf16.mxu0 0
        %4185 = vmatpush2.bf16.xpose.msra.mxu0 0
        %4186 = vmatprep.subr.bf16.mxu0 0
        %4187 = vmatpush2.bf16.xpose.msra.mxu0 0
        %4188 = vmatprep.subr.bf16.mxu0 0
        %4189 = vmatpush2.bf16.xpose.msra.mxu0 0
        %4190 = vmatprep.mubr.bf16.mxu0 0
        %4191 = vmatmul.mubr.bf16.gmra.mxu0 %v4153
        %v4192 = vpop.f32.mrf.mxu0
        %v4193 = vadd.f32 %v3942, %v4192
        %v4194 = vpop.f32.mrf.mxu0
        %v4195 = vpop.f32.mrf.mxu0
        %v4196 = vadd.f32 %v3943, %v4195
        %v4197 = vpop.f32.mrf.mxu0
        %4198 = vdwg.mxu0
        %4199 = vrot.lane.b32.xlu0 %v744, 32
        %v4200 = vpop.permute.xlu0 %4199
        %4201 = vrot.lane.b32.xlu0 %v745, 32
        %v4202 = vpop.permute.xlu0 %4201
        %v4204 = vsel %vm754, %v4200, 0
        %v4207 = vsel %vm754, %v4202, 0
        %4209 = vmatprep.subr.bf16.mxu0 0
        %4210 = vmatpush1.bf16.xpose.msra.mxu0 0
        %4211 = vmatprep.subr.bf16.mxu0 0
        %4212 = vmatpush1.bf16.xpose.msra.mxu0 0
        %4213 = vmatprep.subr.bf16.mxu0 0
        %4214 = vmatpush1.bf16.xpose.msra.mxu0 0
        %4215 = vmatprep.subr.bf16.mxu0 0
        %4216 = vmatpush1.bf16.xpose.msra.mxu0 0
        %4217 = vmatprep.subr.bf16.mxu0 0
        %4218 = vmatpush1.bf16.xpose.msra.mxu0 0
        %4219 = vmatprep.subr.bf16.mxu0 0
        %4220 = vmatpush1.bf16.xpose.msra.mxu0 0
        %4221 = vmatprep.subr.bf16.mxu0 0
        %4222 = vmatpush1.bf16.xpose.msra.mxu0 0
        %4223 = vmatprep.subr.bf16.mxu0 0
        %4224 = vmatpush1.bf16.xpose.msra.mxu0 %v4207
        %4225 = vmatprep.subr.bf16.mxu0 0
        %4226 = vmatpush2.bf16.xpose.msra.mxu0 0
        %4227 = vmatprep.subr.bf16.mxu0 0
        %4228 = vmatpush2.bf16.xpose.msra.mxu0 0
        %4229 = vmatprep.subr.bf16.mxu0 0
        %4230 = vmatpush2.bf16.xpose.msra.mxu0 0
        %4231 = vmatprep.subr.bf16.mxu0 0
        %4232 = vmatpush2.bf16.xpose.msra.mxu0 0
        %4233 = vmatprep.subr.bf16.mxu0 0
        %4234 = vmatpush2.bf16.xpose.msra.mxu0 0
        %4235 = vmatprep.subr.bf16.mxu0 0
        %4236 = vmatpush2.bf16.xpose.msra.mxu0 0
        %4237 = vmatprep.subr.bf16.mxu0 0
        %4238 = vmatpush2.bf16.xpose.msra.mxu0 0
        %4239 = vmatprep.subr.bf16.mxu0 0
        %4240 = vmatpush2.bf16.xpose.msra.mxu0 0
        %4241 = vmatprep.mubr.bf16.mxu0 0
        %4242 = vmatmul.mubr.bf16.gmra.mxu0 %v4204
        %v4243 = vpop.f32.mrf.mxu0
        %v4244 = vadd.f32 %v3942, %v4243
        %v4245 = vpop.f32.mrf.mxu0
        %v4246 = vpop.f32.mrf.mxu0
        %v4247 = vadd.f32 %v3943, %v4246
        %v4248 = vpop.f32.mrf.mxu0
        %4249 = vdwg.mxu0
        %4250 = vrot.lane.b32.xlu0 %v747, 32
        %v4251 = vpop.permute.xlu0 %4250
        %4252 = vrot.lane.b32.xlu0 %v748, 32
        %v4253 = vpop.permute.xlu0 %4252
        %v4255 = vsel %vm754, %v4251, 0
        %v4258 = vsel %vm754, %v4253, 0
        %4260 = vmatprep.subr.bf16.mxu0 0
        %4261 = vmatpush1.bf16.xpose.msra.mxu0 0
        %4262 = vmatprep.subr.bf16.mxu0 0
        %4263 = vmatpush1.bf16.xpose.msra.mxu0 0
        %4264 = vmatprep.subr.bf16.mxu0 0
        %4265 = vmatpush1.bf16.xpose.msra.mxu0 0
        %4266 = vmatprep.subr.bf16.mxu0 0
        %4267 = vmatpush1.bf16.xpose.msra.mxu0 0
        %4268 = vmatprep.subr.bf16.mxu0 0
        %4269 = vmatpush1.bf16.xpose.msra.mxu0 0
        %4270 = vmatprep.subr.bf16.mxu0 0
        %4271 = vmatpush1.bf16.xpose.msra.mxu0 0
        %4272 = vmatprep.subr.bf16.mxu0 0
        %4273 = vmatpush1.bf16.xpose.msra.mxu0 0
        %4274 = vmatprep.subr.bf16.mxu0 0
        %4275 = vmatpush1.bf16.xpose.msra.mxu0 %v4258
        %4276 = vmatprep.subr.bf16.mxu0 0
        %4277 = vmatpush2.bf16.xpose.msra.mxu0 0
        %4278 = vmatprep.subr.bf16.mxu0 0
        %4279 = vmatpush2.bf16.xpose.msra.mxu0 0
        %4280 = vmatprep.subr.bf16.mxu0 0
        %4281 = vmatpush2.bf16.xpose.msra.mxu0 0
        %4282 = vmatprep.subr.bf16.mxu0 0
        %4283 = vmatpush2.bf16.xpose.msra.mxu0 0
        %4284 = vmatprep.subr.bf16.mxu0 0
        %4285 = vmatpush2.bf16.xpose.msra.mxu0 0
        %4286 = vmatprep.subr.bf16.mxu0 0
        %4287 = vmatpush2.bf16.xpose.msra.mxu0 0
        %4288 = vmatprep.subr.bf16.mxu0 0
        %4289 = vmatpush2.bf16.xpose.msra.mxu0 0
        %4290 = vmatprep.subr.bf16.mxu0 0
        %4291 = vmatpush2.bf16.xpose.msra.mxu0 0
        %4292 = vmatprep.mubr.bf16.mxu0 0
        %4293 = vmatmul.mubr.bf16.gmra.mxu0 %v4255
        %v4294 = vpop.f32.mrf.mxu0
        %v4295 = vadd.f32 %v3942, %v4294
        %v4296 = vpop.f32.mrf.mxu0
        %v4297 = vpop.f32.mrf.mxu0
        %v4298 = vadd.f32 %v3943, %v4297
        %v4299 = vpop.f32.mrf.mxu0
        %4300 = vdwg.mxu0
        %4301 = vrot.lane.b32.xlu0 %v750, 32
        %v4302 = vpop.permute.xlu0 %4301
        %4303 = vrot.lane.b32.xlu0 %v751, 32
        %v4304 = vpop.permute.xlu0 %4303
        %v4306 = vsel %vm754, %v4302, 0
        %v4309 = vsel %vm754, %v4304, 0
        %4311 = vmatprep.subr.bf16.mxu0 0
        %4312 = vmatpush1.bf16.xpose.msra.mxu0 0
        %4313 = vmatprep.subr.bf16.mxu0 0
        %4314 = vmatpush1.bf16.xpose.msra.mxu0 0
        %4315 = vmatprep.subr.bf16.mxu0 0
        %4316 = vmatpush1.bf16.xpose.msra.mxu0 0
        %4317 = vmatprep.subr.bf16.mxu0 0
        %4318 = vmatpush1.bf16.xpose.msra.mxu0 0
        %4319 = vmatprep.subr.bf16.mxu0 0
        %4320 = vmatpush1.bf16.xpose.msra.mxu0 0
        %4321 = vmatprep.subr.bf16.mxu0 0
        %4322 = vmatpush1.bf16.xpose.msra.mxu0 0
        %4323 = vmatprep.subr.bf16.mxu0 0
        %4324 = vmatpush1.bf16.xpose.msra.mxu0 0
        %4325 = vmatprep.subr.bf16.mxu0 0
        %4326 = vmatpush1.bf16.xpose.msra.mxu0 %v4309
        %4327 = vmatprep.subr.bf16.mxu0 0
        %4328 = vmatpush2.bf16.xpose.msra.mxu0 0
        %4329 = vmatprep.subr.bf16.mxu0 0
        %4330 = vmatpush2.bf16.xpose.msra.mxu0 0
        %4331 = vmatprep.subr.bf16.mxu0 0
        %4332 = vmatpush2.bf16.xpose.msra.mxu0 0
        %4333 = vmatprep.subr.bf16.mxu0 0
        %4334 = vmatpush2.bf16.xpose.msra.mxu0 0
        %4335 = vmatprep.subr.bf16.mxu0 0
        %4336 = vmatpush2.bf16.xpose.msra.mxu0 0
        %4337 = vmatprep.subr.bf16.mxu0 0
        %4338 = vmatpush2.bf16.xpose.msra.mxu0 0
        %4339 = vmatprep.subr.bf16.mxu0 0
        %4340 = vmatpush2.bf16.xpose.msra.mxu0 0
        %4341 = vmatprep.subr.bf16.mxu0 0
        %4342 = vmatpush2.bf16.xpose.msra.mxu0 0
        %4343 = vmatprep.mubr.bf16.mxu0 0
        %4344 = vmatmul.mubr.bf16.gmra.mxu0 %v4306
        %v4345 = vpop.f32.mrf.mxu0
        %v4346 = vadd.f32 %v3942, %v4345
        %v4347 = vpop.f32.mrf.mxu0
        %v4348 = vpop.f32.mrf.mxu0
        %v4349 = vadd.f32 %v3943, %v4348
        %v4350 = vpop.f32.mrf.mxu0
        %4351 = vdwg.mxu0
        %v4352 = vsel %vm1131, %v3989, -inf
        %4353 = vmax.xlane.f32.xlu0 %v4352
        %v4354 = vpop.xlane.xlu0 %4353
        %v4355 = vsel %vm1131, %v3992, -inf
        %4356 = vmax.xlane.f32.xlu0 %v4355
        %v4357 = vpop.xlane.xlu0 %4356
        %v4358 = vsel %vm1131, %v4040, -inf
        %4359 = vmax.xlane.f32.xlu0 %v4358
        %v4360 = vpop.xlane.xlu0 %4359
        %v4361 = vsel %vm1131, %v4043, -inf
        %4362 = vmax.xlane.f32.xlu0 %v4361
        %v4363 = vpop.xlane.xlu0 %4362
        %v4364 = vsel %vm1131, %v4091, -inf
        %4365 = vmax.xlane.f32.xlu0 %v4364
        %v4366 = vpop.xlane.xlu0 %4365
        %v4367 = vsel %vm1131, %v4094, -inf
        %4368 = vmax.xlane.f32.xlu0 %v4367
        %v4369 = vpop.xlane.xlu0 %4368
        %v4370 = vsel %vm1131, %v4142, -inf
        %4371 = vmax.xlane.f32.xlu0 %v4370
        %v4372 = vpop.xlane.xlu0 %4371
        %v4373 = vsel %vm1131, %v4145, -inf
        %4374 = vmax.xlane.f32.xlu0 %v4373
        %v4375 = vpop.xlane.xlu0 %4374
        %v4376 = vsel %vm1131, %v4193, -inf
        %4377 = vmax.xlane.f32.xlu0 %v4376
        %v4378 = vpop.xlane.xlu0 %4377
        %v4379 = vsel %vm1131, %v4196, -inf
        %4380 = vmax.xlane.f32.xlu0 %v4379
        %v4381 = vpop.xlane.xlu0 %4380
        %v4382 = vsel %vm1131, %v4244, -inf
        %4383 = vmax.xlane.f32.xlu0 %v4382
        %v4384 = vpop.xlane.xlu0 %4383
        %v4385 = vsel %vm1131, %v4247, -inf
        %4386 = vmax.xlane.f32.xlu0 %v4385
        %v4387 = vpop.xlane.xlu0 %4386
        %v4388 = vsel %vm1131, %v4295, -inf
        %4389 = vmax.xlane.f32.xlu0 %v4388
        %v4390 = vpop.xlane.xlu0 %4389
        %v4391 = vsel %vm1131, %v4298, -inf
        %4392 = vmax.xlane.f32.xlu0 %v4391
        %v4393 = vpop.xlane.xlu0 %4392
        %v4394 = vsel %vm1131, %v4346, -inf
        %4395 = vmax.xlane.f32.xlu0 %v4394
        %v4396 = vpop.xlane.xlu0 %4395
        %v4397 = vsel %vm1131, %v4349, -inf
        %4398 = vmax.xlane.f32.xlu0 %v4397
        %v4399 = vpop.xlane.xlu0 %4398
        %v4400 = vsub.f32 %v3989, %v4354
        %v4401 = vsub.f32 %v3992, %v4357
        %v4402 = vsub.f32 %v4040, %v4360
        %v4403 = vsub.f32 %v4043, %v4363
        %v4404 = vsub.f32 %v4091, %v4366
        %v4405 = vsub.f32 %v4094, %v4369
        %v4406 = vsub.f32 %v4142, %v4372
        %v4407 = vsub.f32 %v4145, %v4375
        %v4408 = vsub.f32 %v4193, %v4378
        %v4409 = vsub.f32 %v4196, %v4381
        %v4410 = vsub.f32 %v4244, %v4384
        %v4411 = vsub.f32 %v4247, %v4387
        %v4412 = vsub.f32 %v4295, %v4390
        %v4413 = vsub.f32 %v4298, %v4393
        %v4414 = vsub.f32 %v4346, %v4396
        %v4415 = vsub.f32 %v4349, %v4399
        %v4416 = vmul.f32 %v4400, 1.442695
        %v4417 = vpow.pop %v4416
        %v4418 = vmul.f32 %v4401, 1.442695
        %v4419 = vpow.pop %v4418
        %v4420 = vmul.f32 %v4402, 1.442695
        %v4421 = vpow.pop %v4420
        %v4422 = vmul.f32 %v4403, 1.442695
        %v4423 = vpow.pop %v4422
        %v4424 = vmul.f32 %v4404, 1.442695
        %v4425 = vpow.pop %v4424
        %v4426 = vmul.f32 %v4405, 1.442695
        %v4427 = vpow.pop %v4426
        %v4428 = vmul.f32 %v4406, 1.442695
        %v4429 = vpow.pop %v4428
        %v4430 = vmul.f32 %v4407, 1.442695
        %v4431 = vpow.pop %v4430
        %v4432 = vmul.f32 %v4408, 1.442695
        %v4433 = vpow.pop %v4432
        %v4434 = vmul.f32 %v4409, 1.442695
        %v4435 = vpow.pop %v4434
        %v4436 = vmul.f32 %v4410, 1.442695
        %v4437 = vpow.pop %v4436
        %v4438 = vmul.f32 %v4411, 1.442695
        %v4439 = vpow.pop %v4438
        %v4440 = vmul.f32 %v4412, 1.442695
        %v4441 = vpow.pop %v4440
        %v4442 = vmul.f32 %v4413, 1.442695
        %v4443 = vpow.pop %v4442
        %v4444 = vmul.f32 %v4414, 1.442695
        %v4445 = vpow.pop %v4444
        %v4446 = vmul.f32 %v4415, 1.442695
        %v4447 = vpow.pop %v4446
        %v4448 = vsel %vm1131, %v4417, 0.0
        %4449 = vadd.xlane.f32.xlu0 %v4448
        %v4450 = vpop.xlane.xlu0 %4449
        %v4451 = vsel %vm1131, %v4419, 0.0
        %4452 = vadd.xlane.f32.xlu0 %v4451
        %v4453 = vpop.xlane.xlu0 %4452
        %v4454 = vsel %vm1131, %v4421, 0.0
        %4455 = vadd.xlane.f32.xlu0 %v4454
        %v4456 = vpop.xlane.xlu0 %4455
        %v4457 = vsel %vm1131, %v4423, 0.0
        %4458 = vadd.xlane.f32.xlu0 %v4457
        %v4459 = vpop.xlane.xlu0 %4458
        %v4460 = vsel %vm1131, %v4425, 0.0
        %4461 = vadd.xlane.f32.xlu0 %v4460
        %v4462 = vpop.xlane.xlu0 %4461
        %v4463 = vsel %vm1131, %v4427, 0.0
        %4464 = vadd.xlane.f32.xlu0 %v4463
        %v4465 = vpop.xlane.xlu0 %4464
        %v4466 = vsel %vm1131, %v4429, 0.0
        %4467 = vadd.xlane.f32.xlu0 %v4466
        %v4468 = vpop.xlane.xlu0 %4467
        %v4469 = vsel %vm1131, %v4431, 0.0
        %4470 = vadd.xlane.f32.xlu0 %v4469
        %v4471 = vpop.xlane.xlu0 %4470
        %v4472 = vsel %vm1131, %v4433, 0.0
        %4473 = vadd.xlane.f32.xlu0 %v4472
        %v4474 = vpop.xlane.xlu0 %4473
        %v4475 = vsel %vm1131, %v4435, 0.0
        %4476 = vadd.xlane.f32.xlu0 %v4475
        %v4477 = vpop.xlane.xlu0 %4476
        %v4478 = vsel %vm1131, %v4437, 0.0
        %4479 = vadd.xlane.f32.xlu0 %v4478
        %v4480 = vpop.xlane.xlu0 %4479
        %v4481 = vsel %vm1131, %v4439, 0.0
        %4482 = vadd.xlane.f32.xlu0 %v4481
        %v4483 = vpop.xlane.xlu0 %4482
        %v4484 = vsel %vm1131, %v4441, 0.0
        %4485 = vadd.xlane.f32.xlu0 %v4484
        %v4486 = vpop.xlane.xlu0 %4485
        %v4487 = vsel %vm1131, %v4443, 0.0
        %4488 = vadd.xlane.f32.xlu0 %v4487
        %v4489 = vpop.xlane.xlu0 %4488
        %v4490 = vsel %vm1131, %v4445, 0.0
        %4491 = vadd.xlane.f32.xlu0 %v4490
        %v4492 = vpop.xlane.xlu0 %4491
        %v4493 = vsel %vm1131, %v4447, 0.0
        %4494 = vadd.xlane.f32.xlu0 %v4493
        %v4495 = vpop.xlane.xlu0 %4494
        %v4496 = vrcp.pop %v4450
        %v4497 = vrcp.pop %v4453
        %v4498 = vrcp.pop %v4456
        %v4499 = vrcp.pop %v4459
        %v4500 = vrcp.pop %v4462
        %v4501 = vrcp.pop %v4465
        %v4502 = vrcp.pop %v4468
        %v4503 = vrcp.pop %v4471
        %v4504 = vrcp.pop %v4474
        %v4505 = vrcp.pop %v4477
        %v4506 = vrcp.pop %v4480
        %v4507 = vrcp.pop %v4483
        %v4508 = vrcp.pop %v4486
        %v4509 = vrcp.pop %v4489
        %v4510 = vrcp.pop %v4492
        %v4511 = vrcp.pop %v4495
        %v4512 = vmul.f32 %v4417, %v4496
        %v4513 = vmul.f32 %v4419, %v4497
        %v4514 = vmul.f32 %v4421, %v4498
        %v4515 = vmul.f32 %v4423, %v4499
        %v4516 = vmul.f32 %v4425, %v4500
        %v4517 = vmul.f32 %v4427, %v4501
        %v4518 = vmul.f32 %v4429, %v4502
        %v4519 = vmul.f32 %v4431, %v4503
        %v4520 = vmul.f32 %v4433, %v4504
        %v4521 = vmul.f32 %v4435, %v4505
        %v4522 = vmul.f32 %v4437, %v4506
        %v4523 = vmul.f32 %v4439, %v4507
        %v4524 = vmul.f32 %v4441, %v4508
        %v4525 = vmul.f32 %v4443, %v4509
        %v4526 = vmul.f32 %v4445, %v4510
        %v4527 = vmul.f32 %v4447, %v4511
        %v4528 = vpack.c.bf16 %v4513, %v4512
        %v4529 = vpack.c.bf16 %v4515, %v4514
        %v4530 = vpack.c.bf16 %v4517, %v4516
        %v4531 = vpack.c.bf16 %v4519, %v4518
        %v4532 = vpack.c.bf16 %v4521, %v4520
        %v4533 = vpack.c.bf16 %v4523, %v4522
        %v4534 = vpack.c.bf16 %v4525, %v4524
        %v4535 = vpack.c.bf16 %v4527, %v4526
        %4536 = vrot.lane.b32.xlu0 %v728, 32
        %v4537 = vpop.permute.xlu0 %4536
        %v4540 = vsel %vm1131, %v4528, 0
        %4542 = vmatprep.subr.bf16.mxu0 0
        %4543 = vmatpush1.bf16.msra.mxu0 0
        %4544 = vmatprep.subr.bf16.mxu0 0
        %4545 = vmatpush1.bf16.msra.mxu0 0
        %4546 = vmatprep.subr.bf16.mxu0 0
        %4547 = vmatpush1.bf16.msra.mxu0 0
        %4548 = vmatprep.subr.bf16.mxu0 0
        %4549 = vmatpush1.bf16.msra.mxu0 0
        %4550 = vmatprep.subr.bf16.mxu0 0
        %4551 = vmatpush1.bf16.msra.mxu0 0
        %4552 = vmatprep.subr.bf16.mxu0 0
        %4553 = vmatpush1.bf16.msra.mxu0 0
        %4554 = vmatprep.subr.bf16.mxu0 0
        %4555 = vmatpush1.bf16.msra.mxu0 0
        %4556 = vmatprep.subr.bf16.mxu0 0
        %4557 = vmatpush1.bf16.msra.mxu0 %v4537
        %4558 = vmatprep.subr.bf16.mxu0 0
        %4559 = vmatpush2.bf16.msra.mxu0 0
        %4560 = vmatprep.subr.bf16.mxu0 0
        %4561 = vmatpush2.bf16.msra.mxu0 0
        %4562 = vmatprep.subr.bf16.mxu0 0
        %4563 = vmatpush2.bf16.msra.mxu0 0
        %4564 = vmatprep.subr.bf16.mxu0 0
        %4565 = vmatpush2.bf16.msra.mxu0 0
        %4566 = vmatprep.subr.bf16.mxu0 0
        %4567 = vmatpush2.bf16.msra.mxu0 0
        %4568 = vmatprep.subr.bf16.mxu0 0
        %4569 = vmatpush2.bf16.msra.mxu0 0
        %4570 = vmatprep.subr.bf16.mxu0 0
        %4571 = vmatpush2.bf16.msra.mxu0 0
        %4572 = vmatprep.subr.bf16.mxu0 0
        %4573 = vmatpush2.bf16.msra.mxu0 0
        %4574 = vmatprep.mubr.bf16.mxu0 0
        %4575 = vmatmul.mubr.bf16.gmra.mxu0 %v4540
        %v4576 = vpop.f32.mrf.mxu0
        %v4577 = vadd.f32 0.0, %v4576
        %v4578 = vpop.f32.mrf.mxu0
        %v4579 = vpop.f32.mrf.mxu0
        %v4580 = vadd.f32 0.0, %v4579
        %v4581 = vpop.f32.mrf.mxu0
        %4582 = vdwg.mxu0
        %4583 = vrot.lane.b32.xlu0 %v731, 32
        %v4584 = vpop.permute.xlu0 %4583
        %v4587 = vsel %vm1131, %v4529, 0
        %4589 = vmatprep.subr.bf16.mxu0 0
        %4590 = vmatpush1.bf16.msra.mxu0 0
        %4591 = vmatprep.subr.bf16.mxu0 0
        %4592 = vmatpush1.bf16.msra.mxu0 0
        %4593 = vmatprep.subr.bf16.mxu0 0
        %4594 = vmatpush1.bf16.msra.mxu0 0
        %4595 = vmatprep.subr.bf16.mxu0 0
        %4596 = vmatpush1.bf16.msra.mxu0 0
        %4597 = vmatprep.subr.bf16.mxu0 0
        %4598 = vmatpush1.bf16.msra.mxu0 0
        %4599 = vmatprep.subr.bf16.mxu0 0
        %4600 = vmatpush1.bf16.msra.mxu0 0
        %4601 = vmatprep.subr.bf16.mxu0 0
        %4602 = vmatpush1.bf16.msra.mxu0 0
        %4603 = vmatprep.subr.bf16.mxu0 0
        %4604 = vmatpush1.bf16.msra.mxu0 %v4584
        %4605 = vmatprep.subr.bf16.mxu0 0
        %4606 = vmatpush2.bf16.msra.mxu0 0
        %4607 = vmatprep.subr.bf16.mxu0 0
        %4608 = vmatpush2.bf16.msra.mxu0 0
        %4609 = vmatprep.subr.bf16.mxu0 0
        %4610 = vmatpush2.bf16.msra.mxu0 0
        %4611 = vmatprep.subr.bf16.mxu0 0
        %4612 = vmatpush2.bf16.msra.mxu0 0
        %4613 = vmatprep.subr.bf16.mxu0 0
        %4614 = vmatpush2.bf16.msra.mxu0 0
        %4615 = vmatprep.subr.bf16.mxu0 0
        %4616 = vmatpush2.bf16.msra.mxu0 0
        %4617 = vmatprep.subr.bf16.mxu0 0
        %4618 = vmatpush2.bf16.msra.mxu0 0
        %4619 = vmatprep.subr.bf16.mxu0 0
        %4620 = vmatpush2.bf16.msra.mxu0 0
        %4621 = vmatprep.mubr.bf16.mxu0 0
        %4622 = vmatmul.mubr.bf16.gmra.mxu0 %v4587
        %v4623 = vpop.f32.mrf.mxu0
        %v4624 = vadd.f32 0.0, %v4623
        %v4625 = vpop.f32.mrf.mxu0
        %v4626 = vpop.f32.mrf.mxu0
        %v4627 = vadd.f32 0.0, %v4626
        %v4628 = vpop.f32.mrf.mxu0
        %4629 = vdwg.mxu0
        %4630 = vrot.lane.b32.xlu0 %v734, 32
        %v4631 = vpop.permute.xlu0 %4630
        %v4634 = vsel %vm1131, %v4530, 0
        %4636 = vmatprep.subr.bf16.mxu0 0
        %4637 = vmatpush1.bf16.msra.mxu0 0
        %4638 = vmatprep.subr.bf16.mxu0 0
        %4639 = vmatpush1.bf16.msra.mxu0 0
        %4640 = vmatprep.subr.bf16.mxu0 0
        %4641 = vmatpush1.bf16.msra.mxu0 0
        %4642 = vmatprep.subr.bf16.mxu0 0
        %4643 = vmatpush1.bf16.msra.mxu0 0
        %4644 = vmatprep.subr.bf16.mxu0 0
        %4645 = vmatpush1.bf16.msra.mxu0 0
        %4646 = vmatprep.subr.bf16.mxu0 0
        %4647 = vmatpush1.bf16.msra.mxu0 0
        %4648 = vmatprep.subr.bf16.mxu0 0
        %4649 = vmatpush1.bf16.msra.mxu0 0
        %4650 = vmatprep.subr.bf16.mxu0 0
        %4651 = vmatpush1.bf16.msra.mxu0 %v4631
        %4652 = vmatprep.subr.bf16.mxu0 0
        %4653 = vmatpush2.bf16.msra.mxu0 0
        %4654 = vmatprep.subr.bf16.mxu0 0
        %4655 = vmatpush2.bf16.msra.mxu0 0
        %4656 = vmatprep.subr.bf16.mxu0 0
        %4657 = vmatpush2.bf16.msra.mxu0 0
        %4658 = vmatprep.subr.bf16.mxu0 0
        %4659 = vmatpush2.bf16.msra.mxu0 0
        %4660 = vmatprep.subr.bf16.mxu0 0
        %4661 = vmatpush2.bf16.msra.mxu0 0
        %4662 = vmatprep.subr.bf16.mxu0 0
        %4663 = vmatpush2.bf16.msra.mxu0 0
        %4664 = vmatprep.subr.bf16.mxu0 0
        %4665 = vmatpush2.bf16.msra.mxu0 0
        %4666 = vmatprep.subr.bf16.mxu0 0
        %4667 = vmatpush2.bf16.msra.mxu0 0
        %4668 = vmatprep.mubr.bf16.mxu0 0
        %4669 = vmatmul.mubr.bf16.gmra.mxu0 %v4634
        %v4670 = vpop.f32.mrf.mxu0
        %v4671 = vadd.f32 0.0, %v4670
        %v4672 = vpop.f32.mrf.mxu0
        %v4673 = vpop.f32.mrf.mxu0
        %v4674 = vadd.f32 0.0, %v4673
        %v4675 = vpop.f32.mrf.mxu0
        %4676 = vdwg.mxu0
        %4677 = vrot.lane.b32.xlu0 %v737, 32
        %v4678 = vpop.permute.xlu0 %4677
        %v4681 = vsel %vm1131, %v4531, 0
        %4683 = vmatprep.subr.bf16.mxu0 0
        %4684 = vmatpush1.bf16.msra.mxu0 0
        %4685 = vmatprep.subr.bf16.mxu0 0
        %4686 = vmatpush1.bf16.msra.mxu0 0
        %4687 = vmatprep.subr.bf16.mxu0 0
        %4688 = vmatpush1.bf16.msra.mxu0 0
        %4689 = vmatprep.subr.bf16.mxu0 0
        %4690 = vmatpush1.bf16.msra.mxu0 0
        %4691 = vmatprep.subr.bf16.mxu0 0
        %4692 = vmatpush1.bf16.msra.mxu0 0
        %4693 = vmatprep.subr.bf16.mxu0 0
        %4694 = vmatpush1.bf16.msra.mxu0 0
        %4695 = vmatprep.subr.bf16.mxu0 0
        %4696 = vmatpush1.bf16.msra.mxu0 0
        %4697 = vmatprep.subr.bf16.mxu0 0
        %4698 = vmatpush1.bf16.msra.mxu0 %v4678
        %4699 = vmatprep.subr.bf16.mxu0 0
        %4700 = vmatpush2.bf16.msra.mxu0 0
        %4701 = vmatprep.subr.bf16.mxu0 0
        %4702 = vmatpush2.bf16.msra.mxu0 0
        %4703 = vmatprep.subr.bf16.mxu0 0
        %4704 = vmatpush2.bf16.msra.mxu0 0
        %4705 = vmatprep.subr.bf16.mxu0 0
        %4706 = vmatpush2.bf16.msra.mxu0 0
        %4707 = vmatprep.subr.bf16.mxu0 0
        %4708 = vmatpush2.bf16.msra.mxu0 0
        %4709 = vmatprep.subr.bf16.mxu0 0
        %4710 = vmatpush2.bf16.msra.mxu0 0
        %4711 = vmatprep.subr.bf16.mxu0 0
        %4712 = vmatpush2.bf16.msra.mxu0 0
        %4713 = vmatprep.subr.bf16.mxu0 0
        %4714 = vmatpush2.bf16.msra.mxu0 0
        %4715 = vmatprep.mubr.bf16.mxu0 0
        %4716 = vmatmul.mubr.bf16.gmra.mxu0 %v4681
        %v4717 = vpop.f32.mrf.mxu0
        %v4718 = vadd.f32 0.0, %v4717
        %v4719 = vpop.f32.mrf.mxu0
        %v4720 = vpop.f32.mrf.mxu0
        %v4721 = vadd.f32 0.0, %v4720
        %v4722 = vpop.f32.mrf.mxu0
        %4723 = vdwg.mxu0
        %4724 = vrot.lane.b32.xlu0 %v740, 32
        %v4725 = vpop.permute.xlu0 %4724
        %v4728 = vsel %vm1131, %v4532, 0
        %4730 = vmatprep.subr.bf16.mxu0 0
        %4731 = vmatpush1.bf16.msra.mxu0 0
        %4732 = vmatprep.subr.bf16.mxu0 0
        %4733 = vmatpush1.bf16.msra.mxu0 0
        %4734 = vmatprep.subr.bf16.mxu0 0
        %4735 = vmatpush1.bf16.msra.mxu0 0
        %4736 = vmatprep.subr.bf16.mxu0 0
        %4737 = vmatpush1.bf16.msra.mxu0 0
        %4738 = vmatprep.subr.bf16.mxu0 0
        %4739 = vmatpush1.bf16.msra.mxu0 0
        %4740 = vmatprep.subr.bf16.mxu0 0
        %4741 = vmatpush1.bf16.msra.mxu0 0
        %4742 = vmatprep.subr.bf16.mxu0 0
        %4743 = vmatpush1.bf16.msra.mxu0 0
        %4744 = vmatprep.subr.bf16.mxu0 0
        %4745 = vmatpush1.bf16.msra.mxu0 %v4725
        %4746 = vmatprep.subr.bf16.mxu0 0
        %4747 = vmatpush2.bf16.msra.mxu0 0
        %4748 = vmatprep.subr.bf16.mxu0 0
        %4749 = vmatpush2.bf16.msra.mxu0 0
        %4750 = vmatprep.subr.bf16.mxu0 0
        %4751 = vmatpush2.bf16.msra.mxu0 0
        %4752 = vmatprep.subr.bf16.mxu0 0
        %4753 = vmatpush2.bf16.msra.mxu0 0
        %4754 = vmatprep.subr.bf16.mxu0 0
        %4755 = vmatpush2.bf16.msra.mxu0 0
        %4756 = vmatprep.subr.bf16.mxu0 0
        %4757 = vmatpush2.bf16.msra.mxu0 0
        %4758 = vmatprep.subr.bf16.mxu0 0
        %4759 = vmatpush2.bf16.msra.mxu0 0
        %4760 = vmatprep.subr.bf16.mxu0 0
        %4761 = vmatpush2.bf16.msra.mxu0 0
        %4762 = vmatprep.mubr.bf16.mxu0 0
        %4763 = vmatmul.mubr.bf16.gmra.mxu0 %v4728
        %v4764 = vpop.f32.mrf.mxu0
        %v4765 = vadd.f32 0.0, %v4764
        %v4766 = vpop.f32.mrf.mxu0
        %v4767 = vpop.f32.mrf.mxu0
        %v4768 = vadd.f32 0.0, %v4767
        %v4769 = vpop.f32.mrf.mxu0
        %4770 = vdwg.mxu0
        %4771 = vrot.lane.b32.xlu0 %v743, 32
        %v4772 = vpop.permute.xlu0 %4771
        %v4775 = vsel %vm1131, %v4533, 0
        %4777 = vmatprep.subr.bf16.mxu0 0
        %4778 = vmatpush1.bf16.msra.mxu0 0
        %4779 = vmatprep.subr.bf16.mxu0 0
        %4780 = vmatpush1.bf16.msra.mxu0 0
        %4781 = vmatprep.subr.bf16.mxu0 0
        %4782 = vmatpush1.bf16.msra.mxu0 0
        %4783 = vmatprep.subr.bf16.mxu0 0
        %4784 = vmatpush1.bf16.msra.mxu0 0
        %4785 = vmatprep.subr.bf16.mxu0 0
        %4786 = vmatpush1.bf16.msra.mxu0 0
        %4787 = vmatprep.subr.bf16.mxu0 0
        %4788 = vmatpush1.bf16.msra.mxu0 0
        %4789 = vmatprep.subr.bf16.mxu0 0
        %4790 = vmatpush1.bf16.msra.mxu0 0
        %4791 = vmatprep.subr.bf16.mxu0 0
        %4792 = vmatpush1.bf16.msra.mxu0 %v4772
        %4793 = vmatprep.subr.bf16.mxu0 0
        %4794 = vmatpush2.bf16.msra.mxu0 0
        %4795 = vmatprep.subr.bf16.mxu0 0
        %4796 = vmatpush2.bf16.msra.mxu0 0
        %4797 = vmatprep.subr.bf16.mxu0 0
        %4798 = vmatpush2.bf16.msra.mxu0 0
        %4799 = vmatprep.subr.bf16.mxu0 0
        %4800 = vmatpush2.bf16.msra.mxu0 0
        %4801 = vmatprep.subr.bf16.mxu0 0
        %4802 = vmatpush2.bf16.msra.mxu0 0
        %4803 = vmatprep.subr.bf16.mxu0 0
        %4804 = vmatpush2.bf16.msra.mxu0 0
        %4805 = vmatprep.subr.bf16.mxu0 0
        %4806 = vmatpush2.bf16.msra.mxu0 0
        %4807 = vmatprep.subr.bf16.mxu0 0
        %4808 = vmatpush2.bf16.msra.mxu0 0
        %4809 = vmatprep.mubr.bf16.mxu0 0
        %4810 = vmatmul.mubr.bf16.gmra.mxu0 %v4775
        %v4811 = vpop.f32.mrf.mxu0
        %v4812 = vadd.f32 0.0, %v4811
        %v4813 = vpop.f32.mrf.mxu0
        %v4814 = vpop.f32.mrf.mxu0
        %v4815 = vadd.f32 0.0, %v4814
        %v4816 = vpop.f32.mrf.mxu0
        %4817 = vdwg.mxu0
        %4818 = vrot.lane.b32.xlu0 %v746, 32
        %v4819 = vpop.permute.xlu0 %4818
        %v4822 = vsel %vm1131, %v4534, 0
        %4824 = vmatprep.subr.bf16.mxu0 0
        %4825 = vmatpush1.bf16.msra.mxu0 0
        %4826 = vmatprep.subr.bf16.mxu0 0
        %4827 = vmatpush1.bf16.msra.mxu0 0
        %4828 = vmatprep.subr.bf16.mxu0 0
        %4829 = vmatpush1.bf16.msra.mxu0 0
        %4830 = vmatprep.subr.bf16.mxu0 0
        %4831 = vmatpush1.bf16.msra.mxu0 0
        %4832 = vmatprep.subr.bf16.mxu0 0
        %4833 = vmatpush1.bf16.msra.mxu0 0
        %4834 = vmatprep.subr.bf16.mxu0 0
        %4835 = vmatpush1.bf16.msra.mxu0 0
        %4836 = vmatprep.subr.bf16.mxu0 0
        %4837 = vmatpush1.bf16.msra.mxu0 0
        %4838 = vmatprep.subr.bf16.mxu0 0
        %4839 = vmatpush1.bf16.msra.mxu0 %v4819
        %4840 = vmatprep.subr.bf16.mxu0 0
        %4841 = vmatpush2.bf16.msra.mxu0 0
        %4842 = vmatprep.subr.bf16.mxu0 0
        %4843 = vmatpush2.bf16.msra.mxu0 0
        %4844 = vmatprep.subr.bf16.mxu0 0
        %4845 = vmatpush2.bf16.msra.mxu0 0
        %4846 = vmatprep.subr.bf16.mxu0 0
        %4847 = vmatpush2.bf16.msra.mxu0 0
        %4848 = vmatprep.subr.bf16.mxu0 0
        %4849 = vmatpush2.bf16.msra.mxu0 0
        %4850 = vmatprep.subr.bf16.mxu0 0
        %4851 = vmatpush2.bf16.msra.mxu0 0
        %4852 = vmatprep.subr.bf16.mxu0 0
        %4853 = vmatpush2.bf16.msra.mxu0 0
        %4854 = vmatprep.subr.bf16.mxu0 0
        %4855 = vmatpush2.bf16.msra.mxu0 0
        %4856 = vmatprep.mubr.bf16.mxu0 0
        %4857 = vmatmul.mubr.bf16.gmra.mxu0 %v4822
        %v4858 = vpop.f32.mrf.mxu0
        %v4859 = vadd.f32 0.0, %v4858
        %v4860 = vpop.f32.mrf.mxu0
        %v4861 = vpop.f32.mrf.mxu0
        %v4862 = vadd.f32 0.0, %v4861
        %v4863 = vpop.f32.mrf.mxu0
        %4864 = vdwg.mxu0
        %4865 = vrot.lane.b32.xlu0 %v749, 32
        %v4866 = vpop.permute.xlu0 %4865
        %v4869 = vsel %vm1131, %v4535, 0
        %4871 = vmatprep.subr.bf16.mxu0 0
        %4872 = vmatpush1.bf16.msra.mxu0 0
        %4873 = vmatprep.subr.bf16.mxu0 0
        %4874 = vmatpush1.bf16.msra.mxu0 0
        %4875 = vmatprep.subr.bf16.mxu0 0
        %4876 = vmatpush1.bf16.msra.mxu0 0
        %4877 = vmatprep.subr.bf16.mxu0 0
        %4878 = vmatpush1.bf16.msra.mxu0 0
        %4879 = vmatprep.subr.bf16.mxu0 0
        %4880 = vmatpush1.bf16.msra.mxu0 0
        %4881 = vmatprep.subr.bf16.mxu0 0
        %4882 = vmatpush1.bf16.msra.mxu0 0
        %4883 = vmatprep.subr.bf16.mxu0 0
        %4884 = vmatpush1.bf16.msra.mxu0 0
        %4885 = vmatprep.subr.bf16.mxu0 0
        %4886 = vmatpush1.bf16.msra.mxu0 %v4866
        %4887 = vmatprep.subr.bf16.mxu0 0
        %4888 = vmatpush2.bf16.msra.mxu0 0
        %4889 = vmatprep.subr.bf16.mxu0 0
        %4890 = vmatpush2.bf16.msra.mxu0 0
        %4891 = vmatprep.subr.bf16.mxu0 0
        %4892 = vmatpush2.bf16.msra.mxu0 0
        %4893 = vmatprep.subr.bf16.mxu0 0
        %4894 = vmatpush2.bf16.msra.mxu0 0
        %4895 = vmatprep.subr.bf16.mxu0 0
        %4896 = vmatpush2.bf16.msra.mxu0 0
        %4897 = vmatprep.subr.bf16.mxu0 0
        %4898 = vmatpush2.bf16.msra.mxu0 0
        %4899 = vmatprep.subr.bf16.mxu0 0
        %4900 = vmatpush2.bf16.msra.mxu0 0
        %4901 = vmatprep.subr.bf16.mxu0 0
        %4902 = vmatpush2.bf16.msra.mxu0 0
        %4903 = vmatprep.mubr.bf16.mxu0 0
        %4904 = vmatmul.mubr.bf16.gmra.mxu0 %v4869
        %v4905 = vpop.f32.mrf.mxu0
        %v4906 = vadd.f32 0.0, %v4905
        %v4907 = vpop.f32.mrf.mxu0
        %v4908 = vpop.f32.mrf.mxu0
        %v4909 = vadd.f32 0.0, %v4908
        %v4910 = vpop.f32.mrf.mxu0
        %4911 = vdwg.mxu0
        %v4912 = vpack.c.bf16 %v4580, %v4577
        %v4913 = vpack.c.bf16 %v4627, %v4624
        %v4914 = vpack.c.bf16 %v4674, %v4671
        %v4915 = vpack.c.bf16 %v4721, %v4718
        %v4916 = vpack.c.bf16 %v4768, %v4765
        %v4917 = vpack.c.bf16 %v4815, %v4812
        %v4918 = vpack.c.bf16 %v4862, %v4859
        %v4919 = vpack.c.bf16 %v4909, %v4906
        %v4928 = vunpack.c.l.b16 %v4912
        %v4929 = vunpack.c.h.b16 %v4912
        %v4930 = vunpack.c.l.b16 %v4913
        %v4931 = vunpack.c.h.b16 %v4913
        %v4932 = vunpack.c.l.b16 %v4914
        %v4933 = vunpack.c.h.b16 %v4914
        %v4934 = vunpack.c.l.b16 %v4915
        %v4935 = vunpack.c.h.b16 %v4915
        %v4936 = vunpack.c.l.b16 %v4916
        %v4937 = vunpack.c.h.b16 %v4916
        %v4938 = vunpack.c.l.b16 %v4917
        %v4939 = vunpack.c.h.b16 %v4917
        %v4940 = vunpack.c.l.b16 %v4918
        %v4941 = vunpack.c.h.b16 %v4918
        %v4942 = vunpack.c.l.b16 %v4919
        %v4943 = vunpack.c.h.b16 %v4919
        %v4944 = vpack.c.b16 %v4928, %v4928
        %v4945 = vpack.c.b16 %v4929, %v4929
        %v4946 = vpack.c.b16 %v4930, %v4930
        %v4947 = vpack.c.b16 %v4931, %v4931
        %v4948 = vpack.c.b16 %v4932, %v4932
        %v4949 = vpack.c.b16 %v4933, %v4933
        %v4950 = vpack.c.b16 %v4934, %v4934
        %v4951 = vpack.c.b16 %v4935, %v4935
        %v4952 = vpack.c.b16 %v4936, %v4936
        %v4953 = vpack.c.b16 %v4937, %v4937
        %v4954 = vpack.c.b16 %v4938, %v4938
        %v4955 = vpack.c.b16 %v4939, %v4939
        %v4956 = vpack.c.b16 %v4940, %v4940
        %v4957 = vpack.c.b16 %v4941, %v4941
        %v4958 = vpack.c.b16 %v4942, %v4942
        %v4959 = vpack.c.b16 %v4943, %v4943
        %4960 = vrot.lane.b32.xlu0 %v4944, 96
        %v4961 = vpop.permute.xlu0 %4960
        %4962 = vrot.lane.b32.xlu0 %v4945, 96
        %v4963 = vpop.permute.xlu0 %4962
        %4964 = vrot.lane.b32.xlu0 %v4946, 96
        %v4965 = vpop.permute.xlu0 %4964
        %4966 = vrot.lane.b32.xlu0 %v4947, 96
        %v4967 = vpop.permute.xlu0 %4966
        %4968 = vrot.lane.b32.xlu0 %v4948, 96
        %v4969 = vpop.permute.xlu0 %4968
        %4970 = vrot.lane.b32.xlu0 %v4949, 96
        %v4971 = vpop.permute.xlu0 %4970
        %4972 = vrot.lane.b32.xlu0 %v4950, 96
        %v4973 = vpop.permute.xlu0 %4972
        %4974 = vrot.lane.b32.xlu0 %v4951, 96
        %v4975 = vpop.permute.xlu0 %4974
        %4976 = vrot.lane.b32.xlu0 %v4952, 96
        %v4977 = vpop.permute.xlu0 %4976
        %4978 = vrot.lane.b32.xlu0 %v4953, 96
        %v4979 = vpop.permute.xlu0 %4978
        %4980 = vrot.lane.b32.xlu0 %v4954, 96
        %v4981 = vpop.permute.xlu0 %4980
        %4982 = vrot.lane.b32.xlu0 %v4955, 96
        %v4983 = vpop.permute.xlu0 %4982
        %4984 = vrot.lane.b32.xlu0 %v4956, 96
        %v4985 = vpop.permute.xlu0 %4984
        %4986 = vrot.lane.b32.xlu0 %v4957, 96
        %v4987 = vpop.permute.xlu0 %4986
        %4988 = vrot.lane.b32.xlu0 %v4958, 96
        %v4989 = vpop.permute.xlu0 %4988
        %4990 = vrot.lane.b32.xlu0 %v4959, 96
        %v4991 = vpop.permute.xlu0 %4990
        %vm5008 = vcmask 1044224
        %5009 = vst.msk [vmem:[#allocation2] sm:$0xf] %vm5008, %v4961
        %5010 = vst.msk [vmem:[#allocation2 + $0x4] sm:$0xf] %vm5008, %v4963
        %5011 = vst.msk [vmem:[#allocation2 + $0x8] sm:$0xf] %vm5008, %v4965
        %5012 = vst.msk [vmem:[#allocation2 + $0xc] sm:$0xf] %vm5008, %v4967
        %5013 = vst.msk [vmem:[#allocation2 + $0x10] sm:$0xf] %vm5008, %v4969
        %5014 = vst.msk [vmem:[#allocation2 + $0x14] sm:$0xf] %vm5008, %v4971
        %5015 = vst.msk [vmem:[#allocation2 + $0x18] sm:$0xf] %vm5008, %v4973
        %5016 = vst.msk [vmem:[#allocation2 + $0x1c] sm:$0xf] %vm5008, %v4975
        %5017 = vst.msk [vmem:[#allocation2 + $0x20] sm:$0xf] %vm5008, %v4977
        %5018 = vst.msk [vmem:[#allocation2 + $0x24] sm:$0xf] %vm5008, %v4979
        %5019 = vst.msk [vmem:[#allocation2 + $0x28] sm:$0xf] %vm5008, %v4981
        %5020 = vst.msk [vmem:[#allocation2 + $0x2c] sm:$0xf] %vm5008, %v4983
        %5021 = vst.msk [vmem:[#allocation2 + $0x30] sm:$0xf] %vm5008, %v4985
        %5022 = vst.msk [vmem:[#allocation2 + $0x34] sm:$0xf] %vm5008, %v4987
        %5023 = vst.msk [vmem:[#allocation2 + $0x38] sm:$0xf] %vm5008, %v4989
        %5024 = vst.msk [vmem:[#allocation2 + $0x3c] sm:$0xf] %vm5008, %v4991
        %v5025 = vld [vmem:[#allocation2] sm:$0xf]
        %v5026 = vld [vmem:[#allocation2 + $0x4] sm:$0xf]
        %v5027 = vld [vmem:[#allocation2 + $0x8] sm:$0xf]
        %v5028 = vld [vmem:[#allocation2 + $0xc] sm:$0xf]
        %v5029 = vld [vmem:[#allocation2 + $0x10] sm:$0xf]
        %v5030 = vld [vmem:[#allocation2 + $0x14] sm:$0xf]
        %v5031 = vld [vmem:[#allocation2 + $0x18] sm:$0xf]
        %v5032 = vld [vmem:[#allocation2 + $0x1c] sm:$0xf]
        %v5033 = vld [vmem:[#allocation2 + $0x20] sm:$0xf]
        %v5034 = vld [vmem:[#allocation2 + $0x24] sm:$0xf]
        %v5035 = vld [vmem:[#allocation2 + $0x28] sm:$0xf]
        %v5036 = vld [vmem:[#allocation2 + $0x2c] sm:$0xf]
        %v5037 = vld [vmem:[#allocation2 + $0x30] sm:$0xf]
        %v5038 = vld [vmem:[#allocation2 + $0x34] sm:$0xf]
        %v5039 = vld [vmem:[#allocation2 + $0x38] sm:$0xf]
        %v5040 = vld [vmem:[#allocation2 + $0x3c] sm:$0xf]
        %v5041 = vld [vmem:[#allocation9] sm:$0xf]
        %v5042 = vld [vmem:[#allocation9 + $0x4] sm:$0xf]
        %v5043 = vld [vmem:[#allocation9 + $0x8] sm:$0xf]
        %v5044 = vld [vmem:[#allocation9 + $0xc] sm:$0xf]
        %v5045 = vld [vmem:[#allocation9 + $0x10] sm:$0xf]
        %v5046 = vld [vmem:[#allocation9 + $0x14] sm:$0xf]
        %v5047 = vld [vmem:[#allocation9 + $0x18] sm:$0xf]
        %v5048 = vld [vmem:[#allocation9 + $0x1c] sm:$0xf]
        %v5049 = vld [vmem:[#allocation9 + $0x20] sm:$0xf]
        %v5050 = vld [vmem:[#allocation9 + $0x24] sm:$0xf]
        %v5051 = vld [vmem:[#allocation9 + $0x28] sm:$0xf]
        %v5052 = vld [vmem:[#allocation9 + $0x2c] sm:$0xf]
        %v5053 = vld [vmem:[#allocation9 + $0x30] sm:$0xf]
        %v5054 = vld [vmem:[#allocation9 + $0x34] sm:$0xf]
        %v5055 = vld [vmem:[#allocation9 + $0x38] sm:$0xf]
        %v5056 = vld [vmem:[#allocation9 + $0x3c] sm:$0xf]
        %v5057 = vld [vmem:[%s5] sm:$0x1]
        %v5059 = vlaneseq
        %v5060 = vshrl.u32 %v5059, 7
        %v5061 = vsub.s32 0, %v5060
        %v5062 = vrot.slane %v5057, %v5061
        %v5080 = vunpack.c.l.b16 %v5025
        %v5081 = vunpack.c.l.b16 %v5026
        %v5082 = vunpack.c.l.b16 %v5027
        %v5083 = vunpack.c.l.b16 %v5028
        %v5084 = vunpack.c.l.b16 %v5029
        %v5085 = vunpack.c.l.b16 %v5030
        %v5086 = vunpack.c.l.b16 %v5031
        %v5087 = vunpack.c.l.b16 %v5032
        %v5088 = vunpack.c.l.b16 %v5033
        %v5089 = vunpack.c.l.b16 %v5034
        %v5090 = vunpack.c.l.b16 %v5035
        %v5091 = vunpack.c.l.b16 %v5036
        %v5092 = vunpack.c.l.b16 %v5037
        %v5093 = vunpack.c.l.b16 %v5038
        %v5094 = vunpack.c.l.b16 %v5039
        %v5095 = vunpack.c.l.b16 %v5040
        %v5096 = vpack.c.b16 %v5081, %v5080
        %v5097 = vpack.c.b16 %v5083, %v5082
        %v5098 = vpack.c.b16 %v5085, %v5084
        %v5099 = vpack.c.b16 %v5087, %v5086
        %v5100 = vpack.c.b16 %v5089, %v5088
        %v5101 = vpack.c.b16 %v5091, %v5090
        %v5102 = vpack.c.b16 %v5093, %v5092
        %v5103 = vpack.c.b16 %v5095, %v5094
        %v5128 = vunpack.c.l.b16 %v5041
        %v5129 = vunpack.c.l.b16 %v5042
        %v5130 = vunpack.c.l.b16 %v5043
        %v5131 = vunpack.c.l.b16 %v5044
        %v5132 = vunpack.c.l.b16 %v5045
        %v5133 = vunpack.c.l.b16 %v5046
        %v5134 = vunpack.c.l.b16 %v5047
        %v5135 = vunpack.c.l.b16 %v5048
        %v5136 = vunpack.c.l.b16 %v5049
        %v5137 = vunpack.c.l.b16 %v5050
        %v5138 = vunpack.c.l.b16 %v5051
        %v5139 = vunpack.c.l.b16 %v5052
        %v5140 = vunpack.c.l.b16 %v5053
        %v5141 = vunpack.c.l.b16 %v5054
        %v5142 = vunpack.c.l.b16 %v5055
        %v5143 = vunpack.c.l.b16 %v5056
        %v5144 = vpack.c.b16 %v5129, %v5128
        %v5145 = vpack.c.b16 %v5131, %v5130
        %v5146 = vpack.c.b16 %v5133, %v5132
        %v5147 = vpack.c.b16 %v5135, %v5134
        %v5148 = vpack.c.b16 %v5137, %v5136
        %v5149 = vpack.c.b16 %v5139, %v5138
        %v5150 = vpack.c.b16 %v5141, %v5140
        %v5151 = vpack.c.b16 %v5143, %v5142
        %5160 = vmatprep.subr.bf16.mxu0 0
        %5161 = vmatpush1.bf16.msra.mxu0 %v5151
        %5162 = vmatprep.subr.bf16.mxu0 0
        %5163 = vmatpush1.bf16.msra.mxu0 %v5150
        %5164 = vmatprep.subr.bf16.mxu0 0
        %5165 = vmatpush1.bf16.msra.mxu0 %v5149
        %5166 = vmatprep.subr.bf16.mxu0 0
        %5167 = vmatpush1.bf16.msra.mxu0 %v5148
        %5168 = vmatprep.subr.bf16.mxu0 0
        %5169 = vmatpush1.bf16.msra.mxu0 %v5147
        %5170 = vmatprep.subr.bf16.mxu0 0
        %5171 = vmatpush1.bf16.msra.mxu0 %v5146
        %5172 = vmatprep.subr.bf16.mxu0 0
        %5173 = vmatpush1.bf16.msra.mxu0 %v5145
        %5174 = vmatprep.subr.bf16.mxu0 0
        %5175 = vmatpush1.bf16.msra.mxu0 %v5144
        %5176 = vmatprep.subr.bf16.mxu0 0
        %5177 = vmatpush2.bf16.msra.mxu0 0
        %5178 = vmatprep.subr.bf16.mxu0 0
        %5179 = vmatpush2.bf16.msra.mxu0 0
        %5180 = vmatprep.subr.bf16.mxu0 0
        %5181 = vmatpush2.bf16.msra.mxu0 0
        %5182 = vmatprep.subr.bf16.mxu0 0
        %5183 = vmatpush2.bf16.msra.mxu0 0
        %5184 = vmatprep.subr.bf16.mxu0 0
        %5185 = vmatpush2.bf16.msra.mxu0 0
        %5186 = vmatprep.subr.bf16.mxu0 0
        %5187 = vmatpush2.bf16.msra.mxu0 0
        %5188 = vmatprep.subr.bf16.mxu0 0
        %5189 = vmatpush2.bf16.msra.mxu0 0
        %5190 = vmatprep.subr.bf16.mxu0 0
        %5191 = vmatpush2.bf16.msra.mxu0 0
        %5192 = vmatprep.mubr.bf16.mxu0 0
        %5193 = vmatmul.mubr.bf16.gmra.mxu0 %v5096
        %v5194 = vpop.f32.mrf.mxu0
        %v5195 = vadd.f32 %v5062, %v5194
        %v5196 = vpop.f32.mrf.mxu0
        %v5197 = vpop.f32.mrf.mxu0
        %v5198 = vadd.f32 %v5062, %v5197
        %v5199 = vpop.f32.mrf.mxu0
        %5200 = vmatprep.mubr.bf16.mxu0 0
        %5201 = vmatmul.mubr.bf16.gmra.mxu0 %v5097
        %v5202 = vpop.f32.mrf.mxu0
        %v5203 = vadd.f32 %v5062, %v5202
        %v5204 = vpop.f32.mrf.mxu0
        %v5205 = vpop.f32.mrf.mxu0
        %v5206 = vadd.f32 %v5062, %v5205
        %v5207 = vpop.f32.mrf.mxu0
        %5208 = vmatprep.mubr.bf16.mxu0 0
        %5209 = vmatmul.mubr.bf16.gmra.mxu0 %v5098
        %v5210 = vpop.f32.mrf.mxu0
        %v5211 = vadd.f32 %v5062, %v5210
        %v5212 = vpop.f32.mrf.mxu0
        %v5213 = vpop.f32.mrf.mxu0
        %v5214 = vadd.f32 %v5062, %v5213
        %v5215 = vpop.f32.mrf.mxu0
        %5216 = vmatprep.mubr.bf16.mxu0 0
        %5217 = vmatmul.mubr.bf16.gmra.mxu0 %v5099
        %v5218 = vpop.f32.mrf.mxu0
        %v5219 = vadd.f32 %v5062, %v5218
        %v5220 = vpop.f32.mrf.mxu0
        %v5221 = vpop.f32.mrf.mxu0
        %v5222 = vadd.f32 %v5062, %v5221
        %v5223 = vpop.f32.mrf.mxu0
        %5224 = vmatprep.mubr.bf16.mxu0 0
        %5225 = vmatmul.mubr.bf16.gmra.mxu0 %v5100
        %v5226 = vpop.f32.mrf.mxu0
        %v5227 = vadd.f32 %v5062, %v5226
        %v5228 = vpop.f32.mrf.mxu0
        %v5229 = vpop.f32.mrf.mxu0
        %v5230 = vadd.f32 %v5062, %v5229
        %v5231 = vpop.f32.mrf.mxu0
        %5232 = vmatprep.mubr.bf16.mxu0 0
        %5233 = vmatmul.mubr.bf16.gmra.mxu0 %v5101
        %v5234 = vpop.f32.mrf.mxu0
        %v5235 = vadd.f32 %v5062, %v5234
        %v5236 = vpop.f32.mrf.mxu0
        %v5237 = vpop.f32.mrf.mxu0
        %v5238 = vadd.f32 %v5062, %v5237
        %v5239 = vpop.f32.mrf.mxu0
        %5240 = vmatprep.mubr.bf16.mxu0 0
        %5241 = vmatmul.mubr.bf16.gmra.mxu0 %v5102
        %v5242 = vpop.f32.mrf.mxu0
        %v5243 = vadd.f32 %v5062, %v5242
        %v5244 = vpop.f32.mrf.mxu0
        %v5245 = vpop.f32.mrf.mxu0
        %v5246 = vadd.f32 %v5062, %v5245
        %v5247 = vpop.f32.mrf.mxu0
        %5248 = vmatprep.mubr.bf16.mxu0 0
        %5249 = vmatmul.mubr.bf16.gmra.mxu0 %v5103
        %v5250 = vpop.f32.mrf.mxu0
        %v5251 = vadd.f32 %v5062, %v5250
        %v5252 = vpop.f32.mrf.mxu0
        %v5253 = vpop.f32.mrf.mxu0
        %v5254 = vadd.f32 %v5062, %v5253
        %v5255 = vpop.f32.mrf.mxu0
        %5256 = vdwg.mxu0
        %5257 = vst [vmem:[%s313] sm:$0xff] %v5195
        %5258 = vst [vmem:[%s313 + $0x8] sm:$0xff] %v5198
        %5259 = vst [vmem:[%s313 + $0x10] sm:$0xff] %v5203
        %5260 = vst [vmem:[%s313 + $0x18] sm:$0xff] %v5206
        %5261 = vst [vmem:[%s313 + $0x20] sm:$0xff] %v5211
        %5262 = vst [vmem:[%s313 + $0x28] sm:$0xff] %v5214
        %5263 = vst [vmem:[%s313 + $0x30] sm:$0xff] %v5219
        %5264 = vst [vmem:[%s313 + $0x38] sm:$0xff] %v5222
        %5265 = vst [vmem:[%s313 + $0x40] sm:$0xff] %v5227
        %5266 = vst [vmem:[%s313 + $0x48] sm:$0xff] %v5230
        %5267 = vst [vmem:[%s313 + $0x50] sm:$0xff] %v5235
        %5268 = vst [vmem:[%s313 + $0x58] sm:$0xff] %v5238
        %5269 = vst [vmem:[%s313 + $0x60] sm:$0xff] %v5243
        %5270 = vst [vmem:[%s313 + $0x68] sm:$0xff] %v5246
        %5271 = vst [vmem:[%s313 + $0x70] sm:$0xff] %v5251
        %5272 = vst [vmem:[%s313 + $0x78] sm:$0xff] %v5254
        %s5273 = sand.u32 %s164, 1
        %s5274 = scalar_lea.sflag [#allocation5], %s5273
        %s5275 = sand.u32 %s164, 1
        %s5276 = smul.addr %s5275, 128
        %s5277 = scalar_lea.vmem [#allocation11], %s5276
        // Predicated region
        $region61: #{tpu_custom_call.1} parent=43 // pred_check
          %p5278 = pneg %p174
        $region62: #{tpu_custom_call.1} parent=43 // pred_check_branch
          %5280 = sbr.rel (%p5278) target = $region64
        $region63: #{tpu_custom_call.1} parent=43 // pred_region
          %s5281 = smul.u32 16, %s25
          %s5283 = ssub.s32 2048, 2048
          %5284 = vsyncadd %s5274, %s5283
          %s5285 = smul.addr %s5281, 128
          %s5286 = scalar_lea.hbm %s6, %s5285
          %s5287 = sshll.u32 %s5277, 4
          %s5288 = int_to_ptr.vmem [resolvable:$true] %s5287
          %5293 = dma.vmem_to_hbm [thread:$0]  %s5288, 2048, %s5286, %s5274, 128, 128, 8
        $region64: #{tpu_custom_call.1} parent=43 // pred_fallthru
          _
      $region44: #{tpu_custom_call.1} parent=5 // pred_fallthru
        _
      %p5294 = scmp.le.s32.totalorder 2, %s20
      // Predicated region
      $region65: #{tpu_custom_call.1} parent=5 // pred_check
        %p5295 = pneg %p5294
      $region66: #{tpu_custom_call.1} parent=5 // pred_check_branch
        %5297 = sbr.rel (%p5295) target = $region68
      $region67: #{tpu_custom_call.1} parent=5 // pred_region
        %s5298 = ssub.s32 %s20, 2
        // Predicated region
        $region69: #{tpu_custom_call.1} parent=67 // pred_check
          %p5299 = pneg %p180
        $region70: #{tpu_custom_call.1} parent=67 // pred_check_branch
          %5301 = sbr.rel (%p5299) target = $region72
        $region71: #{tpu_custom_call.1} parent=67 // pred_region
          %s5302 = sand.u32 %s165, 1
          %s5303 = scalar_lea.sflag [#allocation5], %s5302
          %s5304 = sand.u32 %s165, 1
          %s5305 = smul.addr %s5304, 128
          %s5306 = scalar_lea.vmem [#allocation11], %s5305
          %5307 = dma.done %s5303, 2048
        $region72: #{tpu_custom_call.1} parent=67 // pred_fallthru
          _
      $region68: #{tpu_custom_call.1} parent=5 // pred_fallthru
        _
    $region6: #{tpu_custom_call.1} parent=1 // loop_footer
      %s24 = sadd.s32 1, %s20
    $region7: #{tpu_custom_call.1} parent=1 // loop_footer_branch
      %19 = sbr.rel target = $region3
    $region8: #{tpu_custom_call.1} parent=1 // loop_exit
      _
    %5308 = vsyncpa [#allocation4], 1
    %s5309 = scalar_lea.sflag [#allocation4], 1
    %5310 = vsyncpa %s5309, 1
    %5311 = vsyncpa [#allocation7], 1
    %5312 = vsyncpa [#allocation10], 1
    %5313 = vsyncpa [#allocation5], 1
    %s5314 = scalar_lea.sflag [#allocation5], 1
    %5315 = vsyncpa %s5314, 1

</llo_original>
